<compile_context>
chip_gen: v6e
topology: v6e:2x2x1
jax: 0.10.0
libtpu: 0.0.40
codegen_flags: <defaults>
</compile_context>

<pallas_src>
import math
import functools

import jax
import jax.numpy as jnp
from jax import lax
from jax.experimental import pallas as pl
from jax.experimental.pallas import tpu as pltpu

# Module hyper-parameters (from bigram.py)
N_EMBD = 384
N_HEADS = 6
HEAD_SIZE = N_EMBD // N_HEADS  # 64
BLOCK_SIZE = 256               # max sequence length (causal-mask buffer size)

NEG_INF = -1e30                # finite mask value (NaN-safe if rows were fully masked)


def mha_kernel(x_ref, wq_ref, wk_ref, wv_ref, wp_ref, bp_ref, o_ref,
               *, n_heads, head_size):
    """One grid step == (one batch element, one tile of query rows).

    x_ref  : (1, T, E)   full-sequence input for this batch element
    wq_ref : (E, E)      fused query weights, pre-scaled by 1/sqrt(head_size) (bf16)
    wk_ref : (E, E)      fused key weights (bf16)
    wv_ref : (E, E)      fused value weights (bf16)
    wp_ref : (E, E)      output projection weight, "x @ W" orientation (bf16)
    bp_ref : (1, E)      output projection bias (f32)
    o_ref  : (1, TQ, E)  result tile
    """
    T = x_ref.shape[1]
    E = x_ref.shape[2]
    TQ = o_ref.shape[1]
    H, Hs = n_heads, head_size

    qi = pl.program_id(1)
    row0 = pl.multiple_of(qi * TQ, TQ)

    # Full sequence (for K/V) and this tile's query rows; cast to bf16 at the
    # MXU boundary, accumulate in f32.
    x_full = x_ref[0].astype(jnp.bfloat16)                        # (T, E)
    x_q = x_ref[0, pl.ds(row0, TQ), :].astype(jnp.bfloat16)       # (TQ, E)

    # Fused full-width projections (MXU N-dim = E = 384).
    k_all = jnp.dot(x_full, wk_ref[...],
                    preferred_element_type=jnp.float32).astype(jnp.bfloat16)
    v_all = jnp.dot(x_full, wv_ref[...],
                    preferred_element_type=jnp.float32).astype(jnp.bfloat16)
    q_all = jnp.dot(x_q, wq_ref[...],
                    preferred_element_type=jnp.float32).astype(jnp.bfloat16)

    # Causal mask for this query tile (built once, shared across heads).
    rows = lax.broadcasted_iota(jnp.int32, (TQ, T), 0) + row0
    cols = lax.broadcasted_iota(jnp.int32, (TQ, T), 1)
    causal = cols <= rows

    acc = jnp.zeros((TQ, E), jnp.float32)
    for h in range(H):                          # small static unroll over heads
        sl = slice(h * Hs, (h + 1) * Hs)
        q_h = q_all[:, sl]                      # (TQ, Hs) bf16 (scale pre-folded)
        k_h = k_all[:, sl]                      # (T,  Hs) bf16
        v_h = v_all[:, sl]                      # (T,  Hs) bf16

        # scores: contract the Hs dims directly (no materialized k.T)
        s = lax.dot_general(q_h, k_h, (((1,), (1,)), ((), ())),
                            preferred_element_type=jnp.float32)   # (TQ, T) f32
        s = jnp.where(causal, s, NEG_INF)

        # softmax over keys (f32 math; reciprocal goes to the EUP)
        m = jnp.max(s, axis=-1, keepdims=True)
        e = jnp.exp(s - m)
        inv = pl.reciprocal(jnp.sum(e, axis=-1, keepdims=True), approx=True)
        p = (e * inv).astype(jnp.bfloat16)
        # (attention dropout: identity in eval mode)

        out_h = jnp.dot(p, v_h, preferred_element_type=jnp.float32)     # (TQ, Hs)

        # accumulate this head's contribution to the output projection
        acc = acc + jnp.dot(out_h.astype(jnp.bfloat16), wp_ref[sl, :],
                            preferred_element_type=jnp.float32)         # (TQ, E)

    # bias once at the end (output dropout: identity in eval mode)
    o_ref[0] = (acc + bp_ref[...]).astype(o_ref.dtype)


def multi_head_attention(x, wk, wq, wv, wp, bp):
    """x: (B, T, E) f32; wk/wq/wv: (H, E, Hs); wp: (E, E) 'x @ W'; bp: (1, E)."""
    B, T, E = x.shape
    H, _, Hs = wk.shape
    assert E == N_EMBD and H * Hs == E and T <= BLOCK_SIZE

    # Fuse per-head weights -> (E, H*Hs); fold the attention scale into wq;
    # cast parameters to bf16 (halves weight DMA, feeds the MXU at full rate).
    def fuse(w):
        return jnp.transpose(w, (1, 0, 2)).reshape(E, H * Hs)

    scale = 1.0 / math.sqrt(Hs)
    wq_f = (fuse(wq) * scale).astype(jnp.bfloat16)
    wk_f = fuse(wk).astype(jnp.bfloat16)
    wv_f = fuse(wv).astype(jnp.bfloat16)
    wp_b = wp.astype(jnp.bfloat16)
    bp_f = bp.astype(jnp.float32)

    # Query-row tiling: second parallel grid axis keeps both v7x TensorCores
    # busy even for small B.  TQ respects the (8,128) sublane rule.
    if T > 128 and T % 128 == 0:
        TQ = 128
    else:
        TQ = T

    kernel = functools.partial(mha_kernel, n_heads=H, head_size=Hs)
    return pl.pallas_call(
        kernel,
        out_shape=jax.ShapeDtypeStruct((B, T, E), x.dtype),
        grid_spec=pltpu.PrefetchScalarGridSpec(
            num_scalar_prefetch=0,
            grid=(B, T // TQ),
            in_specs=[
                pl.BlockSpec((1, T, E), lambda b, q: (b, 0, 0)),   # x (full seq)
                pl.BlockSpec((E, E), lambda b, q: (0, 0)),         # wq (fused, scaled)
                pl.BlockSpec((E, E), lambda b, q: (0, 0)),         # wk (fused)
                pl.BlockSpec((E, E), lambda b, q: (0, 0)),         # wv (fused)
                pl.BlockSpec((E, E), lambda b, q: (0, 0)),         # wp
                pl.BlockSpec((1, E), lambda b, q: (0, 0)),         # bias
            ],
            out_specs=pl.BlockSpec((1, TQ, E), lambda b, q: (b, q, 0)),
        ),
        compiler_params=pltpu.CompilerParams(
            dimension_semantics=("parallel", "parallel")),
    )(x, wq_f, wk_f, wv_f, wp_b, bp_f)


def reference(x, wk, wq, wv, wp, bp):
    """Pure-JAX f32 reference matching the PyTorch forward (eval mode)."""
    B, T, E = x.shape
    outs = []
    for h in range(wk.shape[0]):
        k = x @ wk[h]
        q = x @ wq[h]
        v = x @ wv[h]
        wei = q @ jnp.swapaxes(k, -2, -1) / math.sqrt(HEAD_SIZE)
        mask = jnp.tril(jnp.ones((T, T), dtype=bool))
        wei = jnp.where(mask, wei, -jnp.inf)
        wei = jax.nn.softmax(wei, axis=-1)
        outs.append(wei @ v)
    cat = jnp.concatenate(outs, axis=-1)
    return cat @ wp + bp


if __name__ == "__main__":
    key = jax.random.PRNGKey(0)
    kx, kk, kq, kv, kp, kb = jax.random.split(key, 6)

    B, T = 2, 16
    x = jax.random.normal(kx, (B, T, N_EMBD), dtype=jnp.float32)

    # Deterministic parameter init (shapes follow nn.Linear in the module).
    s = 1.0 / math.sqrt(N_EMBD)
    wk = jax.random.uniform(kk, (N_HEADS, N_EMBD, HEAD_SIZE), jnp.float32, -s, s)
    wq = jax.random.uniform(kq, (N_HEADS, N_EMBD, HEAD_SIZE), jnp.float32, -s, s)
    wv = jax.random.uniform(kv, (N_HEADS, N_EMBD, HEAD_SIZE), jnp.float32, -s, s)
    wp = jax.random.uniform(kp, (N_EMBD, N_EMBD), jnp.float32, -s, s)
    bp = jax.random.uniform(kb, (1, N_EMBD), jnp.float32, -s, s)

    out = multi_head_attention(x, wk, wq, wv, wp, bp)
    out = jax.block_until_ready(out)

    ref = reference(x, wk, wq, wv, wp, bp[0])
    assert out.shape == (B, T, N_EMBD)
    # bf16 matmuls (f32 accumulation) vs f32 reference -> loosened tolerance.
    assert jnp.allclose(out, ref, atol=2e-2, rtol=2e-2), "mismatch vs reference"

    print("KERNEL_OK")
</pallas_src>

<mosaic_0001>
module attributes {stable_mosaic.version = 11 : i64} {
  func.func @mha_kernel(%arg0: i32, %arg1: i32, %arg2: memref<1x16x384xf32, #tpu.memory_space<vmem>>, %arg3: memref<384x384xbf16, #tpu.memory_space<vmem>>, %arg4: memref<384x384xbf16, #tpu.memory_space<vmem>>, %arg5: memref<384x384xbf16, #tpu.memory_space<vmem>>, %arg6: memref<384x384xbf16, #tpu.memory_space<vmem>>, %arg7: memref<1x384xf32, #tpu.memory_space<vmem>>, %arg8: memref<1x16x384xf32, #tpu.memory_space<vmem>>) attributes {dimension_semantics = [#tpu.dimension_semantics<parallel>, #tpu.dimension_semantics<parallel>], iteration_bounds = array<i64: 2, 1>, scalar_prefetch = 0 : i64, scratch_operands = 0 : i64, tpu.core_type = #tpu.core_type<tc>, window_params = [{transform_indices = @transform_0, window_bounds = array<i64: 1, 16, 384>}, {pipeline_mode = #tpu.pipeline_mode<synchronous>, transform_indices = @transform_1, window_bounds = array<i64: 384, 384>}, {pipeline_mode = #tpu.pipeline_mode<synchronous>, transform_indices = @transform_2, window_bounds = array<i64: 384, 384>}, {pipeline_mode = #tpu.pipeline_mode<synchronous>, transform_indices = @transform_3, window_bounds = array<i64: 384, 384>}, {pipeline_mode = #tpu.pipeline_mode<synchronous>, transform_indices = @transform_4, window_bounds = array<i64: 384, 384>}, {pipeline_mode = #tpu.pipeline_mode<synchronous>, transform_indices = @transform_5, window_bounds = array<i64: 1, 384>}, {transform_indices = @transform_6, window_bounds = array<i64: 1, 16, 384>}]} {
    %c16_i32 = arith.constant 16 : i32
    %0 = arith.muli %arg1, %c16_i32 : i32
    %1 = tpu.assume_multiple %0, 16 : i32
    %c0 = arith.constant 0 : index
    %c0_0 = arith.constant 0 : index
    %c0_1 = arith.constant 0 : index
    %2 = vector.load %arg2[%c0, %c0_0, %c0_1] : memref<1x16x384xf32, #tpu.memory_space<vmem>>, vector<1x16x384xf32>
    %3 = vector.shape_cast %2 : vector<1x16x384xf32> to vector<16x384xf32>
    %4 = arith.truncf %3 : vector<16x384xf32> to vector<16x384xbf16>
    %c0_2 = arith.constant 0 : index
    %5 = arith.index_cast %1 : i32 to index
    %c0_3 = arith.constant 0 : index
    %6 = vector.load %arg2[%c0_2, %5, %c0_3] : memref<1x16x384xf32, #tpu.memory_space<vmem>>, vector<1x16x384xf32>
    %7 = vector.shape_cast %6 : vector<1x16x384xf32> to vector<16x384xf32>
    %8 = arith.truncf %7 : vector<16x384xf32> to vector<16x384xbf16>
    %c0_4 = arith.constant 0 : index
    %c0_5 = arith.constant 0 : index
    %9 = vector.load %arg4[%c0_4, %c0_5] : memref<384x384xbf16, #tpu.memory_space<vmem>>, vector<384x384xbf16>
    %cst = arith.constant dense<0.000000e+00> : vector<16x384xf32>
    %10 = tpu.matmul %4, %9, %cst {dimension_numbers = #tpu.dot_dimension_numbers<[1], [0], [0], [1], [0, 0, 1, 1], [], []>} : vector<16x384xbf16>, vector<384x384xbf16>, vector<16x384xf32> -> vector<16x384xf32>
    %11 = arith.truncf %10 : vector<16x384xf32> to vector<16x384xbf16>
    %c0_6 = arith.constant 0 : index
    %c0_7 = arith.constant 0 : index
    %12 = vector.load %arg5[%c0_6, %c0_7] : memref<384x384xbf16, #tpu.memory_space<vmem>>, vector<384x384xbf16>
    %cst_8 = arith.constant dense<0.000000e+00> : vector<16x384xf32>
    %13 = tpu.matmul %4, %12, %cst_8 {dimension_numbers = #tpu.dot_dimension_numbers<[1], [0], [0], [1], [0, 0, 1, 1], [], []>} : vector<16x384xbf16>, vector<384x384xbf16>, vector<16x384xf32> -> vector<16x384xf32>
    %14 = arith.truncf %13 : vector<16x384xf32> to vector<16x384xbf16>
    %c0_9 = arith.constant 0 : index
    %c0_10 = arith.constant 0 : index
    %15 = vector.load %arg3[%c0_9, %c0_10] : memref<384x384xbf16, #tpu.memory_space<vmem>>, vector<384x384xbf16>
    %cst_11 = arith.constant dense<0.000000e+00> : vector<16x384xf32>
    %16 = tpu.matmul %8, %15, %cst_11 {dimension_numbers = #tpu.dot_dimension_numbers<[1], [0], [0], [1], [0, 0, 1, 1], [], []>} : vector<16x384xbf16>, vector<384x384xbf16>, vector<16x384xf32> -> vector<16x384xf32>
    %17 = arith.truncf %16 : vector<16x384xf32> to vector<16x384xbf16>
    %18 = tpu.iota {dimensions = array<i32: 0>} : vector<16x16xi32>
    %19 = vector.broadcast %1 : i32 to vector<16x16xi32>
    %20 = arith.addi %18, %19 : vector<16x16xi32>
    %21 = tpu.iota {dimensions = array<i32: 1>} : vector<16x16xi32>
    %22 = arith.cmpi sle, %21, %20 : vector<16x16xi32>
    %cst_12 = arith.constant 0.000000e+00 : f32
    %23 = vector.broadcast %cst_12 : f32 to vector<16x384xf32>
    %24 = vector.extract_strided_slice %17 {offsets = [0, 0], sizes = [16, 64], strides = [1, 1]} : vector<16x384xbf16> to vector<16x64xbf16>
    %25 = vector.extract_strided_slice %11 {offsets = [0, 0], sizes = [16, 64], strides = [1, 1]} : vector<16x384xbf16> to vector<16x64xbf16>
    %26 = vector.extract_strided_slice %14 {offsets = [0, 0], sizes = [16, 64], strides = [1, 1]} : vector<16x384xbf16> to vector<16x64xbf16>
    %cst_13 = arith.constant dense<0.000000e+00> : vector<16x16xf32>
    %27 = tpu.matmul %24, %25, %cst_13 {dimension_numbers = #tpu.dot_dimension_numbers<[1], [1], [0], [0], [0, 0, 1, 0], [], []>} : vector<16x64xbf16>, vector<16x64xbf16>, vector<16x16xf32> -> vector<16x16xf32>
    %cst_14 = arith.constant -1.000000e+30 : f32
    %28 = vector.broadcast %cst_14 : f32 to vector<16x16xf32>
    %29 = arith.select %22, %27, %28 : vector<16x16xi1>, vector<16x16xf32>
    %cst_15 = arith.constant dense<0xFF800000> : vector<16xf32>
    %30 = vector.multi_reduction <maximumf>, %29, %cst_15 [1] : vector<16x16xf32> to vector<16xf32>
    %31 = vector.shape_cast %30 : vector<16xf32> to vector<16x1xf32>
    %32 = vector.broadcast %31 : vector<16x1xf32> to vector<16x16xf32>
    %33 = arith.subf %29, %32 : vector<16x16xf32>
    %34 = math.exp %33 : vector<16x16xf32>
    %cst_16 = arith.constant dense<0.000000e+00> : vector<16xf32>
    %35 = vector.multi_reduction <add>, %34, %cst_16 [1] : vector<16x16xf32> to vector<16xf32>
    %36 = vector.shape_cast %35 : vector<16xf32> to vector<16x1xf32>
    %37 = tpu.reciprocal %36 {approx = true} : vector<16x1xf32> -> vector<16x1xf32>
    %38 = vector.broadcast %37 : vector<16x1xf32> to vector<16x16xf32>
    %39 = arith.mulf %34, %38 : vector<16x16xf32>
    %40 = arith.truncf %39 : vector<16x16xf32> to vector<16x16xbf16>
    %cst_17 = arith.constant dense<0.000000e+00> : vector<16x64xf32>
    %41 = tpu.matmul %40, %26, %cst_17 {dimension_numbers = #tpu.dot_dimension_numbers<[1], [0], [0], [1], [0, 0, 1, 1], [], []>} : vector<16x16xbf16>, vector<16x64xbf16>, vector<16x64xf32> -> vector<16x64xf32>
    %42 = arith.truncf %41 : vector<16x64xf32> to vector<16x64xbf16>
    %c0_18 = arith.constant 0 : index
    %c0_19 = arith.constant 0 : index
    %43 = vector.load %arg6[%c0_18, %c0_19] : memref<384x384xbf16, #tpu.memory_space<vmem>>, vector<64x384xbf16>
    %cst_20 = arith.constant dense<0.000000e+00> : vector<16x384xf32>
    %44 = tpu.matmul %42, %43, %cst_20 {dimension_numbers = #tpu.dot_dimension_numbers<[1], [0], [0], [1], [0, 0, 1, 1], [], []>} : vector<16x64xbf16>, vector<64x384xbf16>, vector<16x384xf32> -> vector<16x384xf32>
    %45 = arith.addf %23, %44 : vector<16x384xf32>
    %46 = vector.extract_strided_slice %17 {offsets = [0, 64], sizes = [16, 64], strides = [1, 1]} : vector<16x384xbf16> to vector<16x64xbf16>
    %47 = vector.extract_strided_slice %11 {offsets = [0, 64], sizes = [16, 64], strides = [1, 1]} : vector<16x384xbf16> to vector<16x64xbf16>
    %48 = vector.extract_strided_slice %14 {offsets = [0, 64], sizes = [16, 64], strides = [1, 1]} : vector<16x384xbf16> to vector<16x64xbf16>
    %cst_21 = arith.constant dense<0.000000e+00> : vector<16x16xf32>
    %49 = tpu.matmul %46, %47, %cst_21 {dimension_numbers = #tpu.dot_dimension_numbers<[1], [1], [0], [0], [0, 0, 1, 0], [], []>} : vector<16x64xbf16>, vector<16x64xbf16>, vector<16x16xf32> -> vector<16x16xf32>
    %cst_22 = arith.constant -1.000000e+30 : f32
    %50 = vector.broadcast %cst_22 : f32 to vector<16x16xf32>
    %51 = arith.select %22, %49, %50 : vector<16x16xi1>, vector<16x16xf32>
    %cst_23 = arith.constant dense<0xFF800000> : vector<16xf32>
    %52 = vector.multi_reduction <maximumf>, %51, %cst_23 [1] : vector<16x16xf32> to vector<16xf32>
    %53 = vector.shape_cast %52 : vector<16xf32> to vector<16x1xf32>
    %54 = vector.broadcast %53 : vector<16x1xf32> to vector<16x16xf32>
    %55 = arith.subf %51, %54 : vector<16x16xf32>
    %56 = math.exp %55 : vector<16x16xf32>
    %cst_24 = arith.constant dense<0.000000e+00> : vector<16xf32>
    %57 = vector.multi_reduction <add>, %56, %cst_24 [1] : vector<16x16xf32> to vector<16xf32>
    %58 = vector.shape_cast %57 : vector<16xf32> to vector<16x1xf32>
    %59 = tpu.reciprocal %58 {approx = true} : vector<16x1xf32> -> vector<16x1xf32>
    %60 = vector.broadcast %59 : vector<16x1xf32> to vector<16x16xf32>
    %61 = arith.mulf %56, %60 : vector<16x16xf32>
    %62 = arith.truncf %61 : vector<16x16xf32> to vector<16x16xbf16>
    %cst_25 = arith.constant dense<0.000000e+00> : vector<16x64xf32>
    %63 = tpu.matmul %62, %48, %cst_25 {dimension_numbers = #tpu.dot_dimension_numbers<[1], [0], [0], [1], [0, 0, 1, 1], [], []>} : vector<16x16xbf16>, vector<16x64xbf16>, vector<16x64xf32> -> vector<16x64xf32>
    %64 = arith.truncf %63 : vector<16x64xf32> to vector<16x64xbf16>
    %c64 = arith.constant 64 : index
    %c0_26 = arith.constant 0 : index
    %65 = vector.load %arg6[%c64, %c0_26] : memref<384x384xbf16, #tpu.memory_space<vmem>>, vector<64x384xbf16>
    %cst_27 = arith.constant dense<0.000000e+00> : vector<16x384xf32>
    %66 = tpu.matmul %64, %65, %cst_27 {dimension_numbers = #tpu.dot_dimension_numbers<[1], [0], [0], [1], [0, 0, 1, 1], [], []>} : vector<16x64xbf16>, vector<64x384xbf16>, vector<16x384xf32> -> vector<16x384xf32>
    %67 = arith.addf %45, %66 : vector<16x384xf32>
    %68 = vector.extract_strided_slice %17 {offsets = [0, 128], sizes = [16, 64], strides = [1, 1]} : vector<16x384xbf16> to vector<16x64xbf16>
    %69 = vector.extract_strided_slice %11 {offsets = [0, 128], sizes = [16, 64], strides = [1, 1]} : vector<16x384xbf16> to vector<16x64xbf16>
    %70 = vector.extract_strided_slice %14 {offsets = [0, 128], sizes = [16, 64], strides = [1, 1]} : vector<16x384xbf16> to vector<16x64xbf16>
    %cst_28 = arith.constant dense<0.000000e+00> : vector<16x16xf32>
    %71 = tpu.matmul %68, %69, %cst_28 {dimension_numbers = #tpu.dot_dimension_numbers<[1], [1], [0], [0], [0, 0, 1, 0], [], []>} : vector<16x64xbf16>, vector<16x64xbf16>, vector<16x16xf32> -> vector<16x16xf32>
    %cst_29 = arith.constant -1.000000e+30 : f32
    %72 = vector.broadcast %cst_29 : f32 to vector<16x16xf32>
    %73 = arith.select %22, %71, %72 : vector<16x16xi1>, vector<16x16xf32>
    %cst_30 = arith.constant dense<0xFF800000> : vector<16xf32>
    %74 = vector.multi_reduction <maximumf>, %73, %cst_30 [1] : vector<16x16xf32> to vector<16xf32>
    %75 = vector.shape_cast %74 : vector<16xf32> to vector<16x1xf32>
    %76 = vector.broadcast %75 : vector<16x1xf32> to vector<16x16xf32>
    %77 = arith.subf %73, %76 : vector<16x16xf32>
    %78 = math.exp %77 : vector<16x16xf32>
    %cst_31 = arith.constant dense<0.000000e+00> : vector<16xf32>
    %79 = vector.multi_reduction <add>, %78, %cst_31 [1] : vector<16x16xf32> to vector<16xf32>
    %80 = vector.shape_cast %79 : vector<16xf32> to vector<16x1xf32>
    %81 = tpu.reciprocal %80 {approx = true} : vector<16x1xf32> -> vector<16x1xf32>
    %82 = vector.broadcast %81 : vector<16x1xf32> to vector<16x16xf32>
    %83 = arith.mulf %78, %82 : vector<16x16xf32>
    %84 = arith.truncf %83 : vector<16x16xf32> to vector<16x16xbf16>
    %cst_32 = arith.constant dense<0.000000e+00> : vector<16x64xf32>
    %85 = tpu.matmul %84, %70, %cst_32 {dimension_numbers = #tpu.dot_dimension_numbers<[1], [0], [0], [1], [0, 0, 1, 1], [], []>} : vector<16x16xbf16>, vector<16x64xbf16>, vector<16x64xf32> -> vector<16x64xf32>
    %86 = arith.truncf %85 : vector<16x64xf32> to vector<16x64xbf16>
    %c128 = arith.constant 128 : index
    %c0_33 = arith.constant 0 : index
    %87 = vector.load %arg6[%c128, %c0_33] : memref<384x384xbf16, #tpu.memory_space<vmem>>, vector<64x384xbf16>
    %cst_34 = arith.constant dense<0.000000e+00> : vector<16x384xf32>
    %88 = tpu.matmul %86, %87, %cst_34 {dimension_numbers = #tpu.dot_dimension_numbers<[1], [0], [0], [1], [0, 0, 1, 1], [], []>} : vector<16x64xbf16>, vector<64x384xbf16>, vector<16x384xf32> -> vector<16x384xf32>
    %89 = arith.addf %67, %88 : vector<16x384xf32>
    %90 = vector.extract_strided_slice %17 {offsets = [0, 192], sizes = [16, 64], strides = [1, 1]} : vector<16x384xbf16> to vector<16x64xbf16>
    %91 = vector.extract_strided_slice %11 {offsets = [0, 192], sizes = [16, 64], strides = [1, 1]} : vector<16x384xbf16> to vector<16x64xbf16>
    %92 = vector.extract_strided_slice %14 {offsets = [0, 192], sizes = [16, 64], strides = [1, 1]} : vector<16x384xbf16> to vector<16x64xbf16>
    %cst_35 = arith.constant dense<0.000000e+00> : vector<16x16xf32>
    %93 = tpu.matmul %90, %91, %cst_35 {dimension_numbers = #tpu.dot_dimension_numbers<[1], [1], [0], [0], [0, 0, 1, 0], [], []>} : vector<16x64xbf16>, vector<16x64xbf16>, vector<16x16xf32> -> vector<16x16xf32>
    %cst_36 = arith.constant -1.000000e+30 : f32
    %94 = vector.broadcast %cst_36 : f32 to vector<16x16xf32>
    %95 = arith.select %22, %93, %94 : vector<16x16xi1>, vector<16x16xf32>
    %cst_37 = arith.constant dense<0xFF800000> : vector<16xf32>
    %96 = vector.multi_reduction <maximumf>, %95, %cst_37 [1] : vector<16x16xf32> to vector<16xf32>
    %97 = vector.shape_cast %96 : vector<16xf32> to vector<16x1xf32>
    %98 = vector.broadcast %97 : vector<16x1xf32> to vector<16x16xf32>
    %99 = arith.subf %95, %98 : vector<16x16xf32>
    %100 = math.exp %99 : vector<16x16xf32>
    %cst_38 = arith.constant dense<0.000000e+00> : vector<16xf32>
    %101 = vector.multi_reduction <add>, %100, %cst_38 [1] : vector<16x16xf32> to vector<16xf32>
    %102 = vector.shape_cast %101 : vector<16xf32> to vector<16x1xf32>
    %103 = tpu.reciprocal %102 {approx = true} : vector<16x1xf32> -> vector<16x1xf32>
    %104 = vector.broadcast %103 : vector<16x1xf32> to vector<16x16xf32>
    %105 = arith.mulf %100, %104 : vector<16x16xf32>
    %106 = arith.truncf %105 : vector<16x16xf32> to vector<16x16xbf16>
    %cst_39 = arith.constant dense<0.000000e+00> : vector<16x64xf32>
    %107 = tpu.matmul %106, %92, %cst_39 {dimension_numbers = #tpu.dot_dimension_numbers<[1], [0], [0], [1], [0, 0, 1, 1], [], []>} : vector<16x16xbf16>, vector<16x64xbf16>, vector<16x64xf32> -> vector<16x64xf32>
    %108 = arith.truncf %107 : vector<16x64xf32> to vector<16x64xbf16>
    %c192 = arith.constant 192 : index
    %c0_40 = arith.constant 0 : index
    %109 = vector.load %arg6[%c192, %c0_40] : memref<384x384xbf16, #tpu.memory_space<vmem>>, vector<64x384xbf16>
    %cst_41 = arith.constant dense<0.000000e+00> : vector<16x384xf32>
    %110 = tpu.matmul %108, %109, %cst_41 {dimension_numbers = #tpu.dot_dimension_numbers<[1], [0], [0], [1], [0, 0, 1, 1], [], []>} : vector<16x64xbf16>, vector<64x384xbf16>, vector<16x384xf32> -> vector<16x384xf32>
    %111 = arith.addf %89, %110 : vector<16x384xf32>
    %112 = vector.extract_strided_slice %17 {offsets = [0, 256], sizes = [16, 64], strides = [1, 1]} : vector<16x384xbf16> to vector<16x64xbf16>
    %113 = vector.extract_strided_slice %11 {offsets = [0, 256], sizes = [16, 64], strides = [1, 1]} : vector<16x384xbf16> to vector<16x64xbf16>
    %114 = vector.extract_strided_slice %14 {offsets = [0, 256], sizes = [16, 64], strides = [1, 1]} : vector<16x384xbf16> to vector<16x64xbf16>
    %cst_42 = arith.constant dense<0.000000e+00> : vector<16x16xf32>
    %115 = tpu.matmul %112, %113, %cst_42 {dimension_numbers = #tpu.dot_dimension_numbers<[1], [1], [0], [0], [0, 0, 1, 0], [], []>} : vector<16x64xbf16>, vector<16x64xbf16>, vector<16x16xf32> -> vector<16x16xf32>
    %cst_43 = arith.constant -1.000000e+30 : f32
    %116 = vector.broadcast %cst_43 : f32 to vector<16x16xf32>
    %117 = arith.select %22, %115, %116 : vector<16x16xi1>, vector<16x16xf32>
    %cst_44 = arith.constant dense<0xFF800000> : vector<16xf32>
    %118 = vector.multi_reduction <maximumf>, %117, %cst_44 [1] : vector<16x16xf32> to vector<16xf32>
    %119 = vector.shape_cast %118 : vector<16xf32> to vector<16x1xf32>
    %120 = vector.broadcast %119 : vector<16x1xf32> to vector<16x16xf32>
    %121 = arith.subf %117, %120 : vector<16x16xf32>
    %122 = math.exp %121 : vector<16x16xf32>
    %cst_45 = arith.constant dense<0.000000e+00> : vector<16xf32>
    %123 = vector.multi_reduction <add>, %122, %cst_45 [1] : vector<16x16xf32> to vector<16xf32>
    %124 = vector.shape_cast %123 : vector<16xf32> to vector<16x1xf32>
    %125 = tpu.reciprocal %124 {approx = true} : vector<16x1xf32> -> vector<16x1xf32>
    %126 = vector.broadcast %125 : vector<16x1xf32> to vector<16x16xf32>
    %127 = arith.mulf %122, %126 : vector<16x16xf32>
    %128 = arith.truncf %127 : vector<16x16xf32> to vector<16x16xbf16>
    %cst_46 = arith.constant dense<0.000000e+00> : vector<16x64xf32>
    %129 = tpu.matmul %128, %114, %cst_46 {dimension_numbers = #tpu.dot_dimension_numbers<[1], [0], [0], [1], [0, 0, 1, 1], [], []>} : vector<16x16xbf16>, vector<16x64xbf16>, vector<16x64xf32> -> vector<16x64xf32>
    %130 = arith.truncf %129 : vector<16x64xf32> to vector<16x64xbf16>
    %c256 = arith.constant 256 : index
    %c0_47 = arith.constant 0 : index
    %131 = vector.load %arg6[%c256, %c0_47] : memref<384x384xbf16, #tpu.memory_space<vmem>>, vector<64x384xbf16>
    %cst_48 = arith.constant dense<0.000000e+00> : vector<16x384xf32>
    %132 = tpu.matmul %130, %131, %cst_48 {dimension_numbers = #tpu.dot_dimension_numbers<[1], [0], [0], [1], [0, 0, 1, 1], [], []>} : vector<16x64xbf16>, vector<64x384xbf16>, vector<16x384xf32> -> vector<16x384xf32>
    %133 = arith.addf %111, %132 : vector<16x384xf32>
    %134 = vector.extract_strided_slice %17 {offsets = [0, 320], sizes = [16, 64], strides = [1, 1]} : vector<16x384xbf16> to vector<16x64xbf16>
    %135 = vector.extract_strided_slice %11 {offsets = [0, 320], sizes = [16, 64], strides = [1, 1]} : vector<16x384xbf16> to vector<16x64xbf16>
    %136 = vector.extract_strided_slice %14 {offsets = [0, 320], sizes = [16, 64], strides = [1, 1]} : vector<16x384xbf16> to vector<16x64xbf16>
    %cst_49 = arith.constant dense<0.000000e+00> : vector<16x16xf32>
    %137 = tpu.matmul %134, %135, %cst_49 {dimension_numbers = #tpu.dot_dimension_numbers<[1], [1], [0], [0], [0, 0, 1, 0], [], []>} : vector<16x64xbf16>, vector<16x64xbf16>, vector<16x16xf32> -> vector<16x16xf32>
    %cst_50 = arith.constant -1.000000e+30 : f32
    %138 = vector.broadcast %cst_50 : f32 to vector<16x16xf32>
    %139 = arith.select %22, %137, %138 : vector<16x16xi1>, vector<16x16xf32>
    %cst_51 = arith.constant dense<0xFF800000> : vector<16xf32>
    %140 = vector.multi_reduction <maximumf>, %139, %cst_51 [1] : vector<16x16xf32> to vector<16xf32>
    %141 = vector.shape_cast %140 : vector<16xf32> to vector<16x1xf32>
    %142 = vector.broadcast %141 : vector<16x1xf32> to vector<16x16xf32>
    %143 = arith.subf %139, %142 : vector<16x16xf32>
    %144 = math.exp %143 : vector<16x16xf32>
    %cst_52 = arith.constant dense<0.000000e+00> : vector<16xf32>
    %145 = vector.multi_reduction <add>, %144, %cst_52 [1] : vector<16x16xf32> to vector<16xf32>
    %146 = vector.shape_cast %145 : vector<16xf32> to vector<16x1xf32>
    %147 = tpu.reciprocal %146 {approx = true} : vector<16x1xf32> -> vector<16x1xf32>
    %148 = vector.broadcast %147 : vector<16x1xf32> to vector<16x16xf32>
    %149 = arith.mulf %144, %148 : vector<16x16xf32>
    %150 = arith.truncf %149 : vector<16x16xf32> to vector<16x16xbf16>
    %cst_53 = arith.constant dense<0.000000e+00> : vector<16x64xf32>
    %151 = tpu.matmul %150, %136, %cst_53 {dimension_numbers = #tpu.dot_dimension_numbers<[1], [0], [0], [1], [0, 0, 1, 1], [], []>} : vector<16x16xbf16>, vector<16x64xbf16>, vector<16x64xf32> -> vector<16x64xf32>
    %152 = arith.truncf %151 : vector<16x64xf32> to vector<16x64xbf16>
    %c320 = arith.constant 320 : index
    %c0_54 = arith.constant 0 : index
    %153 = vector.load %arg6[%c320, %c0_54] : memref<384x384xbf16, #tpu.memory_space<vmem>>, vector<64x384xbf16>
    %cst_55 = arith.constant dense<0.000000e+00> : vector<16x384xf32>
    %154 = tpu.matmul %152, %153, %cst_55 {dimension_numbers = #tpu.dot_dimension_numbers<[1], [0], [0], [1], [0, 0, 1, 1], [], []>} : vector<16x64xbf16>, vector<64x384xbf16>, vector<16x384xf32> -> vector<16x384xf32>
    %155 = arith.addf %133, %154 : vector<16x384xf32>
    %c0_56 = arith.constant 0 : index
    %c0_57 = arith.constant 0 : index
    %156 = vector.load %arg7[%c0_56, %c0_57] : memref<1x384xf32, #tpu.memory_space<vmem>>, vector<1x384xf32>
    %157 = vector.broadcast %156 : vector<1x384xf32> to vector<16x384xf32>
    %158 = arith.addf %155, %157 : vector<16x384xf32>
    %c0_58 = arith.constant 0 : index
    %c0_59 = arith.constant 0 : index
    %c0_60 = arith.constant 0 : index
    %159 = vector.load %arg8[%c0_58, %c0_59, %c0_60] : memref<1x16x384xf32, #tpu.memory_space<vmem>>, vector<1x16x384xf32>
    %160 = vector.shape_cast %159 : vector<1x16x384xf32> to vector<16x384xf32>
    %161 = vector.shape_cast %158 : vector<16x384xf32> to vector<1x16x384xf32>
    tpu.vector_store %arg8[%c0_58, %c0_59, %c0_60], %161 {strides = array<i32>} : memref<1x16x384xf32, #tpu.memory_space<vmem>>, vector<1x16x384xf32>,
    return
  }
  func.func @transform_0(%arg0: i32, %arg1: i32) -> (i32, i32, i32) {
    %c0_i32 = arith.constant 0 : i32
    %c0_i32_0 = arith.constant 0 : i32
    %c0_i32_1 = arith.constant 0 : i32
    return %arg0, %c0_i32, %c0_i32_0 : i32, i32, i32
  }
  func.func @transform_1(%arg0: i32, %arg1: i32) -> (i32, i32) {
    %c0_i32 = arith.constant 0 : i32
    %c0_i32_0 = arith.constant 0 : i32
    %c0_i32_1 = arith.constant 0 : i32
    return %c0_i32, %c0_i32_0 : i32, i32
  }
  func.func @transform_2(%arg0: i32, %arg1: i32) -> (i32, i32) {
    %c0_i32 = arith.constant 0 : i32
    %c0_i32_0 = arith.constant 0 : i32
    %c0_i32_1 = arith.constant 0 : i32
    return %c0_i32, %c0_i32_0 : i32, i32
  }
  func.func @transform_3(%arg0: i32, %arg1: i32) -> (i32, i32) {
    %c0_i32 = arith.constant 0 : i32
    %c0_i32_0 = arith.constant 0 : i32
    %c0_i32_1 = arith.constant 0 : i32
    return %c0_i32, %c0_i32_0 : i32, i32
  }
  func.func @transform_4(%arg0: i32, %arg1: i32) -> (i32, i32) {
    %c0_i32 = arith.constant 0 : i32
    %c0_i32_0 = arith.constant 0 : i32
    %c0_i32_1 = arith.constant 0 : i32
    return %c0_i32, %c0_i32_0 : i32, i32
  }
  func.func @transform_5(%arg0: i32, %arg1: i32) -> (i32, i32) {
    %c0_i32 = arith.constant 0 : i32
    %c0_i32_0 = arith.constant 0 : i32
    %c0_i32_1 = arith.constant 0 : i32
    return %c0_i32, %c0_i32_0 : i32, i32
  }
  func.func @transform_6(%arg0: i32, %arg1: i32) -> (i32, i32, i32) {
    %c0_i32 = arith.constant 0 : i32
    %c0_i32_0 = arith.constant 0 : i32
    return %arg0, %arg1, %c0_i32 : i32, i32, i32
  }
}

</mosaic_0001>

<llo_original>
// kernel: tpu_custom_call.1
$region0: #{tpu_custom_call.1}
  #allocation0 [shape = 'u32[]', space=smem, size = 0x4, offset = 0x4, fixed_abs, tag = 'smem constant byte address 0x4 - core index']
  #allocation1 [shape = 'u32[144,128]{1,0:T(1,128)}', space=vmem, size = 0x12000, scoped, tag = 'internal scratch']
  %s0 = inlined_call_operand.hbm [shape: f32[2,16,384], index: 0, kind: input, shape index: {}]
  %s1 = inlined_call_operand.hbm [shape: bf16[384,384], index: 1, kind: input, shape index: {}]
  %s2 = inlined_call_operand.hbm [shape: bf16[384,384], index: 2, kind: input, shape index: {}]
  %s3 = inlined_call_operand.hbm [shape: bf16[384,384], index: 3, kind: input, shape index: {}]
  %s4 = inlined_call_operand.hbm [shape: bf16[384,384], index: 4, kind: input, shape index: {}]
  %s5 = inlined_call_operand.vmem [shape: f32[1,384], index: 5, kind: input, shape index: {}]
  %s6 = inlined_call_operand.hbm [shape: f32[2,16,384], index: 6, kind: output, shape index: {}]
  %s7 = sld [smem:[#allocation0]]
  $region77: #{tpu_custom_call.1} parent=0
    _
  %s9 = ssub.s32 1, %s7
  %s10 = scalar_select 0, %s9, %s7
  $region1: #{tpu_custom_call.1} parent=0
    #allocation2 [shape = 'u8[49152]{0}', space=vmem, size = 0xc000, scoped, tag = 'input window, operand 0']
    #allocation3 [shape = 's32[2]{0}', space=sflag, size = 0x8, scoped, tag = 'scoped memory for tpu_custom_call.1']
    #allocation4 [shape = 's32[2]{0}', space=sflag, size = 0x8, scoped, tag = 'scoped memory for tpu_custom_call.1']
    #allocation5 [shape = 'u8[294912]{0}', space=vmem, size = 0x48000, scoped, tag = 'input window, operand 1, single buffered']
    #allocation6 [shape = 's32[1]{0}', space=sflag, size = 0x4, scoped, tag = 'scoped memory for tpu_custom_call.1']
    #allocation7 [shape = 'u8[294912]{0}', space=vmem, size = 0x48000, scoped, tag = 'input window, operand 2, single buffered']
    #allocation8 [shape = 'u8[294912]{0}', space=vmem, size = 0x48000, scoped, tag = 'input window, operand 3, single buffered']
    #allocation9 [shape = 's32[1]{0}', space=sflag, size = 0x4, scoped, tag = 'scoped memory for tpu_custom_call.1']
    #allocation10 [shape = 'u8[294912]{0}', space=vmem, size = 0x48000, scoped, tag = 'input window, operand 4, single buffered']
    #allocation11 [shape = 'u8[49152]{0}', space=vmem, size = 0xc000, scoped, tag = 'output window, operand 0']
    %11 = vsyncpa [#allocation3], 0
    %s12 = scalar_lea.sflag [#allocation3], 1
    %13 = vsyncpa %s12, 0
    %14 = vsyncpa [#allocation6], 0
    %15 = vsyncpa [#allocation9], 0
    %16 = vsyncpa [#allocation4], 0
    %s17 = scalar_lea.sflag [#allocation4], 1
    %18 = vsyncpa %s17, 0
    loop: start=0, step=1, limit=4
    $region2: #{tpu_custom_call.1} parent=1 // loop_pre_header
      _
    $region3: #{tpu_custom_call.1} parent=1 // loop_header
      %s20 = sphi 0, %s24
      %p21 = scmp.ge.s32.totalorder %s20, 4
      %s27 = sphi 0, %s39
      %s28 = sphi 0, %s35
      %s29 = sphi 0, %s27
      %s30 = sphi 0, %s28
      %s31 = sphi 0, %s29
      %s32 = sphi 0, %s30
      %s42 = sphi 0, %s44
      %s45 = sphi 0, %s42
      %s46 = sphi 0, %s45
      %s62 = sphi 0, %s46
      %s66 = sphi 0, %s66
      %s68 = sphi 0, %s66
      %s69 = sphi 0, %s68
      %s83 = sphi 0, %s69
      %s87 = sphi 0, %s87
      %s89 = sphi 0, %s87
      %s90 = sphi 0, %s89
      %s104 = sphi 0, %s90
      %s108 = sphi 0, %s108
      %s110 = sphi 0, %s108
      %s111 = sphi 0, %s110
      %s125 = sphi 0, %s111
      %s129 = sphi 0, %s129
      %s131 = sphi 0, %s129
      %s132 = sphi 0, %s131
      %s146 = sphi 0, %s132
      %s150 = sphi 0, %s150
      %s152 = sphi 0, %s150
      %s153 = sphi 0, %s152
      %s167 = sphi 0, %s153
      %s175 = sphi 0, %s177
      %s178 = sphi 0, %s175
      %s179 = sphi 0, %s178
      %s195 = sphi 0, %s179
    $region4: #{tpu_custom_call.1} parent=1 // loop_header_branch
      %23 = sbr.rel (%p21) target = $region8
    $region5: #{tpu_custom_call.1} parent=1 // loop_body
      %s25 = ssub.s32 %s20, 1
      %s26 = ssub.s32 %s20, 2
      %s33 = sadd.s32 1, %s28
      %p34 = scmp.ge.s32.totalorder %s33, 1
      %s35 = scalar_select %p34, 0, %s33
      %s36 = sadd.s32 1, %s27
      %s37 = scalar_select %p34, %s36, %s27
      %p38 = scmp.ge.s32.totalorder %s37, 2
      %s39 = scalar_select %p38, 0, %s37
      %s40 = ssub.s32 %s27, %s39
      %p41 = scmp.eq.s32.totalorder %s40, 0
      %s43 = sadd.s32 %s42, 1
      %s44 = scalar_select %p41, %s42, %s43
      %p47 = pneg %p41
      %p48 = scmp.eq.s32.totalorder %s20, 1
      %p49 = por %p47, %p48
      %p50 = scmp.ne.s32.totalorder %s42, %s45
      %p51 = scmp.eq.s32.totalorder %s20, 0
      %p52 = por %p50, %p51
      %p53 = scmp.ne.s32.totalorder %s42, %s45
      %p54 = scmp.eq.s32.totalorder %s25, 1
      %p55 = por %p53, %p54
      %p56 = scmp.ne.s32.totalorder %s45, %s46
      %p57 = scmp.eq.s32.totalorder %s25, 0
      %p58 = por %p56, %p57
      %p59 = scmp.ne.s32.totalorder %s45, %s46
      %p60 = scmp.eq.s32.totalorder %s26, 1
      %p61 = por %p59, %p60
      %p63 = scmp.ne.s32.totalorder %s46, %s62
      %p64 = scmp.eq.s32.totalorder %s26, 0
      %p65 = por %p63, %p64
      %s67 = sadd.s32 %s66, 1
      %p70 = scmp.eq.s32.totalorder %s20, 1
      %p71 = scmp.ne.s32.totalorder %s66, %s68
      %p72 = scmp.eq.s32.totalorder %s20, 0
      %p73 = por %p71, %p72
      %p74 = scmp.ne.s32.totalorder %s66, %s68
      %p75 = scmp.eq.s32.totalorder %s25, 1
      %p76 = por %p74, %p75
      %p77 = scmp.ne.s32.totalorder %s68, %s69
      %p78 = scmp.eq.s32.totalorder %s25, 0
      %p79 = por %p77, %p78
      %p80 = scmp.ne.s32.totalorder %s68, %s69
      %p81 = scmp.eq.s32.totalorder %s26, 1
      %p82 = por %p80, %p81
      %p84 = scmp.ne.s32.totalorder %s69, %s83
      %p85 = scmp.eq.s32.totalorder %s26, 0
      %p86 = por %p84, %p85
      %s88 = sadd.s32 %s87, 1
      %p91 = scmp.eq.s32.totalorder %s20, 1
      %p92 = scmp.ne.s32.totalorder %s87, %s89
      %p93 = scmp.eq.s32.totalorder %s20, 0
      %p94 = por %p92, %p93
      %p95 = scmp.ne.s32.totalorder %s87, %s89
      %p96 = scmp.eq.s32.totalorder %s25, 1
      %p97 = por %p95, %p96
      %p98 = scmp.ne.s32.totalorder %s89, %s90
      %p99 = scmp.eq.s32.totalorder %s25, 0
      %p100 = por %p98, %p99
      %p101 = scmp.ne.s32.totalorder %s89, %s90
      %p102 = scmp.eq.s32.totalorder %s26, 1
      %p103 = por %p101, %p102
      %p105 = scmp.ne.s32.totalorder %s90, %s104
      %p106 = scmp.eq.s32.totalorder %s26, 0
      %p107 = por %p105, %p106
      %s109 = sadd.s32 %s108, 1
      %p112 = scmp.eq.s32.totalorder %s20, 1
      %p113 = scmp.ne.s32.totalorder %s108, %s110
      %p114 = scmp.eq.s32.totalorder %s20, 0
      %p115 = por %p113, %p114
      %p116 = scmp.ne.s32.totalorder %s108, %s110
      %p117 = scmp.eq.s32.totalorder %s25, 1
      %p118 = por %p116, %p117
      %p119 = scmp.ne.s32.totalorder %s110, %s111
      %p120 = scmp.eq.s32.totalorder %s25, 0
      %p121 = por %p119, %p120
      %p122 = scmp.ne.s32.totalorder %s110, %s111
      %p123 = scmp.eq.s32.totalorder %s26, 1
      %p124 = por %p122, %p123
      %p126 = scmp.ne.s32.totalorder %s111, %s125
      %p127 = scmp.eq.s32.totalorder %s26, 0
      %p128 = por %p126, %p127
      %s130 = sadd.s32 %s129, 1
      %p133 = scmp.eq.s32.totalorder %s20, 1
      %p134 = scmp.ne.s32.totalorder %s129, %s131
      %p135 = scmp.eq.s32.totalorder %s20, 0
      %p136 = por %p134, %p135
      %p137 = scmp.ne.s32.totalorder %s129, %s131
      %p138 = scmp.eq.s32.totalorder %s25, 1
      %p139 = por %p137, %p138
      %p140 = scmp.ne.s32.totalorder %s131, %s132
      %p141 = scmp.eq.s32.totalorder %s25, 0
      %p142 = por %p140, %p141
      %p143 = scmp.ne.s32.totalorder %s131, %s132
      %p144 = scmp.eq.s32.totalorder %s26, 1
      %p145 = por %p143, %p144
      %p147 = scmp.ne.s32.totalorder %s132, %s146
      %p148 = scmp.eq.s32.totalorder %s26, 0
      %p149 = por %p147, %p148
      %s151 = sadd.s32 %s150, 1
      %p154 = scmp.eq.s32.totalorder %s20, 1
      %p155 = scmp.ne.s32.totalorder %s150, %s152
      %p156 = scmp.eq.s32.totalorder %s20, 0
      %p157 = por %p155, %p156
      %p158 = scmp.ne.s32.totalorder %s150, %s152
      %p159 = scmp.eq.s32.totalorder %s25, 1
      %p160 = por %p158, %p159
      %p161 = scmp.ne.s32.totalorder %s152, %s153
      %p162 = scmp.eq.s32.totalorder %s25, 0
      %p163 = por %p161, %p162
      %p164 = scmp.ne.s32.totalorder %s152, %s153
      %p165 = scmp.eq.s32.totalorder %s26, 1
      %p166 = por %p164, %p165
      %p168 = scmp.ne.s32.totalorder %s153, %s167
      %p169 = scmp.eq.s32.totalorder %s26, 0
      %p170 = por %p168, %p169
      %s171 = ssub.s32 %s27, %s39
      %s172 = ssub.s32 %s28, %s35
      %s173 = sor.u32 %s171, %s172
      %p174 = scmp.eq.s32.totalorder %s173, 0
      %s176 = sadd.s32 %s175, 1
      %s177 = scalar_select %p174, %s175, %s176
      %p180 = pneg %p174
      %p181 = scmp.eq.s32.totalorder %s20, 1
      %p182 = por %p180, %p181
      %p183 = scmp.ne.s32.totalorder %s175, %s178
      %p184 = scmp.eq.s32.totalorder %s20, 0
      %p185 = por %p183, %p184
      %p186 = scmp.ne.s32.totalorder %s175, %s178
      %p187 = scmp.eq.s32.totalorder %s25, 1
      %p188 = por %p186, %p187
      %p189 = scmp.ne.s32.totalorder %s178, %s179
      %p190 = scmp.eq.s32.totalorder %s25, 0
      %p191 = por %p189, %p190
      %p192 = scmp.ne.s32.totalorder %s178, %s179
      %p193 = scmp.eq.s32.totalorder %s26, 1
      %p194 = por %p192, %p193
      %p196 = scmp.ne.s32.totalorder %s179, %s195
      %p197 = scmp.eq.s32.totalorder %s26, 0
      %p198 = por %p196, %p197
      %p199 = scmp.le.s32.totalorder 1, %s20
      %p200 = scmp.lt.s32.totalorder %s20, 3
      %p201 = pnand %p199, %p200
      %p202 = pneg %p201
      // Predicated region
      $region9: #{tpu_custom_call.1} parent=5 // pred_check
        _
      $region10: #{tpu_custom_call.1} parent=5 // pred_check_branch
        %204 = sbr.rel (%p201) target = $region12
      $region11: #{tpu_custom_call.1} parent=5 // pred_region
        %s205 = ssub.s32 %s20, 1
        // Predicated region
        $region13: #{tpu_custom_call.1} parent=11 // pred_check
          %p206 = pneg %p79
        $region14: #{tpu_custom_call.1} parent=11 // pred_check_branch
          %208 = sbr.rel (%p206) target = $region16
        $region15: #{tpu_custom_call.1} parent=11 // pred_region
          %s210 = ssub.s32 9216, 9216
          %211 = vsyncadd [#allocation6], %s210
          %s212 = sshll.u32 [#allocation5], 4
          %s213 = int_to_ptr.vmem [resolvable:$true] %s212
          %218 = dma.hbm_to_vmem [thread:$0]  %s1, 9216, %s213, [#allocation6], 192, 192, 12
        $region16: #{tpu_custom_call.1} parent=11 // pred_fallthru
          _
        // Predicated region
        $region17: #{tpu_custom_call.1} parent=11 // pred_check
          %p219 = pneg %p100
        $region18: #{tpu_custom_call.1} parent=11 // pred_check_branch
          %221 = sbr.rel (%p219) target = $region20
        $region19: #{tpu_custom_call.1} parent=11 // pred_region
          %s223 = ssub.s32 9216, 9216
          %224 = vsyncadd [#allocation6], %s223
          %s225 = sshll.u32 [#allocation7], 4
          %s226 = int_to_ptr.vmem [resolvable:$true] %s225
          %231 = dma.hbm_to_vmem [thread:$0]  %s2, 9216, %s226, [#allocation6], 192, 192, 12
        $region20: #{tpu_custom_call.1} parent=11 // pred_fallthru
          _
        // Predicated region
        $region21: #{tpu_custom_call.1} parent=11 // pred_check
          %p232 = pneg %p121
        $region22: #{tpu_custom_call.1} parent=11 // pred_check_branch
          %234 = sbr.rel (%p232) target = $region24
        $region23: #{tpu_custom_call.1} parent=11 // pred_region
          %s236 = ssub.s32 9216, 9216
          %237 = vsyncadd [#allocation9], %s236
          %s238 = sshll.u32 [#allocation8], 4
          %s239 = int_to_ptr.vmem [resolvable:$true] %s238
          %244 = dma.hbm_to_vmem [thread:$0]  %s3, 9216, %s239, [#allocation9], 192, 192, 12
        $region24: #{tpu_custom_call.1} parent=11 // pred_fallthru
          _
        // Predicated region
        $region25: #{tpu_custom_call.1} parent=11 // pred_check
          %p245 = pneg %p142
        $region26: #{tpu_custom_call.1} parent=11 // pred_check_branch
          %247 = sbr.rel (%p245) target = $region28
        $region27: #{tpu_custom_call.1} parent=11 // pred_region
          %s249 = ssub.s32 9216, 9216
          %250 = vsyncadd [#allocation9], %s249
          %s251 = sshll.u32 [#allocation10], 4
          %s252 = int_to_ptr.vmem [resolvable:$true] %s251
          %257 = dma.hbm_to_vmem [thread:$0]  %s4, 9216, %s252, [#allocation9], 192, 192, 12
        $region28: #{tpu_custom_call.1} parent=11 // pred_fallthru
          _
        // Predicated region
        $region29: #{tpu_custom_call.1} parent=11 // pred_check
          %p258 = pneg %p163
        $region30: #{tpu_custom_call.1} parent=11 // pred_check_branch
          %260 = sbr.rel (%p258) target = $region32
        $region31: #{tpu_custom_call.1} parent=11 // pred_region
          _
        $region32: #{tpu_custom_call.1} parent=11 // pred_fallthru
          _
      $region12: #{tpu_custom_call.1} parent=5 // pred_fallthru
        _
      %p261 = scmp.lt.s32.totalorder %s20, 2
      // Predicated region
      $region33: #{tpu_custom_call.1} parent=5 // pred_check
        %p262 = pneg %p261
      $region34: #{tpu_custom_call.1} parent=5 // pred_check_branch
        %264 = sbr.rel (%p262) target = $region36
      $region35: #{tpu_custom_call.1} parent=5 // pred_region
        // Predicated region
        $region37: #{tpu_custom_call.1} parent=35 // pred_check
          %p265 = pneg %p52
        $region38: #{tpu_custom_call.1} parent=35 // pred_check_branch
          %267 = sbr.rel (%p265) target = $region40
        $region39: #{tpu_custom_call.1} parent=35 // pred_region
          %s268 = sand.u32 %s42, 1
          %s269 = scalar_lea.sflag [#allocation3], %s268
          %s270 = sand.u32 %s42, 1
          %s271 = smul.addr %s270, 48
          %s272 = scalar_lea.vmem [#allocation2], %s271
          %s274 = ssub.s32 768, 768
          %275 = vsyncadd %s269, %s274
          %s276 = smul.addr %s27, 6
          %s277 = smul.addr %s276, 128
          %s278 = scalar_lea.hbm %s0, %s277
          %s279 = sshll.u32 %s272, 4
          %s280 = int_to_ptr.vmem [resolvable:$true] %s279
          %285 = dma.hbm_to_vmem [thread:$0]  %s278, 768, %s280, %s269, 384, 384, 24
        $region40: #{tpu_custom_call.1} parent=35 // pred_fallthru
          _
      $region36: #{tpu_custom_call.1} parent=5 // pred_fallthru
        _
      %p286 = scmp.le.s32.totalorder 1, %s20
      %p287 = scmp.lt.s32.totalorder %s20, 3
      %p288 = pnand %p286, %p287
      %p289 = pneg %p288
      // Predicated region
      $region41: #{tpu_custom_call.1} parent=5 // pred_check
        _
      $region42: #{tpu_custom_call.1} parent=5 // pred_check_branch
        %291 = sbr.rel (%p288) target = $region44
      $region43: #{tpu_custom_call.1} parent=5 // pred_region
        %s292 = ssub.s32 %s20, 1
        %s293 = sand.u32 %s45, 1
        %s294 = scalar_lea.sflag [#allocation3], %s293
        %s295 = sand.u32 %s45, 1
        %s296 = smul.addr %s295, 48
        %s297 = scalar_lea.vmem [#allocation2], %s296
        // Predicated region
        $region45: #{tpu_custom_call.1} parent=43 // pred_check
          %p298 = pneg %p58
        $region46: #{tpu_custom_call.1} parent=43 // pred_check_branch
          %300 = sbr.rel (%p298) target = $region48
        $region47: #{tpu_custom_call.1} parent=43 // pred_region
          %301 = dma.done %s294, 768
        $region48: #{tpu_custom_call.1} parent=43 // pred_fallthru
          _
        // Predicated region
        $region49: #{tpu_custom_call.1} parent=43 // pred_check
          %p302 = pneg %p79
        $region50: #{tpu_custom_call.1} parent=43 // pred_check_branch
          %304 = sbr.rel (%p302) target = $region52
        $region51: #{tpu_custom_call.1} parent=43 // pred_region
          %305 = dma.done [#allocation6], 9216
        $region52: #{tpu_custom_call.1} parent=43 // pred_fallthru
          _
        // Predicated region
        $region53: #{tpu_custom_call.1} parent=43 // pred_check
          %p306 = pneg %p100
        $region54: #{tpu_custom_call.1} parent=43 // pred_check_branch
          %308 = sbr.rel (%p306) target = $region56
        $region55: #{tpu_custom_call.1} parent=43 // pred_region
          %309 = dma.done [#allocation6], 9216
        $region56: #{tpu_custom_call.1} parent=43 // pred_fallthru
          _
        // Predicated region
        $region57: #{tpu_custom_call.1} parent=43 // pred_check
          %p310 = pneg %p121
        $region58: #{tpu_custom_call.1} parent=43 // pred_check_branch
          %312 = sbr.rel (%p310) target = $region60
        $region59: #{tpu_custom_call.1} parent=43 // pred_region
          %313 = dma.done [#allocation9], 9216
        $region60: #{tpu_custom_call.1} parent=43 // pred_fallthru
          _
        // Predicated region
        $region61: #{tpu_custom_call.1} parent=43 // pred_check
          %p314 = pneg %p142
        $region62: #{tpu_custom_call.1} parent=43 // pred_check_branch
          %316 = sbr.rel (%p314) target = $region64
        $region63: #{tpu_custom_call.1} parent=43 // pred_region
          %317 = dma.done [#allocation9], 9216
        $region64: #{tpu_custom_call.1} parent=43 // pred_fallthru
          _
        %s318 = sand.u32 %s45, 1
        %s319 = scalar_lea.sflag [#allocation3], %s318
        %s320 = sand.u32 %s45, 1
        %s321 = smul.addr %s320, 48
        %s322 = scalar_lea.vmem [#allocation2], %s321
        %p323 = pneg %p58
        %p324 = pneg %p55
        %p325 = pneg %p79
        %p326 = pneg %p76
        %p327 = pneg %p100
        %p328 = pneg %p97
        %p329 = pneg %p121
        %p330 = pneg %p118
        %p331 = pneg %p142
        %p332 = pneg %p139
        %p333 = pneg %p163
        %p334 = pneg %p160
        %p335 = pneg %p191
        %p336 = pneg %p188
        %s337 = sand.u32 %s178, 1
        %s338 = scalar_lea.sflag [#allocation4], %s337
        %s339 = sand.u32 %s178, 1
        %s340 = smul.addr %s339, 48
        %s341 = scalar_lea.vmem [#allocation11], %s340
        %s342 = smul.u32 2, %s30
        %s344 = smul.u32 %s30, 16
        %v345 = vld [vmem:[%s297] sm:$0xff]
        %v346 = vld [vmem:[%s297 + $0x8] sm:$0xff]
        %v347 = vld [vmem:[%s297 + $0x10] sm:$0xff]
        %v348 = vld [vmem:[%s297 + $0x18] sm:$0xff]
        %v349 = vld [vmem:[%s297 + $0x20] sm:$0xff]
        %v350 = vld [vmem:[%s297 + $0x28] sm:$0xff]
        %v351 = vpack.c.bf16 %v348, %v345
        %v352 = vpack.c.bf16 %v349, %v346
        %v353 = vpack.c.bf16 %v350, %v347
        %s354 = sshra.s32 %s344, 3
        %s355 = sand.u32 %s344, 7
        %s356 = smul.u32 %s354, 3
        %s357 = smul.addr %s356, 8
        %s358 = scalar_lea.vmem %s297, %s357 [#allocation2]
        %v359 = vld [vmem:[%s358] sm:$0xff]
        %v360 = vld [vmem:[%s358 + $0x8] sm:$0xff]
        %v361 = vld [vmem:[%s358 + $0x10] sm:$0xff]
        %v362 = vld [vmem:[%s358 + $0x18] sm:$0xff]
        %v363 = vld [vmem:[%s358 + $0x20] sm:$0xff]
        %v364 = vld [vmem:[%s358 + $0x28] sm:$0xff]
        %v365 = vpack.c.bf16 %v362, %v359
        %v366 = vpack.c.bf16 %v363, %v360
        %v367 = vpack.c.bf16 %v364, %v361
        %v368 = vld [vmem:[#allocation7] sm:$0xff]
        %v369 = vld [vmem:[#allocation7 + $0x8] sm:$0xf]
        %v370 = vld [vmem:[#allocation7 + $0xc] sm:$0xff]
        %v371 = vld [vmem:[#allocation7 + $0x14] sm:$0xf]
        %v372 = vld [vmem:[#allocation7 + $0x18] sm:$0xff]
        %v373 = vld [vmem:[#allocation7 + $0x20] sm:$0xf]
        %v374 = vld [vmem:[#allocation7 + $0x24] sm:$0xff]
        %v375 = vld [vmem:[#allocation7 + $0x2c] sm:$0xf]
        %v376 = vld [vmem:[#allocation7 + $0x30] sm:$0xff]
        %v377 = vld [vmem:[#allocation7 + $0x38] sm:$0xf]
        %v378 = vld [vmem:[#allocation7 + $0x3c] sm:$0xff]
        %v379 = vld [vmem:[#allocation7 + $0x44] sm:$0xf]
        %v380 = vld [vmem:[#allocation7 + $0x48] sm:$0xff]
        %v381 = vld [vmem:[#allocation7 + $0x50] sm:$0xf]
        %v382 = vld [vmem:[#allocation7 + $0x54] sm:$0xff]
        %v383 = vld [vmem:[#allocation7 + $0x5c] sm:$0xf]
        %v384 = vld [vmem:[#allocation7 + $0x60] sm:$0xff]
        %v385 = vld [vmem:[#allocation7 + $0x68] sm:$0xf]
        %v386 = vld [vmem:[#allocation7 + $0x6c] sm:$0xff]
        %v387 = vld [vmem:[#allocation7 + $0x74] sm:$0xf]
        %v388 = vld [vmem:[#allocation7 + $0x78] sm:$0xff]
        %v389 = vld [vmem:[#allocation7 + $0x80] sm:$0xf]
        %v390 = vld [vmem:[#allocation7 + $0x84] sm:$0xff]
        %v391 = vld [vmem:[#allocation7 + $0x8c] sm:$0xf]
        %v392 = vld [vmem:[#allocation7 + $0x90] sm:$0xff]
        %v393 = vld [vmem:[#allocation7 + $0x98] sm:$0xf]
        %v394 = vld [vmem:[#allocation7 + $0x9c] sm:$0xff]
        %v395 = vld [vmem:[#allocation7 + $0xa4] sm:$0xf]
        %v396 = vld [vmem:[#allocation7 + $0xa8] sm:$0xff]
        %v397 = vld [vmem:[#allocation7 + $0xb0] sm:$0xf]
        %v398 = vld [vmem:[#allocation7 + $0xb4] sm:$0xff]
        %v399 = vld [vmem:[#allocation7 + $0xbc] sm:$0xf]
        %v400 = vld [vmem:[#allocation7 + $0xc0] sm:$0xff]
        %v401 = vld [vmem:[#allocation7 + $0xc8] sm:$0xf]
        %v402 = vld [vmem:[#allocation7 + $0xcc] sm:$0xff]
        %v403 = vld [vmem:[#allocation7 + $0xd4] sm:$0xf]
        %v404 = vld [vmem:[#allocation7 + $0xd8] sm:$0xff]
        %v405 = vld [vmem:[#allocation7 + $0xe0] sm:$0xf]
        %v406 = vld [vmem:[#allocation7 + $0xe4] sm:$0xff]
        %v407 = vld [vmem:[#allocation7 + $0xec] sm:$0xf]
        %v408 = vld [vmem:[#allocation7 + $0xf0] sm:$0xff]
        %v409 = vld [vmem:[#allocation7 + $0xf8] sm:$0xf]
        %v410 = vld [vmem:[#allocation7 + $0xfc] sm:$0xff]
        %v411 = vld [vmem:[#allocation7 + $0x104] sm:$0xf]
        %v412 = vld [vmem:[#allocation7 + $0x108] sm:$0xff]
        %v413 = vld [vmem:[#allocation7 + $0x110] sm:$0xf]
        %v414 = vld [vmem:[#allocation7 + $0x114] sm:$0xff]
        %v415 = vld [vmem:[#allocation7 + $0x11c] sm:$0xf]
        %v416 = vld [vmem:[#allocation7 + $0x120] sm:$0xff]
        %v417 = vld [vmem:[#allocation7 + $0x128] sm:$0xf]
        %v418 = vld [vmem:[#allocation7 + $0x12c] sm:$0xff]
        %v419 = vld [vmem:[#allocation7 + $0x134] sm:$0xf]
        %v420 = vld [vmem:[#allocation7 + $0x138] sm:$0xff]
        %v421 = vld [vmem:[#allocation7 + $0x140] sm:$0xf]
        %v422 = vld [vmem:[#allocation7 + $0x144] sm:$0xff]
        %v423 = vld [vmem:[#allocation7 + $0x14c] sm:$0xf]
        %v424 = vld [vmem:[#allocation7 + $0x150] sm:$0xff]
        %v425 = vld [vmem:[#allocation7 + $0x158] sm:$0xf]
        %v426 = vld [vmem:[#allocation7 + $0x15c] sm:$0xff]
        %v427 = vld [vmem:[#allocation7 + $0x164] sm:$0xf]
        %v428 = vld [vmem:[#allocation7 + $0x168] sm:$0xff]
        %v429 = vld [vmem:[#allocation7 + $0x170] sm:$0xf]
        %v430 = vld [vmem:[#allocation7 + $0x174] sm:$0xff]
        %v431 = vld [vmem:[#allocation7 + $0x17c] sm:$0xf]
        %v432 = vld [vmem:[#allocation7 + $0x180] sm:$0xff]
        %v433 = vld [vmem:[#allocation7 + $0x188] sm:$0xf]
        %v434 = vld [vmem:[#allocation7 + $0x18c] sm:$0xff]
        %v435 = vld [vmem:[#allocation7 + $0x194] sm:$0xf]
        %v436 = vld [vmem:[#allocation7 + $0x198] sm:$0xff]
        %v437 = vld [vmem:[#allocation7 + $0x1a0] sm:$0xf]
        %v438 = vld [vmem:[#allocation7 + $0x1a4] sm:$0xff]
        %v439 = vld [vmem:[#allocation7 + $0x1ac] sm:$0xf]
        %v440 = vld [vmem:[#allocation7 + $0x1b0] sm:$0xff]
        %v441 = vld [vmem:[#allocation7 + $0x1b8] sm:$0xf]
        %v442 = vld [vmem:[#allocation7 + $0x1bc] sm:$0xff]
        %v443 = vld [vmem:[#allocation7 + $0x1c4] sm:$0xf]
        %v444 = vld [vmem:[#allocation7 + $0x1c8] sm:$0xff]
        %v445 = vld [vmem:[#allocation7 + $0x1d0] sm:$0xf]
        %v446 = vld [vmem:[#allocation7 + $0x1d4] sm:$0xff]
        %v447 = vld [vmem:[#allocation7 + $0x1dc] sm:$0xf]
        %v448 = vld [vmem:[#allocation7 + $0x1e0] sm:$0xff]
        %v449 = vld [vmem:[#allocation7 + $0x1e8] sm:$0xf]
        %v450 = vld [vmem:[#allocation7 + $0x1ec] sm:$0xff]
        %v451 = vld [vmem:[#allocation7 + $0x1f4] sm:$0xf]
        %v452 = vld [vmem:[#allocation7 + $0x1f8] sm:$0xff]
        %v453 = vld [vmem:[#allocation7 + $0x200] sm:$0xf]
        %v454 = vld [vmem:[#allocation7 + $0x204] sm:$0xff]
        %v455 = vld [vmem:[#allocation7 + $0x20c] sm:$0xf]
        %v456 = vld [vmem:[#allocation7 + $0x210] sm:$0xff]
        %v457 = vld [vmem:[#allocation7 + $0x218] sm:$0xf]
        %v458 = vld [vmem:[#allocation7 + $0x21c] sm:$0xff]
        %v459 = vld [vmem:[#allocation7 + $0x224] sm:$0xf]
        %v460 = vld [vmem:[#allocation7 + $0x228] sm:$0xff]
        %v461 = vld [vmem:[#allocation7 + $0x230] sm:$0xf]
        %v462 = vld [vmem:[#allocation7 + $0x234] sm:$0xff]
        %v463 = vld [vmem:[#allocation7 + $0x23c] sm:$0xf]
        %v560 = vunpack.c.l.b16 %v368
        %v561 = vunpack.c.h.b16 %v368
        %v562 = vunpack.c.l.b16 %v369
        %v563 = vunpack.c.l.b16 %v370
        %v564 = vunpack.c.h.b16 %v370
        %v565 = vunpack.c.l.b16 %v371
        %v566 = vunpack.c.l.b16 %v372
        %v567 = vunpack.c.h.b16 %v372
        %v568 = vunpack.c.l.b16 %v373
        %v569 = vunpack.c.l.b16 %v374
        %v570 = vunpack.c.h.b16 %v374
        %v571 = vunpack.c.l.b16 %v375
        %v572 = vunpack.c.l.b16 %v376
        %v573 = vunpack.c.h.b16 %v376
        %v574 = vunpack.c.l.b16 %v377
        %v575 = vunpack.c.l.b16 %v378
        %v576 = vunpack.c.h.b16 %v378
        %v577 = vunpack.c.l.b16 %v379
        %v578 = vunpack.c.l.b16 %v380
        %v579 = vunpack.c.h.b16 %v380
        %v580 = vunpack.c.l.b16 %v381
        %v581 = vunpack.c.l.b16 %v382
        %v582 = vunpack.c.h.b16 %v382
        %v583 = vunpack.c.l.b16 %v383
        %v584 = vunpack.c.l.b16 %v384
        %v585 = vunpack.c.h.b16 %v384
        %v586 = vunpack.c.l.b16 %v385
        %v587 = vunpack.c.l.b16 %v386
        %v588 = vunpack.c.h.b16 %v386
        %v589 = vunpack.c.l.b16 %v387
        %v590 = vunpack.c.l.b16 %v388
        %v591 = vunpack.c.h.b16 %v388
        %v592 = vunpack.c.l.b16 %v389
        %v593 = vunpack.c.l.b16 %v390
        %v594 = vunpack.c.h.b16 %v390
        %v595 = vunpack.c.l.b16 %v391
        %v596 = vunpack.c.l.b16 %v392
        %v597 = vunpack.c.h.b16 %v392
        %v598 = vunpack.c.l.b16 %v393
        %v599 = vunpack.c.l.b16 %v394
        %v600 = vunpack.c.h.b16 %v394
        %v601 = vunpack.c.l.b16 %v395
        %v602 = vunpack.c.l.b16 %v396
        %v603 = vunpack.c.h.b16 %v396
        %v604 = vunpack.c.l.b16 %v397
        %v605 = vunpack.c.l.b16 %v398
        %v606 = vunpack.c.h.b16 %v398
        %v607 = vunpack.c.l.b16 %v399
        %v608 = vunpack.c.l.b16 %v400
        %v609 = vunpack.c.h.b16 %v400
        %v610 = vunpack.c.l.b16 %v401
        %v611 = vunpack.c.l.b16 %v402
        %v612 = vunpack.c.h.b16 %v402
        %v613 = vunpack.c.l.b16 %v403
        %v614 = vunpack.c.l.b16 %v404
        %v615 = vunpack.c.h.b16 %v404
        %v616 = vunpack.c.l.b16 %v405
        %v617 = vunpack.c.l.b16 %v406
        %v618 = vunpack.c.h.b16 %v406
        %v619 = vunpack.c.l.b16 %v407
        %v620 = vunpack.c.l.b16 %v408
        %v621 = vunpack.c.h.b16 %v408
        %v622 = vunpack.c.l.b16 %v409
        %v623 = vunpack.c.l.b16 %v410
        %v624 = vunpack.c.h.b16 %v410
        %v625 = vunpack.c.l.b16 %v411
        %v626 = vunpack.c.l.b16 %v412
        %v627 = vunpack.c.h.b16 %v412
        %v628 = vunpack.c.l.b16 %v413
        %v629 = vunpack.c.l.b16 %v414
        %v630 = vunpack.c.h.b16 %v414
        %v631 = vunpack.c.l.b16 %v415
        %v632 = vunpack.c.l.b16 %v416
        %v633 = vunpack.c.h.b16 %v416
        %v634 = vunpack.c.l.b16 %v417
        %v635 = vunpack.c.l.b16 %v418
        %v636 = vunpack.c.h.b16 %v418
        %v637 = vunpack.c.l.b16 %v419
        %v638 = vunpack.c.l.b16 %v420
        %v639 = vunpack.c.h.b16 %v420
        %v640 = vunpack.c.l.b16 %v421
        %v641 = vunpack.c.l.b16 %v422
        %v642 = vunpack.c.h.b16 %v422
        %v643 = vunpack.c.l.b16 %v423
        %v644 = vunpack.c.l.b16 %v424
        %v645 = vunpack.c.h.b16 %v424
        %v646 = vunpack.c.l.b16 %v425
        %v647 = vunpack.c.l.b16 %v426
        %v648 = vunpack.c.h.b16 %v426
        %v649 = vunpack.c.l.b16 %v427
        %v650 = vunpack.c.l.b16 %v428
        %v651 = vunpack.c.h.b16 %v428
        %v652 = vunpack.c.l.b16 %v429
        %v653 = vunpack.c.l.b16 %v430
        %v654 = vunpack.c.h.b16 %v430
        %v655 = vunpack.c.l.b16 %v431
        %v656 = vunpack.c.l.b16 %v432
        %v657 = vunpack.c.h.b16 %v432
        %v658 = vunpack.c.l.b16 %v433
        %v659 = vunpack.c.l.b16 %v434
        %v660 = vunpack.c.h.b16 %v434
        %v661 = vunpack.c.l.b16 %v435
        %v662 = vunpack.c.l.b16 %v436
        %v663 = vunpack.c.h.b16 %v436
        %v664 = vunpack.c.l.b16 %v437
        %v665 = vunpack.c.l.b16 %v438
        %v666 = vunpack.c.h.b16 %v438
        %v667 = vunpack.c.l.b16 %v439
        %v668 = vunpack.c.l.b16 %v440
        %v669 = vunpack.c.h.b16 %v440
        %v670 = vunpack.c.l.b16 %v441
        %v671 = vunpack.c.l.b16 %v442
        %v672 = vunpack.c.h.b16 %v442
        %v673 = vunpack.c.l.b16 %v443
        %v674 = vunpack.c.l.b16 %v444
        %v675 = vunpack.c.h.b16 %v444
        %v676 = vunpack.c.l.b16 %v445
        %v677 = vunpack.c.l.b16 %v446
        %v678 = vunpack.c.h.b16 %v446
        %v679 = vunpack.c.l.b16 %v447
        %v680 = vunpack.c.l.b16 %v448
        %v681 = vunpack.c.h.b16 %v448
        %v682 = vunpack.c.l.b16 %v449
        %v683 = vunpack.c.l.b16 %v450
        %v684 = vunpack.c.h.b16 %v450
        %v685 = vunpack.c.l.b16 %v451
        %v686 = vunpack.c.l.b16 %v452
        %v687 = vunpack.c.h.b16 %v452
        %v688 = vunpack.c.l.b16 %v453
        %v689 = vunpack.c.l.b16 %v454
        %v690 = vunpack.c.h.b16 %v454
        %v691 = vunpack.c.l.b16 %v455
        %v692 = vunpack.c.l.b16 %v456
        %v693 = vunpack.c.h.b16 %v456
        %v694 = vunpack.c.l.b16 %v457
        %v695 = vunpack.c.l.b16 %v458
        %v696 = vunpack.c.h.b16 %v458
        %v697 = vunpack.c.l.b16 %v459
        %v698 = vunpack.c.l.b16 %v460
        %v699 = vunpack.c.h.b16 %v460
        %v700 = vunpack.c.l.b16 %v461
        %v701 = vunpack.c.l.b16 %v462
        %v702 = vunpack.c.h.b16 %v462
        %v703 = vunpack.c.l.b16 %v463
        %v704 = vpack.c.b16 %v563, %v560
        %v705 = vpack.c.b16 %v564, %v561
        %v706 = vpack.c.b16 %v565, %v562
        %v707 = vpack.c.b16 %v569, %v566
        %v708 = vpack.c.b16 %v570, %v567
        %v709 = vpack.c.b16 %v571, %v568
        %v710 = vpack.c.b16 %v575, %v572
        %v711 = vpack.c.b16 %v576, %v573
        %v712 = vpack.c.b16 %v577, %v574
        %v713 = vpack.c.b16 %v581, %v578
        %v714 = vpack.c.b16 %v582, %v579
        %v715 = vpack.c.b16 %v583, %v580
        %v716 = vpack.c.b16 %v587, %v584
        %v717 = vpack.c.b16 %v588, %v585
        %v718 = vpack.c.b16 %v589, %v586
        %v719 = vpack.c.b16 %v593, %v590
        %v720 = vpack.c.b16 %v594, %v591
        %v721 = vpack.c.b16 %v595, %v592
        %v722 = vpack.c.b16 %v599, %v596
        %v723 = vpack.c.b16 %v600, %v597
        %v724 = vpack.c.b16 %v601, %v598
        %v725 = vpack.c.b16 %v605, %v602
        %v726 = vpack.c.b16 %v606, %v603
        %v727 = vpack.c.b16 %v607, %v604
        %v728 = vpack.c.b16 %v611, %v608
        %v729 = vpack.c.b16 %v612, %v609
        %v730 = vpack.c.b16 %v613, %v610
        %v731 = vpack.c.b16 %v617, %v614
        %v732 = vpack.c.b16 %v618, %v615
        %v733 = vpack.c.b16 %v619, %v616
        %v734 = vpack.c.b16 %v623, %v620
        %v735 = vpack.c.b16 %v624, %v621
        %v736 = vpack.c.b16 %v625, %v622
        %v737 = vpack.c.b16 %v629, %v626
        %v738 = vpack.c.b16 %v630, %v627
        %v739 = vpack.c.b16 %v631, %v628
        %v740 = vpack.c.b16 %v635, %v632
        %v741 = vpack.c.b16 %v636, %v633
        %v742 = vpack.c.b16 %v637, %v634
        %v743 = vpack.c.b16 %v641, %v638
        %v744 = vpack.c.b16 %v642, %v639
        %v745 = vpack.c.b16 %v643, %v640
        %v746 = vpack.c.b16 %v647, %v644
        %v747 = vpack.c.b16 %v648, %v645
        %v748 = vpack.c.b16 %v649, %v646
        %v749 = vpack.c.b16 %v653, %v650
        %v750 = vpack.c.b16 %v654, %v651
        %v751 = vpack.c.b16 %v655, %v652
        %v752 = vpack.c.b16 %v659, %v656
        %v753 = vpack.c.b16 %v660, %v657
        %v754 = vpack.c.b16 %v661, %v658
        %v755 = vpack.c.b16 %v665, %v662
        %v756 = vpack.c.b16 %v666, %v663
        %v757 = vpack.c.b16 %v667, %v664
        %v758 = vpack.c.b16 %v671, %v668
        %v759 = vpack.c.b16 %v672, %v669
        %v760 = vpack.c.b16 %v673, %v670
        %v761 = vpack.c.b16 %v677, %v674
        %v762 = vpack.c.b16 %v678, %v675
        %v763 = vpack.c.b16 %v679, %v676
        %v764 = vpack.c.b16 %v683, %v680
        %v765 = vpack.c.b16 %v684, %v681
        %v766 = vpack.c.b16 %v685, %v682
        %v767 = vpack.c.b16 %v689, %v686
        %v768 = vpack.c.b16 %v690, %v687
        %v769 = vpack.c.b16 %v691, %v688
        %v770 = vpack.c.b16 %v695, %v692
        %v771 = vpack.c.b16 %v696, %v693
        %v772 = vpack.c.b16 %v697, %v694
        %v773 = vpack.c.b16 %v701, %v698
        %v774 = vpack.c.b16 %v702, %v699
        %v775 = vpack.c.b16 %v703, %v700
        %848 = vmatprep.subr.bf16.mxu0 %v726
        %849 = vmatpush1.bf16.msra.mxu0 %v725
        %850 = vmatprep.subr.bf16.mxu0 %v723
        %851 = vmatpush1.bf16.msra.mxu0 %v722
        %852 = vmatprep.subr.bf16.mxu0 %v720
        %853 = vmatpush1.bf16.msra.mxu0 %v719
        %854 = vmatprep.subr.bf16.mxu0 %v717
        %855 = vmatpush1.bf16.msra.mxu0 %v716
        %856 = vmatprep.subr.bf16.mxu0 %v714
        %857 = vmatpush1.bf16.msra.mxu0 %v713
        %858 = vmatprep.subr.bf16.mxu0 %v711
        %859 = vmatpush1.bf16.msra.mxu0 %v710
        %860 = vmatprep.subr.bf16.mxu0 %v708
        %861 = vmatpush1.bf16.msra.mxu0 %v707
        %862 = vmatprep.subr.bf16.mxu0 %v705
        %863 = vmatpush1.bf16.msra.mxu0 %v704
        %864 = vmatprep.subr.bf16.mxu0 %v750
        %865 = vmatpush2.bf16.msra.mxu0 %v749
        %866 = vmatprep.subr.bf16.mxu0 %v747
        %867 = vmatpush2.bf16.msra.mxu0 %v746
        %868 = vmatprep.subr.bf16.mxu0 %v744
        %869 = vmatpush2.bf16.msra.mxu0 %v743
        %870 = vmatprep.subr.bf16.mxu0 %v741
        %871 = vmatpush2.bf16.msra.mxu0 %v740
        %872 = vmatprep.subr.bf16.mxu0 %v738
        %873 = vmatpush2.bf16.msra.mxu0 %v737
        %874 = vmatprep.subr.bf16.mxu0 %v735
        %875 = vmatpush2.bf16.msra.mxu0 %v734
        %876 = vmatprep.subr.bf16.mxu0 %v732
        %877 = vmatpush2.bf16.msra.mxu0 %v731
        %878 = vmatprep.subr.bf16.mxu0 %v729
        %879 = vmatpush2.bf16.msra.mxu0 %v728
        %880 = vmatprep.mubr.bf16.mxu0 %v352
        %881 = vmatmul.mubr.bf16.gmra.mxu0 %v351
        %v882 = vpop.f32.mrf.mxu0
        %v883 = vadd.f32 0.0, %v882
        %v884 = vpop.f32.mrf.mxu0
        %v885 = vadd.f32 0.0, %v884
        %v886 = vpop.f32.mrf.mxu0
        %v887 = vadd.f32 0.0, %v886
        %v888 = vpop.f32.mrf.mxu0
        %v889 = vadd.f32 0.0, %v888
        %890 = vdwg.mxu0
        %891 = vmatprep.subr.bf16.mxu0 %v774
        %892 = vmatpush1.bf16.msra.mxu0 %v773
        %893 = vmatprep.subr.bf16.mxu0 %v771
        %894 = vmatpush1.bf16.msra.mxu0 %v770
        %895 = vmatprep.subr.bf16.mxu0 %v768
        %896 = vmatpush1.bf16.msra.mxu0 %v767
        %897 = vmatprep.subr.bf16.mxu0 %v765
        %898 = vmatpush1.bf16.msra.mxu0 %v764
        %899 = vmatprep.subr.bf16.mxu0 %v762
        %900 = vmatpush1.bf16.msra.mxu0 %v761
        %901 = vmatprep.subr.bf16.mxu0 %v759
        %902 = vmatpush1.bf16.msra.mxu0 %v758
        %903 = vmatprep.subr.bf16.mxu0 %v756
        %904 = vmatpush1.bf16.msra.mxu0 %v755
        %905 = vmatprep.subr.bf16.mxu0 %v753
        %906 = vmatpush1.bf16.msra.mxu0 %v752
        %907 = vmatprep.subr.bf16.mxu0 0
        %908 = vmatpush2.bf16.msra.mxu0 0
        %909 = vmatprep.subr.bf16.mxu0 0
        %910 = vmatpush2.bf16.msra.mxu0 0
        %911 = vmatprep.subr.bf16.mxu0 0
        %912 = vmatpush2.bf16.msra.mxu0 0
        %913 = vmatprep.subr.bf16.mxu0 0
        %914 = vmatpush2.bf16.msra.mxu0 0
        %915 = vmatprep.subr.bf16.mxu0 0
        %916 = vmatpush2.bf16.msra.mxu0 0
        %917 = vmatprep.subr.bf16.mxu0 0
        %918 = vmatpush2.bf16.msra.mxu0 0
        %919 = vmatprep.subr.bf16.mxu0 0
        %920 = vmatpush2.bf16.msra.mxu0 0
        %921 = vmatprep.subr.bf16.mxu0 0
        %922 = vmatpush2.bf16.msra.mxu0 0
        %923 = vmatprep.mubr.bf16.mxu0 0
        %924 = vmatmul.mubr.bf16.gmra.mxu0 %v353
        %v925 = vpop.f32.mrf.mxu0
        %v926 = vadd.f32 %v883, %v925
        %v927 = vpop.f32.mrf.mxu0
        %v928 = vadd.f32 %v885, %v927
        %v929 = vpop.f32.mrf.mxu0
        %v930 = vadd.f32 %v887, %v929
        %v931 = vpop.f32.mrf.mxu0
        %v932 = vadd.f32 %v889, %v931
        %933 = vdwg.mxu0
        %934 = vmatprep.subr.bf16.mxu0 0
        %935 = vmatpush1.bf16.msra.mxu0 %v727
        %936 = vmatprep.subr.bf16.mxu0 0
        %937 = vmatpush1.bf16.msra.mxu0 %v724
        %938 = vmatprep.subr.bf16.mxu0 0
        %939 = vmatpush1.bf16.msra.mxu0 %v721
        %940 = vmatprep.subr.bf16.mxu0 0
        %941 = vmatpush1.bf16.msra.mxu0 %v718
        %942 = vmatprep.subr.bf16.mxu0 0
        %943 = vmatpush1.bf16.msra.mxu0 %v715
        %944 = vmatprep.subr.bf16.mxu0 0
        %945 = vmatpush1.bf16.msra.mxu0 %v712
        %946 = vmatprep.subr.bf16.mxu0 0
        %947 = vmatpush1.bf16.msra.mxu0 %v709
        %948 = vmatprep.subr.bf16.mxu0 0
        %949 = vmatpush1.bf16.msra.mxu0 %v706
        %950 = vmatprep.subr.bf16.mxu0 0
        %951 = vmatpush2.bf16.msra.mxu0 %v751
        %952 = vmatprep.subr.bf16.mxu0 0
        %953 = vmatpush2.bf16.msra.mxu0 %v748
        %954 = vmatprep.subr.bf16.mxu0 0
        %955 = vmatpush2.bf16.msra.mxu0 %v745
        %956 = vmatprep.subr.bf16.mxu0 0
        %957 = vmatpush2.bf16.msra.mxu0 %v742
        %958 = vmatprep.subr.bf16.mxu0 0
        %959 = vmatpush2.bf16.msra.mxu0 %v739
        %960 = vmatprep.subr.bf16.mxu0 0
        %961 = vmatpush2.bf16.msra.mxu0 %v736
        %962 = vmatprep.subr.bf16.mxu0 0
        %963 = vmatpush2.bf16.msra.mxu0 %v733
        %964 = vmatprep.subr.bf16.mxu0 0
        %965 = vmatpush2.bf16.msra.mxu0 %v730
        %966 = vmatprep.mubr.bf16.mxu0 %v352
        %967 = vmatmul.mubr.bf16.gmra.mxu0 %v351
        %v968 = vpop.f32.mrf.mxu0
        %v969 = vadd.f32 0.0, %v968
        %v970 = vpop.f32.mrf.mxu0
        %v971 = vpop.f32.mrf.mxu0
        %v972 = vadd.f32 0.0, %v971
        %v973 = vpop.f32.mrf.mxu0
        %974 = vdwg.mxu0
        %975 = vmatprep.subr.bf16.mxu0 0
        %976 = vmatpush1.bf16.msra.mxu0 %v775
        %977 = vmatprep.subr.bf16.mxu0 0
        %978 = vmatpush1.bf16.msra.mxu0 %v772
        %979 = vmatprep.subr.bf16.mxu0 0
        %980 = vmatpush1.bf16.msra.mxu0 %v769
        %981 = vmatprep.subr.bf16.mxu0 0
        %982 = vmatpush1.bf16.msra.mxu0 %v766
        %983 = vmatprep.subr.bf16.mxu0 0
        %984 = vmatpush1.bf16.msra.mxu0 %v763
        %985 = vmatprep.subr.bf16.mxu0 0
        %986 = vmatpush1.bf16.msra.mxu0 %v760
        %987 = vmatprep.subr.bf16.mxu0 0
        %988 = vmatpush1.bf16.msra.mxu0 %v757
        %989 = vmatprep.subr.bf16.mxu0 0
        %990 = vmatpush1.bf16.msra.mxu0 %v754
        %991 = vmatprep.subr.bf16.mxu0 0
        %992 = vmatpush2.bf16.msra.mxu0 0
        %993 = vmatprep.subr.bf16.mxu0 0
        %994 = vmatpush2.bf16.msra.mxu0 0
        %995 = vmatprep.subr.bf16.mxu0 0
        %996 = vmatpush2.bf16.msra.mxu0 0
        %997 = vmatprep.subr.bf16.mxu0 0
        %998 = vmatpush2.bf16.msra.mxu0 0
        %999 = vmatprep.subr.bf16.mxu0 0
        %1000 = vmatpush2.bf16.msra.mxu0 0
        %1001 = vmatprep.subr.bf16.mxu0 0
        %1002 = vmatpush2.bf16.msra.mxu0 0
        %1003 = vmatprep.subr.bf16.mxu0 0
        %1004 = vmatpush2.bf16.msra.mxu0 0
        %1005 = vmatprep.subr.bf16.mxu0 0
        %1006 = vmatpush2.bf16.msra.mxu0 0
        %1007 = vmatprep.mubr.bf16.mxu0 0
        %1008 = vmatmul.mubr.bf16.gmra.mxu0 %v353
        %v1009 = vpop.f32.mrf.mxu0
        %v1010 = vadd.f32 %v969, %v1009
        %v1011 = vpop.f32.mrf.mxu0
        %v1012 = vpop.f32.mrf.mxu0
        %v1013 = vadd.f32 %v972, %v1012
        %v1014 = vpop.f32.mrf.mxu0
        %1015 = vdwg.mxu0
        %v1016 = vpack.c.bf16 %v930, %v926
        %v1017 = vpack.c.bf16 %v932, %v928
        %v1018 = vpack.c.bf16 %v1013, %v1010
        %v1019 = vld [vmem:[#allocation8] sm:$0xff]
        %v1020 = vld [vmem:[#allocation8 + $0x8] sm:$0xf]
        %v1021 = vld [vmem:[#allocation8 + $0xc] sm:$0xff]
        %v1022 = vld [vmem:[#allocation8 + $0x14] sm:$0xf]
        %v1023 = vld [vmem:[#allocation8 + $0x18] sm:$0xff]
        %v1024 = vld [vmem:[#allocation8 + $0x20] sm:$0xf]
        %v1025 = vld [vmem:[#allocation8 + $0x24] sm:$0xff]
        %v1026 = vld [vmem:[#allocation8 + $0x2c] sm:$0xf]
        %v1027 = vld [vmem:[#allocation8 + $0x30] sm:$0xff]
        %v1028 = vld [vmem:[#allocation8 + $0x38] sm:$0xf]
        %v1029 = vld [vmem:[#allocation8 + $0x3c] sm:$0xff]
        %v1030 = vld [vmem:[#allocation8 + $0x44] sm:$0xf]
        %v1031 = vld [vmem:[#allocation8 + $0x48] sm:$0xff]
        %v1032 = vld [vmem:[#allocation8 + $0x50] sm:$0xf]
        %v1033 = vld [vmem:[#allocation8 + $0x54] sm:$0xff]
        %v1034 = vld [vmem:[#allocation8 + $0x5c] sm:$0xf]
        %v1035 = vld [vmem:[#allocation8 + $0x60] sm:$0xff]
        %v1036 = vld [vmem:[#allocation8 + $0x68] sm:$0xf]
        %v1037 = vld [vmem:[#allocation8 + $0x6c] sm:$0xff]
        %v1038 = vld [vmem:[#allocation8 + $0x74] sm:$0xf]
        %v1039 = vld [vmem:[#allocation8 + $0x78] sm:$0xff]
        %v1040 = vld [vmem:[#allocation8 + $0x80] sm:$0xf]
        %v1041 = vld [vmem:[#allocation8 + $0x84] sm:$0xff]
        %v1042 = vld [vmem:[#allocation8 + $0x8c] sm:$0xf]
        %v1043 = vld [vmem:[#allocation8 + $0x90] sm:$0xff]
        %v1044 = vld [vmem:[#allocation8 + $0x98] sm:$0xf]
        %v1045 = vld [vmem:[#allocation8 + $0x9c] sm:$0xff]
        %v1046 = vld [vmem:[#allocation8 + $0xa4] sm:$0xf]
        %v1047 = vld [vmem:[#allocation8 + $0xa8] sm:$0xff]
        %v1048 = vld [vmem:[#allocation8 + $0xb0] sm:$0xf]
        %v1049 = vld [vmem:[#allocation8 + $0xb4] sm:$0xff]
        %v1050 = vld [vmem:[#allocation8 + $0xbc] sm:$0xf]
        %v1051 = vld [vmem:[#allocation8 + $0xc0] sm:$0xff]
        %v1052 = vld [vmem:[#allocation8 + $0xc8] sm:$0xf]
        %v1053 = vld [vmem:[#allocation8 + $0xcc] sm:$0xff]
        %v1054 = vld [vmem:[#allocation8 + $0xd4] sm:$0xf]
        %v1055 = vld [vmem:[#allocation8 + $0xd8] sm:$0xff]
        %v1056 = vld [vmem:[#allocation8 + $0xe0] sm:$0xf]
        %v1057 = vld [vmem:[#allocation8 + $0xe4] sm:$0xff]
        %v1058 = vld [vmem:[#allocation8 + $0xec] sm:$0xf]
        %v1059 = vld [vmem:[#allocation8 + $0xf0] sm:$0xff]
        %v1060 = vld [vmem:[#allocation8 + $0xf8] sm:$0xf]
        %v1061 = vld [vmem:[#allocation8 + $0xfc] sm:$0xff]
        %v1062 = vld [vmem:[#allocation8 + $0x104] sm:$0xf]
        %v1063 = vld [vmem:[#allocation8 + $0x108] sm:$0xff]
        %v1064 = vld [vmem:[#allocation8 + $0x110] sm:$0xf]
        %v1065 = vld [vmem:[#allocation8 + $0x114] sm:$0xff]
        %v1066 = vld [vmem:[#allocation8 + $0x11c] sm:$0xf]
        %v1067 = vld [vmem:[#allocation8 + $0x120] sm:$0xff]
        %v1068 = vld [vmem:[#allocation8 + $0x128] sm:$0xf]
        %v1069 = vld [vmem:[#allocation8 + $0x12c] sm:$0xff]
        %v1070 = vld [vmem:[#allocation8 + $0x134] sm:$0xf]
        %v1071 = vld [vmem:[#allocation8 + $0x138] sm:$0xff]
        %v1072 = vld [vmem:[#allocation8 + $0x140] sm:$0xf]
        %v1073 = vld [vmem:[#allocation8 + $0x144] sm:$0xff]
        %v1074 = vld [vmem:[#allocation8 + $0x14c] sm:$0xf]
        %v1075 = vld [vmem:[#allocation8 + $0x150] sm:$0xff]
        %v1076 = vld [vmem:[#allocation8 + $0x158] sm:$0xf]
        %v1077 = vld [vmem:[#allocation8 + $0x15c] sm:$0xff]
        %v1078 = vld [vmem:[#allocation8 + $0x164] sm:$0xf]
        %v1079 = vld [vmem:[#allocation8 + $0x168] sm:$0xff]
        %v1080 = vld [vmem:[#allocation8 + $0x170] sm:$0xf]
        %v1081 = vld [vmem:[#allocation8 + $0x174] sm:$0xff]
        %v1082 = vld [vmem:[#allocation8 + $0x17c] sm:$0xf]
        %v1083 = vld [vmem:[#allocation8 + $0x180] sm:$0xff]
        %v1084 = vld [vmem:[#allocation8 + $0x188] sm:$0xf]
        %v1085 = vld [vmem:[#allocation8 + $0x18c] sm:$0xff]
        %v1086 = vld [vmem:[#allocation8 + $0x194] sm:$0xf]
        %v1087 = vld [vmem:[#allocation8 + $0x198] sm:$0xff]
        %v1088 = vld [vmem:[#allocation8 + $0x1a0] sm:$0xf]
        %v1089 = vld [vmem:[#allocation8 + $0x1a4] sm:$0xff]
        %v1090 = vld [vmem:[#allocation8 + $0x1ac] sm:$0xf]
        %v1091 = vld [vmem:[#allocation8 + $0x1b0] sm:$0xff]
        %v1092 = vld [vmem:[#allocation8 + $0x1b8] sm:$0xf]
        %v1093 = vld [vmem:[#allocation8 + $0x1bc] sm:$0xff]
        %v1094 = vld [vmem:[#allocation8 + $0x1c4] sm:$0xf]
        %v1095 = vld [vmem:[#allocation8 + $0x1c8] sm:$0xff]
        %v1096 = vld [vmem:[#allocation8 + $0x1d0] sm:$0xf]
        %v1097 = vld [vmem:[#allocation8 + $0x1d4] sm:$0xff]
        %v1098 = vld [vmem:[#allocation8 + $0x1dc] sm:$0xf]
        %v1099 = vld [vmem:[#allocation8 + $0x1e0] sm:$0xff]
        %v1100 = vld [vmem:[#allocation8 + $0x1e8] sm:$0xf]
        %v1101 = vld [vmem:[#allocation8 + $0x1ec] sm:$0xff]
        %v1102 = vld [vmem:[#allocation8 + $0x1f4] sm:$0xf]
        %v1103 = vld [vmem:[#allocation8 + $0x1f8] sm:$0xff]
        %v1104 = vld [vmem:[#allocation8 + $0x200] sm:$0xf]
        %v1105 = vld [vmem:[#allocation8 + $0x204] sm:$0xff]
        %v1106 = vld [vmem:[#allocation8 + $0x20c] sm:$0xf]
        %v1107 = vld [vmem:[#allocation8 + $0x210] sm:$0xff]
        %v1108 = vld [vmem:[#allocation8 + $0x218] sm:$0xf]
        %v1109 = vld [vmem:[#allocation8 + $0x21c] sm:$0xff]
        %v1110 = vld [vmem:[#allocation8 + $0x224] sm:$0xf]
        %v1111 = vld [vmem:[#allocation8 + $0x228] sm:$0xff]
        %v1112 = vld [vmem:[#allocation8 + $0x230] sm:$0xf]
        %v1113 = vld [vmem:[#allocation8 + $0x234] sm:$0xff]
        %v1114 = vld [vmem:[#allocation8 + $0x23c] sm:$0xf]
        %v1211 = vunpack.c.l.b16 %v1019
        %v1212 = vunpack.c.h.b16 %v1019
        %v1213 = vunpack.c.l.b16 %v1020
        %v1214 = vunpack.c.l.b16 %v1021
        %v1215 = vunpack.c.h.b16 %v1021
        %v1216 = vunpack.c.l.b16 %v1022
        %v1217 = vunpack.c.l.b16 %v1023
        %v1218 = vunpack.c.h.b16 %v1023
        %v1219 = vunpack.c.l.b16 %v1024
        %v1220 = vunpack.c.l.b16 %v1025
        %v1221 = vunpack.c.h.b16 %v1025
        %v1222 = vunpack.c.l.b16 %v1026
        %v1223 = vunpack.c.l.b16 %v1027
        %v1224 = vunpack.c.h.b16 %v1027
        %v1225 = vunpack.c.l.b16 %v1028
        %v1226 = vunpack.c.l.b16 %v1029
        %v1227 = vunpack.c.h.b16 %v1029
        %v1228 = vunpack.c.l.b16 %v1030
        %v1229 = vunpack.c.l.b16 %v1031
        %v1230 = vunpack.c.h.b16 %v1031
        %v1231 = vunpack.c.l.b16 %v1032
        %v1232 = vunpack.c.l.b16 %v1033
        %v1233 = vunpack.c.h.b16 %v1033
        %v1234 = vunpack.c.l.b16 %v1034
        %v1235 = vunpack.c.l.b16 %v1035
        %v1236 = vunpack.c.h.b16 %v1035
        %v1237 = vunpack.c.l.b16 %v1036
        %v1238 = vunpack.c.l.b16 %v1037
        %v1239 = vunpack.c.h.b16 %v1037
        %v1240 = vunpack.c.l.b16 %v1038
        %v1241 = vunpack.c.l.b16 %v1039
        %v1242 = vunpack.c.h.b16 %v1039
        %v1243 = vunpack.c.l.b16 %v1040
        %v1244 = vunpack.c.l.b16 %v1041
        %v1245 = vunpack.c.h.b16 %v1041
        %v1246 = vunpack.c.l.b16 %v1042
        %v1247 = vunpack.c.l.b16 %v1043
        %v1248 = vunpack.c.h.b16 %v1043
        %v1249 = vunpack.c.l.b16 %v1044
        %v1250 = vunpack.c.l.b16 %v1045
        %v1251 = vunpack.c.h.b16 %v1045
        %v1252 = vunpack.c.l.b16 %v1046
        %v1253 = vunpack.c.l.b16 %v1047
        %v1254 = vunpack.c.h.b16 %v1047
        %v1255 = vunpack.c.l.b16 %v1048
        %v1256 = vunpack.c.l.b16 %v1049
        %v1257 = vunpack.c.h.b16 %v1049
        %v1258 = vunpack.c.l.b16 %v1050
        %v1259 = vunpack.c.l.b16 %v1051
        %v1260 = vunpack.c.h.b16 %v1051
        %v1261 = vunpack.c.l.b16 %v1052
        %v1262 = vunpack.c.l.b16 %v1053
        %v1263 = vunpack.c.h.b16 %v1053
        %v1264 = vunpack.c.l.b16 %v1054
        %v1265 = vunpack.c.l.b16 %v1055
        %v1266 = vunpack.c.h.b16 %v1055
        %v1267 = vunpack.c.l.b16 %v1056
        %v1268 = vunpack.c.l.b16 %v1057
        %v1269 = vunpack.c.h.b16 %v1057
        %v1270 = vunpack.c.l.b16 %v1058
        %v1271 = vunpack.c.l.b16 %v1059
        %v1272 = vunpack.c.h.b16 %v1059
        %v1273 = vunpack.c.l.b16 %v1060
        %v1274 = vunpack.c.l.b16 %v1061
        %v1275 = vunpack.c.h.b16 %v1061
        %v1276 = vunpack.c.l.b16 %v1062
        %v1277 = vunpack.c.l.b16 %v1063
        %v1278 = vunpack.c.h.b16 %v1063
        %v1279 = vunpack.c.l.b16 %v1064
        %v1280 = vunpack.c.l.b16 %v1065
        %v1281 = vunpack.c.h.b16 %v1065
        %v1282 = vunpack.c.l.b16 %v1066
        %v1283 = vunpack.c.l.b16 %v1067
        %v1284 = vunpack.c.h.b16 %v1067
        %v1285 = vunpack.c.l.b16 %v1068
        %v1286 = vunpack.c.l.b16 %v1069
        %v1287 = vunpack.c.h.b16 %v1069
        %v1288 = vunpack.c.l.b16 %v1070
        %v1289 = vunpack.c.l.b16 %v1071
        %v1290 = vunpack.c.h.b16 %v1071
        %v1291 = vunpack.c.l.b16 %v1072
        %v1292 = vunpack.c.l.b16 %v1073
        %v1293 = vunpack.c.h.b16 %v1073
        %v1294 = vunpack.c.l.b16 %v1074
        %v1295 = vunpack.c.l.b16 %v1075
        %v1296 = vunpack.c.h.b16 %v1075
        %v1297 = vunpack.c.l.b16 %v1076
        %v1298 = vunpack.c.l.b16 %v1077
        %v1299 = vunpack.c.h.b16 %v1077
        %v1300 = vunpack.c.l.b16 %v1078
        %v1301 = vunpack.c.l.b16 %v1079
        %v1302 = vunpack.c.h.b16 %v1079
        %v1303 = vunpack.c.l.b16 %v1080
        %v1304 = vunpack.c.l.b16 %v1081
        %v1305 = vunpack.c.h.b16 %v1081
        %v1306 = vunpack.c.l.b16 %v1082
        %v1307 = vunpack.c.l.b16 %v1083
        %v1308 = vunpack.c.h.b16 %v1083
        %v1309 = vunpack.c.l.b16 %v1084
        %v1310 = vunpack.c.l.b16 %v1085
        %v1311 = vunpack.c.h.b16 %v1085
        %v1312 = vunpack.c.l.b16 %v1086
        %v1313 = vunpack.c.l.b16 %v1087
        %v1314 = vunpack.c.h.b16 %v1087
        %v1315 = vunpack.c.l.b16 %v1088
        %v1316 = vunpack.c.l.b16 %v1089
        %v1317 = vunpack.c.h.b16 %v1089
        %v1318 = vunpack.c.l.b16 %v1090
        %v1319 = vunpack.c.l.b16 %v1091
        %v1320 = vunpack.c.h.b16 %v1091
        %v1321 = vunpack.c.l.b16 %v1092
        %v1322 = vunpack.c.l.b16 %v1093
        %v1323 = vunpack.c.h.b16 %v1093
        %v1324 = vunpack.c.l.b16 %v1094
        %v1325 = vunpack.c.l.b16 %v1095
        %v1326 = vunpack.c.h.b16 %v1095
        %v1327 = vunpack.c.l.b16 %v1096
        %v1328 = vunpack.c.l.b16 %v1097
        %v1329 = vunpack.c.h.b16 %v1097
        %v1330 = vunpack.c.l.b16 %v1098
        %v1331 = vunpack.c.l.b16 %v1099
        %v1332 = vunpack.c.h.b16 %v1099
        %v1333 = vunpack.c.l.b16 %v1100
        %v1334 = vunpack.c.l.b16 %v1101
        %v1335 = vunpack.c.h.b16 %v1101
        %v1336 = vunpack.c.l.b16 %v1102
        %v1337 = vunpack.c.l.b16 %v1103
        %v1338 = vunpack.c.h.b16 %v1103
        %v1339 = vunpack.c.l.b16 %v1104
        %v1340 = vunpack.c.l.b16 %v1105
        %v1341 = vunpack.c.h.b16 %v1105
        %v1342 = vunpack.c.l.b16 %v1106
        %v1343 = vunpack.c.l.b16 %v1107
        %v1344 = vunpack.c.h.b16 %v1107
        %v1345 = vunpack.c.l.b16 %v1108
        %v1346 = vunpack.c.l.b16 %v1109
        %v1347 = vunpack.c.h.b16 %v1109
        %v1348 = vunpack.c.l.b16 %v1110
        %v1349 = vunpack.c.l.b16 %v1111
        %v1350 = vunpack.c.h.b16 %v1111
        %v1351 = vunpack.c.l.b16 %v1112
        %v1352 = vunpack.c.l.b16 %v1113
        %v1353 = vunpack.c.h.b16 %v1113
        %v1354 = vunpack.c.l.b16 %v1114
        %v1355 = vpack.c.b16 %v1214, %v1211
        %v1356 = vpack.c.b16 %v1215, %v1212
        %v1357 = vpack.c.b16 %v1216, %v1213
        %v1358 = vpack.c.b16 %v1220, %v1217
        %v1359 = vpack.c.b16 %v1221, %v1218
        %v1360 = vpack.c.b16 %v1222, %v1219
        %v1361 = vpack.c.b16 %v1226, %v1223
        %v1362 = vpack.c.b16 %v1227, %v1224
        %v1363 = vpack.c.b16 %v1228, %v1225
        %v1364 = vpack.c.b16 %v1232, %v1229
        %v1365 = vpack.c.b16 %v1233, %v1230
        %v1366 = vpack.c.b16 %v1234, %v1231
        %v1367 = vpack.c.b16 %v1238, %v1235
        %v1368 = vpack.c.b16 %v1239, %v1236
        %v1369 = vpack.c.b16 %v1240, %v1237
        %v1370 = vpack.c.b16 %v1244, %v1241
        %v1371 = vpack.c.b16 %v1245, %v1242
        %v1372 = vpack.c.b16 %v1246, %v1243
        %v1373 = vpack.c.b16 %v1250, %v1247
        %v1374 = vpack.c.b16 %v1251, %v1248
        %v1375 = vpack.c.b16 %v1252, %v1249
        %v1376 = vpack.c.b16 %v1256, %v1253
        %v1377 = vpack.c.b16 %v1257, %v1254
        %v1378 = vpack.c.b16 %v1258, %v1255
        %v1379 = vpack.c.b16 %v1262, %v1259
        %v1380 = vpack.c.b16 %v1263, %v1260
        %v1381 = vpack.c.b16 %v1264, %v1261
        %v1382 = vpack.c.b16 %v1268, %v1265
        %v1383 = vpack.c.b16 %v1269, %v1266
        %v1384 = vpack.c.b16 %v1270, %v1267
        %v1385 = vpack.c.b16 %v1274, %v1271
        %v1386 = vpack.c.b16 %v1275, %v1272
        %v1387 = vpack.c.b16 %v1276, %v1273
        %v1388 = vpack.c.b16 %v1280, %v1277
        %v1389 = vpack.c.b16 %v1281, %v1278
        %v1390 = vpack.c.b16 %v1282, %v1279
        %v1391 = vpack.c.b16 %v1286, %v1283
        %v1392 = vpack.c.b16 %v1287, %v1284
        %v1393 = vpack.c.b16 %v1288, %v1285
        %v1394 = vpack.c.b16 %v1292, %v1289
        %v1395 = vpack.c.b16 %v1293, %v1290
        %v1396 = vpack.c.b16 %v1294, %v1291
        %v1397 = vpack.c.b16 %v1298, %v1295
        %v1398 = vpack.c.b16 %v1299, %v1296
        %v1399 = vpack.c.b16 %v1300, %v1297
        %v1400 = vpack.c.b16 %v1304, %v1301
        %v1401 = vpack.c.b16 %v1305, %v1302
        %v1402 = vpack.c.b16 %v1306, %v1303
        %v1403 = vpack.c.b16 %v1310, %v1307
        %v1404 = vpack.c.b16 %v1311, %v1308
        %v1405 = vpack.c.b16 %v1312, %v1309
        %v1406 = vpack.c.b16 %v1316, %v1313
        %v1407 = vpack.c.b16 %v1317, %v1314
        %v1408 = vpack.c.b16 %v1318, %v1315
        %v1409 = vpack.c.b16 %v1322, %v1319
        %v1410 = vpack.c.b16 %v1323, %v1320
        %v1411 = vpack.c.b16 %v1324, %v1321
        %v1412 = vpack.c.b16 %v1328, %v1325
        %v1413 = vpack.c.b16 %v1329, %v1326
        %v1414 = vpack.c.b16 %v1330, %v1327
        %v1415 = vpack.c.b16 %v1334, %v1331
        %v1416 = vpack.c.b16 %v1335, %v1332
        %v1417 = vpack.c.b16 %v1336, %v1333
        %v1418 = vpack.c.b16 %v1340, %v1337
        %v1419 = vpack.c.b16 %v1341, %v1338
        %v1420 = vpack.c.b16 %v1342, %v1339
        %v1421 = vpack.c.b16 %v1346, %v1343
        %v1422 = vpack.c.b16 %v1347, %v1344
        %v1423 = vpack.c.b16 %v1348, %v1345
        %v1424 = vpack.c.b16 %v1352, %v1349
        %v1425 = vpack.c.b16 %v1353, %v1350
        %v1426 = vpack.c.b16 %v1354, %v1351
        %1499 = vmatprep.subr.bf16.mxu0 %v1377
        %1500 = vmatpush1.bf16.msra.mxu0 %v1376
        %1501 = vmatprep.subr.bf16.mxu0 %v1374
        %1502 = vmatpush1.bf16.msra.mxu0 %v1373
        %1503 = vmatprep.subr.bf16.mxu0 %v1371
        %1504 = vmatpush1.bf16.msra.mxu0 %v1370
        %1505 = vmatprep.subr.bf16.mxu0 %v1368
        %1506 = vmatpush1.bf16.msra.mxu0 %v1367
        %1507 = vmatprep.subr.bf16.mxu0 %v1365
        %1508 = vmatpush1.bf16.msra.mxu0 %v1364
        %1509 = vmatprep.subr.bf16.mxu0 %v1362
        %1510 = vmatpush1.bf16.msra.mxu0 %v1361
        %1511 = vmatprep.subr.bf16.mxu0 %v1359
        %1512 = vmatpush1.bf16.msra.mxu0 %v1358
        %1513 = vmatprep.subr.bf16.mxu0 %v1356
        %1514 = vmatpush1.bf16.msra.mxu0 %v1355
        %1515 = vmatprep.subr.bf16.mxu0 %v1401
        %1516 = vmatpush2.bf16.msra.mxu0 %v1400
        %1517 = vmatprep.subr.bf16.mxu0 %v1398
        %1518 = vmatpush2.bf16.msra.mxu0 %v1397
        %1519 = vmatprep.subr.bf16.mxu0 %v1395
        %1520 = vmatpush2.bf16.msra.mxu0 %v1394
        %1521 = vmatprep.subr.bf16.mxu0 %v1392
        %1522 = vmatpush2.bf16.msra.mxu0 %v1391
        %1523 = vmatprep.subr.bf16.mxu0 %v1389
        %1524 = vmatpush2.bf16.msra.mxu0 %v1388
        %1525 = vmatprep.subr.bf16.mxu0 %v1386
        %1526 = vmatpush2.bf16.msra.mxu0 %v1385
        %1527 = vmatprep.subr.bf16.mxu0 %v1383
        %1528 = vmatpush2.bf16.msra.mxu0 %v1382
        %1529 = vmatprep.subr.bf16.mxu0 %v1380
        %1530 = vmatpush2.bf16.msra.mxu0 %v1379
        %1531 = vmatprep.mubr.bf16.mxu0 %v352
        %1532 = vmatmul.mubr.bf16.gmra.mxu0 %v351
        %v1533 = vpop.f32.mrf.mxu0
        %v1534 = vadd.f32 0.0, %v1533
        %v1535 = vpop.f32.mrf.mxu0
        %v1536 = vadd.f32 0.0, %v1535
        %v1537 = vpop.f32.mrf.mxu0
        %v1538 = vadd.f32 0.0, %v1537
        %v1539 = vpop.f32.mrf.mxu0
        %v1540 = vadd.f32 0.0, %v1539
        %1541 = vdwg.mxu0
        %1542 = vmatprep.subr.bf16.mxu0 %v1425
        %1543 = vmatpush1.bf16.msra.mxu0 %v1424
        %1544 = vmatprep.subr.bf16.mxu0 %v1422
        %1545 = vmatpush1.bf16.msra.mxu0 %v1421
        %1546 = vmatprep.subr.bf16.mxu0 %v1419
        %1547 = vmatpush1.bf16.msra.mxu0 %v1418
        %1548 = vmatprep.subr.bf16.mxu0 %v1416
        %1549 = vmatpush1.bf16.msra.mxu0 %v1415
        %1550 = vmatprep.subr.bf16.mxu0 %v1413
        %1551 = vmatpush1.bf16.msra.mxu0 %v1412
        %1552 = vmatprep.subr.bf16.mxu0 %v1410
        %1553 = vmatpush1.bf16.msra.mxu0 %v1409
        %1554 = vmatprep.subr.bf16.mxu0 %v1407
        %1555 = vmatpush1.bf16.msra.mxu0 %v1406
        %1556 = vmatprep.subr.bf16.mxu0 %v1404
        %1557 = vmatpush1.bf16.msra.mxu0 %v1403
        %1558 = vmatprep.subr.bf16.mxu0 0
        %1559 = vmatpush2.bf16.msra.mxu0 0
        %1560 = vmatprep.subr.bf16.mxu0 0
        %1561 = vmatpush2.bf16.msra.mxu0 0
        %1562 = vmatprep.subr.bf16.mxu0 0
        %1563 = vmatpush2.bf16.msra.mxu0 0
        %1564 = vmatprep.subr.bf16.mxu0 0
        %1565 = vmatpush2.bf16.msra.mxu0 0
        %1566 = vmatprep.subr.bf16.mxu0 0
        %1567 = vmatpush2.bf16.msra.mxu0 0
        %1568 = vmatprep.subr.bf16.mxu0 0
        %1569 = vmatpush2.bf16.msra.mxu0 0
        %1570 = vmatprep.subr.bf16.mxu0 0
        %1571 = vmatpush2.bf16.msra.mxu0 0
        %1572 = vmatprep.subr.bf16.mxu0 0
        %1573 = vmatpush2.bf16.msra.mxu0 0
        %1574 = vmatprep.mubr.bf16.mxu0 0
        %1575 = vmatmul.mubr.bf16.gmra.mxu0 %v353
        %v1576 = vpop.f32.mrf.mxu0
        %v1577 = vadd.f32 %v1534, %v1576
        %v1578 = vpop.f32.mrf.mxu0
        %v1579 = vadd.f32 %v1536, %v1578
        %v1580 = vpop.f32.mrf.mxu0
        %v1581 = vadd.f32 %v1538, %v1580
        %v1582 = vpop.f32.mrf.mxu0
        %v1583 = vadd.f32 %v1540, %v1582
        %1584 = vdwg.mxu0
        %1585 = vmatprep.subr.bf16.mxu0 0
        %1586 = vmatpush1.bf16.msra.mxu0 %v1378
        %1587 = vmatprep.subr.bf16.mxu0 0
        %1588 = vmatpush1.bf16.msra.mxu0 %v1375
        %1589 = vmatprep.subr.bf16.mxu0 0
        %1590 = vmatpush1.bf16.msra.mxu0 %v1372
        %1591 = vmatprep.subr.bf16.mxu0 0
        %1592 = vmatpush1.bf16.msra.mxu0 %v1369
        %1593 = vmatprep.subr.bf16.mxu0 0
        %1594 = vmatpush1.bf16.msra.mxu0 %v1366
        %1595 = vmatprep.subr.bf16.mxu0 0
        %1596 = vmatpush1.bf16.msra.mxu0 %v1363
        %1597 = vmatprep.subr.bf16.mxu0 0
        %1598 = vmatpush1.bf16.msra.mxu0 %v1360
        %1599 = vmatprep.subr.bf16.mxu0 0
        %1600 = vmatpush1.bf16.msra.mxu0 %v1357
        %1601 = vmatprep.subr.bf16.mxu0 0
        %1602 = vmatpush2.bf16.msra.mxu0 %v1402
        %1603 = vmatprep.subr.bf16.mxu0 0
        %1604 = vmatpush2.bf16.msra.mxu0 %v1399
        %1605 = vmatprep.subr.bf16.mxu0 0
        %1606 = vmatpush2.bf16.msra.mxu0 %v1396
        %1607 = vmatprep.subr.bf16.mxu0 0
        %1608 = vmatpush2.bf16.msra.mxu0 %v1393
        %1609 = vmatprep.subr.bf16.mxu0 0
        %1610 = vmatpush2.bf16.msra.mxu0 %v1390
        %1611 = vmatprep.subr.bf16.mxu0 0
        %1612 = vmatpush2.bf16.msra.mxu0 %v1387
        %1613 = vmatprep.subr.bf16.mxu0 0
        %1614 = vmatpush2.bf16.msra.mxu0 %v1384
        %1615 = vmatprep.subr.bf16.mxu0 0
        %1616 = vmatpush2.bf16.msra.mxu0 %v1381
        %1617 = vmatprep.mubr.bf16.mxu0 %v352
        %1618 = vmatmul.mubr.bf16.gmra.mxu0 %v351
        %v1619 = vpop.f32.mrf.mxu0
        %v1620 = vadd.f32 0.0, %v1619
        %v1621 = vpop.f32.mrf.mxu0
        %v1622 = vpop.f32.mrf.mxu0
        %v1623 = vadd.f32 0.0, %v1622
        %v1624 = vpop.f32.mrf.mxu0
        %1625 = vdwg.mxu0
        %1626 = vmatprep.subr.bf16.mxu0 0
        %1627 = vmatpush1.bf16.msra.mxu0 %v1426
        %1628 = vmatprep.subr.bf16.mxu0 0
        %1629 = vmatpush1.bf16.msra.mxu0 %v1423
        %1630 = vmatprep.subr.bf16.mxu0 0
        %1631 = vmatpush1.bf16.msra.mxu0 %v1420
        %1632 = vmatprep.subr.bf16.mxu0 0
        %1633 = vmatpush1.bf16.msra.mxu0 %v1417
        %1634 = vmatprep.subr.bf16.mxu0 0
        %1635 = vmatpush1.bf16.msra.mxu0 %v1414
        %1636 = vmatprep.subr.bf16.mxu0 0
        %1637 = vmatpush1.bf16.msra.mxu0 %v1411
        %1638 = vmatprep.subr.bf16.mxu0 0
        %1639 = vmatpush1.bf16.msra.mxu0 %v1408
        %1640 = vmatprep.subr.bf16.mxu0 0
        %1641 = vmatpush1.bf16.msra.mxu0 %v1405
        %1642 = vmatprep.subr.bf16.mxu0 0
        %1643 = vmatpush2.bf16.msra.mxu0 0
        %1644 = vmatprep.subr.bf16.mxu0 0
        %1645 = vmatpush2.bf16.msra.mxu0 0
        %1646 = vmatprep.subr.bf16.mxu0 0
        %1647 = vmatpush2.bf16.msra.mxu0 0
        %1648 = vmatprep.subr.bf16.mxu0 0
        %1649 = vmatpush2.bf16.msra.mxu0 0
        %1650 = vmatprep.subr.bf16.mxu0 0
        %1651 = vmatpush2.bf16.msra.mxu0 0
        %1652 = vmatprep.subr.bf16.mxu0 0
        %1653 = vmatpush2.bf16.msra.mxu0 0
        %1654 = vmatprep.subr.bf16.mxu0 0
        %1655 = vmatpush2.bf16.msra.mxu0 0
        %1656 = vmatprep.subr.bf16.mxu0 0
        %1657 = vmatpush2.bf16.msra.mxu0 0
        %1658 = vmatprep.mubr.bf16.mxu0 0
        %1659 = vmatmul.mubr.bf16.gmra.mxu0 %v353
        %v1660 = vpop.f32.mrf.mxu0
        %v1661 = vadd.f32 %v1620, %v1660
        %v1662 = vpop.f32.mrf.mxu0
        %v1663 = vpop.f32.mrf.mxu0
        %v1664 = vadd.f32 %v1623, %v1663
        %v1665 = vpop.f32.mrf.mxu0
        %1666 = vdwg.mxu0
        %v1667 = vpack.c.bf16 %v1581, %v1577
        %v1668 = vpack.c.bf16 %v1583, %v1579
        %v1669 = vpack.c.bf16 %v1664, %v1661
        %v1670 = vld [vmem:[#allocation5] sm:$0xff]
        %v1671 = vld [vmem:[#allocation5 + $0x8] sm:$0xf]
        %v1672 = vld [vmem:[#allocation5 + $0xc] sm:$0xff]
        %v1673 = vld [vmem:[#allocation5 + $0x14] sm:$0xf]
        %v1674 = vld [vmem:[#allocation5 + $0x18] sm:$0xff]
        %v1675 = vld [vmem:[#allocation5 + $0x20] sm:$0xf]
        %v1676 = vld [vmem:[#allocation5 + $0x24] sm:$0xff]
        %v1677 = vld [vmem:[#allocation5 + $0x2c] sm:$0xf]
        %v1678 = vld [vmem:[#allocation5 + $0x30] sm:$0xff]
        %v1679 = vld [vmem:[#allocation5 + $0x38] sm:$0xf]
        %v1680 = vld [vmem:[#allocation5 + $0x3c] sm:$0xff]
        %v1681 = vld [vmem:[#allocation5 + $0x44] sm:$0xf]
        %v1682 = vld [vmem:[#allocation5 + $0x48] sm:$0xff]
        %v1683 = vld [vmem:[#allocation5 + $0x50] sm:$0xf]
        %v1684 = vld [vmem:[#allocation5 + $0x54] sm:$0xff]
        %v1685 = vld [vmem:[#allocation5 + $0x5c] sm:$0xf]
        %v1686 = vld [vmem:[#allocation5 + $0x60] sm:$0xff]
        %v1687 = vld [vmem:[#allocation5 + $0x68] sm:$0xf]
        %v1688 = vld [vmem:[#allocation5 + $0x6c] sm:$0xff]
        %v1689 = vld [vmem:[#allocation5 + $0x74] sm:$0xf]
        %v1690 = vld [vmem:[#allocation5 + $0x78] sm:$0xff]
        %v1691 = vld [vmem:[#allocation5 + $0x80] sm:$0xf]
        %v1692 = vld [vmem:[#allocation5 + $0x84] sm:$0xff]
        %v1693 = vld [vmem:[#allocation5 + $0x8c] sm:$0xf]
        %v1694 = vld [vmem:[#allocation5 + $0x90] sm:$0xff]
        %v1695 = vld [vmem:[#allocation5 + $0x98] sm:$0xf]
        %v1696 = vld [vmem:[#allocation5 + $0x9c] sm:$0xff]
        %v1697 = vld [vmem:[#allocation5 + $0xa4] sm:$0xf]
        %v1698 = vld [vmem:[#allocation5 + $0xa8] sm:$0xff]
        %v1699 = vld [vmem:[#allocation5 + $0xb0] sm:$0xf]
        %v1700 = vld [vmem:[#allocation5 + $0xb4] sm:$0xff]
        %v1701 = vld [vmem:[#allocation5 + $0xbc] sm:$0xf]
        %v1702 = vld [vmem:[#allocation5 + $0xc0] sm:$0xff]
        %v1703 = vld [vmem:[#allocation5 + $0xc8] sm:$0xf]
        %v1704 = vld [vmem:[#allocation5 + $0xcc] sm:$0xff]
        %v1705 = vld [vmem:[#allocation5 + $0xd4] sm:$0xf]
        %v1706 = vld [vmem:[#allocation5 + $0xd8] sm:$0xff]
        %v1707 = vld [vmem:[#allocation5 + $0xe0] sm:$0xf]
        %v1708 = vld [vmem:[#allocation5 + $0xe4] sm:$0xff]
        %v1709 = vld [vmem:[#allocation5 + $0xec] sm:$0xf]
        %v1710 = vld [vmem:[#allocation5 + $0xf0] sm:$0xff]
        %v1711 = vld [vmem:[#allocation5 + $0xf8] sm:$0xf]
        %v1712 = vld [vmem:[#allocation5 + $0xfc] sm:$0xff]
        %v1713 = vld [vmem:[#allocation5 + $0x104] sm:$0xf]
        %v1714 = vld [vmem:[#allocation5 + $0x108] sm:$0xff]
        %v1715 = vld [vmem:[#allocation5 + $0x110] sm:$0xf]
        %v1716 = vld [vmem:[#allocation5 + $0x114] sm:$0xff]
        %v1717 = vld [vmem:[#allocation5 + $0x11c] sm:$0xf]
        %v1718 = vld [vmem:[#allocation5 + $0x120] sm:$0xff]
        %v1719 = vld [vmem:[#allocation5 + $0x128] sm:$0xf]
        %v1720 = vld [vmem:[#allocation5 + $0x12c] sm:$0xff]
        %v1721 = vld [vmem:[#allocation5 + $0x134] sm:$0xf]
        %v1722 = vld [vmem:[#allocation5 + $0x138] sm:$0xff]
        %v1723 = vld [vmem:[#allocation5 + $0x140] sm:$0xf]
        %v1724 = vld [vmem:[#allocation5 + $0x144] sm:$0xff]
        %v1725 = vld [vmem:[#allocation5 + $0x14c] sm:$0xf]
        %v1726 = vld [vmem:[#allocation5 + $0x150] sm:$0xff]
        %v1727 = vld [vmem:[#allocation5 + $0x158] sm:$0xf]
        %v1728 = vld [vmem:[#allocation5 + $0x15c] sm:$0xff]
        %v1729 = vld [vmem:[#allocation5 + $0x164] sm:$0xf]
        %v1730 = vld [vmem:[#allocation5 + $0x168] sm:$0xff]
        %v1731 = vld [vmem:[#allocation5 + $0x170] sm:$0xf]
        %v1732 = vld [vmem:[#allocation5 + $0x174] sm:$0xff]
        %v1733 = vld [vmem:[#allocation5 + $0x17c] sm:$0xf]
        %v1734 = vld [vmem:[#allocation5 + $0x180] sm:$0xff]
        %v1735 = vld [vmem:[#allocation5 + $0x188] sm:$0xf]
        %v1736 = vld [vmem:[#allocation5 + $0x18c] sm:$0xff]
        %v1737 = vld [vmem:[#allocation5 + $0x194] sm:$0xf]
        %v1738 = vld [vmem:[#allocation5 + $0x198] sm:$0xff]
        %v1739 = vld [vmem:[#allocation5 + $0x1a0] sm:$0xf]
        %v1740 = vld [vmem:[#allocation5 + $0x1a4] sm:$0xff]
        %v1741 = vld [vmem:[#allocation5 + $0x1ac] sm:$0xf]
        %v1742 = vld [vmem:[#allocation5 + $0x1b0] sm:$0xff]
        %v1743 = vld [vmem:[#allocation5 + $0x1b8] sm:$0xf]
        %v1744 = vld [vmem:[#allocation5 + $0x1bc] sm:$0xff]
        %v1745 = vld [vmem:[#allocation5 + $0x1c4] sm:$0xf]
        %v1746 = vld [vmem:[#allocation5 + $0x1c8] sm:$0xff]
        %v1747 = vld [vmem:[#allocation5 + $0x1d0] sm:$0xf]
        %v1748 = vld [vmem:[#allocation5 + $0x1d4] sm:$0xff]
        %v1749 = vld [vmem:[#allocation5 + $0x1dc] sm:$0xf]
        %v1750 = vld [vmem:[#allocation5 + $0x1e0] sm:$0xff]
        %v1751 = vld [vmem:[#allocation5 + $0x1e8] sm:$0xf]
        %v1752 = vld [vmem:[#allocation5 + $0x1ec] sm:$0xff]
        %v1753 = vld [vmem:[#allocation5 + $0x1f4] sm:$0xf]
        %v1754 = vld [vmem:[#allocation5 + $0x1f8] sm:$0xff]
        %v1755 = vld [vmem:[#allocation5 + $0x200] sm:$0xf]
        %v1756 = vld [vmem:[#allocation5 + $0x204] sm:$0xff]
        %v1757 = vld [vmem:[#allocation5 + $0x20c] sm:$0xf]
        %v1758 = vld [vmem:[#allocation5 + $0x210] sm:$0xff]
        %v1759 = vld [vmem:[#allocation5 + $0x218] sm:$0xf]
        %v1760 = vld [vmem:[#allocation5 + $0x21c] sm:$0xff]
        %v1761 = vld [vmem:[#allocation5 + $0x224] sm:$0xf]
        %v1762 = vld [vmem:[#allocation5 + $0x228] sm:$0xff]
        %v1763 = vld [vmem:[#allocation5 + $0x230] sm:$0xf]
        %v1764 = vld [vmem:[#allocation5 + $0x234] sm:$0xff]
        %v1765 = vld [vmem:[#allocation5 + $0x23c] sm:$0xf]
        %v1862 = vunpack.c.l.b16 %v1670
        %v1863 = vunpack.c.h.b16 %v1670
        %v1864 = vunpack.c.l.b16 %v1671
        %v1865 = vunpack.c.l.b16 %v1672
        %v1866 = vunpack.c.h.b16 %v1672
        %v1867 = vunpack.c.l.b16 %v1673
        %v1868 = vunpack.c.l.b16 %v1674
        %v1869 = vunpack.c.h.b16 %v1674
        %v1870 = vunpack.c.l.b16 %v1675
        %v1871 = vunpack.c.l.b16 %v1676
        %v1872 = vunpack.c.h.b16 %v1676
        %v1873 = vunpack.c.l.b16 %v1677
        %v1874 = vunpack.c.l.b16 %v1678
        %v1875 = vunpack.c.h.b16 %v1678
        %v1876 = vunpack.c.l.b16 %v1679
        %v1877 = vunpack.c.l.b16 %v1680
        %v1878 = vunpack.c.h.b16 %v1680
        %v1879 = vunpack.c.l.b16 %v1681
        %v1880 = vunpack.c.l.b16 %v1682
        %v1881 = vunpack.c.h.b16 %v1682
        %v1882 = vunpack.c.l.b16 %v1683
        %v1883 = vunpack.c.l.b16 %v1684
        %v1884 = vunpack.c.h.b16 %v1684
        %v1885 = vunpack.c.l.b16 %v1685
        %v1886 = vunpack.c.l.b16 %v1686
        %v1887 = vunpack.c.h.b16 %v1686
        %v1888 = vunpack.c.l.b16 %v1687
        %v1889 = vunpack.c.l.b16 %v1688
        %v1890 = vunpack.c.h.b16 %v1688
        %v1891 = vunpack.c.l.b16 %v1689
        %v1892 = vunpack.c.l.b16 %v1690
        %v1893 = vunpack.c.h.b16 %v1690
        %v1894 = vunpack.c.l.b16 %v1691
        %v1895 = vunpack.c.l.b16 %v1692
        %v1896 = vunpack.c.h.b16 %v1692
        %v1897 = vunpack.c.l.b16 %v1693
        %v1898 = vunpack.c.l.b16 %v1694
        %v1899 = vunpack.c.h.b16 %v1694
        %v1900 = vunpack.c.l.b16 %v1695
        %v1901 = vunpack.c.l.b16 %v1696
        %v1902 = vunpack.c.h.b16 %v1696
        %v1903 = vunpack.c.l.b16 %v1697
        %v1904 = vunpack.c.l.b16 %v1698
        %v1905 = vunpack.c.h.b16 %v1698
        %v1906 = vunpack.c.l.b16 %v1699
        %v1907 = vunpack.c.l.b16 %v1700
        %v1908 = vunpack.c.h.b16 %v1700
        %v1909 = vunpack.c.l.b16 %v1701
        %v1910 = vunpack.c.l.b16 %v1702
        %v1911 = vunpack.c.h.b16 %v1702
        %v1912 = vunpack.c.l.b16 %v1703
        %v1913 = vunpack.c.l.b16 %v1704
        %v1914 = vunpack.c.h.b16 %v1704
        %v1915 = vunpack.c.l.b16 %v1705
        %v1916 = vunpack.c.l.b16 %v1706
        %v1917 = vunpack.c.h.b16 %v1706
        %v1918 = vunpack.c.l.b16 %v1707
        %v1919 = vunpack.c.l.b16 %v1708
        %v1920 = vunpack.c.h.b16 %v1708
        %v1921 = vunpack.c.l.b16 %v1709
        %v1922 = vunpack.c.l.b16 %v1710
        %v1923 = vunpack.c.h.b16 %v1710
        %v1924 = vunpack.c.l.b16 %v1711
        %v1925 = vunpack.c.l.b16 %v1712
        %v1926 = vunpack.c.h.b16 %v1712
        %v1927 = vunpack.c.l.b16 %v1713
        %v1928 = vunpack.c.l.b16 %v1714
        %v1929 = vunpack.c.h.b16 %v1714
        %v1930 = vunpack.c.l.b16 %v1715
        %v1931 = vunpack.c.l.b16 %v1716
        %v1932 = vunpack.c.h.b16 %v1716
        %v1933 = vunpack.c.l.b16 %v1717
        %v1934 = vunpack.c.l.b16 %v1718
        %v1935 = vunpack.c.h.b16 %v1718
        %v1936 = vunpack.c.l.b16 %v1719
        %v1937 = vunpack.c.l.b16 %v1720
        %v1938 = vunpack.c.h.b16 %v1720
        %v1939 = vunpack.c.l.b16 %v1721
        %v1940 = vunpack.c.l.b16 %v1722
        %v1941 = vunpack.c.h.b16 %v1722
        %v1942 = vunpack.c.l.b16 %v1723
        %v1943 = vunpack.c.l.b16 %v1724
        %v1944 = vunpack.c.h.b16 %v1724
        %v1945 = vunpack.c.l.b16 %v1725
        %v1946 = vunpack.c.l.b16 %v1726
        %v1947 = vunpack.c.h.b16 %v1726
        %v1948 = vunpack.c.l.b16 %v1727
        %v1949 = vunpack.c.l.b16 %v1728
        %v1950 = vunpack.c.h.b16 %v1728
        %v1951 = vunpack.c.l.b16 %v1729
        %v1952 = vunpack.c.l.b16 %v1730
        %v1953 = vunpack.c.h.b16 %v1730
        %v1954 = vunpack.c.l.b16 %v1731
        %v1955 = vunpack.c.l.b16 %v1732
        %v1956 = vunpack.c.h.b16 %v1732
        %v1957 = vunpack.c.l.b16 %v1733
        %v1958 = vunpack.c.l.b16 %v1734
        %v1959 = vunpack.c.h.b16 %v1734
        %v1960 = vunpack.c.l.b16 %v1735
        %v1961 = vunpack.c.l.b16 %v1736
        %v1962 = vunpack.c.h.b16 %v1736
        %v1963 = vunpack.c.l.b16 %v1737
        %v1964 = vunpack.c.l.b16 %v1738
        %v1965 = vunpack.c.h.b16 %v1738
        %v1966 = vunpack.c.l.b16 %v1739
        %v1967 = vunpack.c.l.b16 %v1740
        %v1968 = vunpack.c.h.b16 %v1740
        %v1969 = vunpack.c.l.b16 %v1741
        %v1970 = vunpack.c.l.b16 %v1742
        %v1971 = vunpack.c.h.b16 %v1742
        %v1972 = vunpack.c.l.b16 %v1743
        %v1973 = vunpack.c.l.b16 %v1744
        %v1974 = vunpack.c.h.b16 %v1744
        %v1975 = vunpack.c.l.b16 %v1745
        %v1976 = vunpack.c.l.b16 %v1746
        %v1977 = vunpack.c.h.b16 %v1746
        %v1978 = vunpack.c.l.b16 %v1747
        %v1979 = vunpack.c.l.b16 %v1748
        %v1980 = vunpack.c.h.b16 %v1748
        %v1981 = vunpack.c.l.b16 %v1749
        %v1982 = vunpack.c.l.b16 %v1750
        %v1983 = vunpack.c.h.b16 %v1750
        %v1984 = vunpack.c.l.b16 %v1751
        %v1985 = vunpack.c.l.b16 %v1752
        %v1986 = vunpack.c.h.b16 %v1752
        %v1987 = vunpack.c.l.b16 %v1753
        %v1988 = vunpack.c.l.b16 %v1754
        %v1989 = vunpack.c.h.b16 %v1754
        %v1990 = vunpack.c.l.b16 %v1755
        %v1991 = vunpack.c.l.b16 %v1756
        %v1992 = vunpack.c.h.b16 %v1756
        %v1993 = vunpack.c.l.b16 %v1757
        %v1994 = vunpack.c.l.b16 %v1758
        %v1995 = vunpack.c.h.b16 %v1758
        %v1996 = vunpack.c.l.b16 %v1759
        %v1997 = vunpack.c.l.b16 %v1760
        %v1998 = vunpack.c.h.b16 %v1760
        %v1999 = vunpack.c.l.b16 %v1761
        %v2000 = vunpack.c.l.b16 %v1762
        %v2001 = vunpack.c.h.b16 %v1762
        %v2002 = vunpack.c.l.b16 %v1763
        %v2003 = vunpack.c.l.b16 %v1764
        %v2004 = vunpack.c.h.b16 %v1764
        %v2005 = vunpack.c.l.b16 %v1765
        %v2006 = vpack.c.b16 %v1865, %v1862
        %v2007 = vpack.c.b16 %v1866, %v1863
        %v2008 = vpack.c.b16 %v1867, %v1864
        %v2009 = vpack.c.b16 %v1871, %v1868
        %v2010 = vpack.c.b16 %v1872, %v1869
        %v2011 = vpack.c.b16 %v1873, %v1870
        %v2012 = vpack.c.b16 %v1877, %v1874
        %v2013 = vpack.c.b16 %v1878, %v1875
        %v2014 = vpack.c.b16 %v1879, %v1876
        %v2015 = vpack.c.b16 %v1883, %v1880
        %v2016 = vpack.c.b16 %v1884, %v1881
        %v2017 = vpack.c.b16 %v1885, %v1882
        %v2018 = vpack.c.b16 %v1889, %v1886
        %v2019 = vpack.c.b16 %v1890, %v1887
        %v2020 = vpack.c.b16 %v1891, %v1888
        %v2021 = vpack.c.b16 %v1895, %v1892
        %v2022 = vpack.c.b16 %v1896, %v1893
        %v2023 = vpack.c.b16 %v1897, %v1894
        %v2024 = vpack.c.b16 %v1901, %v1898
        %v2025 = vpack.c.b16 %v1902, %v1899
        %v2026 = vpack.c.b16 %v1903, %v1900
        %v2027 = vpack.c.b16 %v1907, %v1904
        %v2028 = vpack.c.b16 %v1908, %v1905
        %v2029 = vpack.c.b16 %v1909, %v1906
        %v2030 = vpack.c.b16 %v1913, %v1910
        %v2031 = vpack.c.b16 %v1914, %v1911
        %v2032 = vpack.c.b16 %v1915, %v1912
        %v2033 = vpack.c.b16 %v1919, %v1916
        %v2034 = vpack.c.b16 %v1920, %v1917
        %v2035 = vpack.c.b16 %v1921, %v1918
        %v2036 = vpack.c.b16 %v1925, %v1922
        %v2037 = vpack.c.b16 %v1926, %v1923
        %v2038 = vpack.c.b16 %v1927, %v1924
        %v2039 = vpack.c.b16 %v1931, %v1928
        %v2040 = vpack.c.b16 %v1932, %v1929
        %v2041 = vpack.c.b16 %v1933, %v1930
        %v2042 = vpack.c.b16 %v1937, %v1934
        %v2043 = vpack.c.b16 %v1938, %v1935
        %v2044 = vpack.c.b16 %v1939, %v1936
        %v2045 = vpack.c.b16 %v1943, %v1940
        %v2046 = vpack.c.b16 %v1944, %v1941
        %v2047 = vpack.c.b16 %v1945, %v1942
        %v2048 = vpack.c.b16 %v1949, %v1946
        %v2049 = vpack.c.b16 %v1950, %v1947
        %v2050 = vpack.c.b16 %v1951, %v1948
        %v2051 = vpack.c.b16 %v1955, %v1952
        %v2052 = vpack.c.b16 %v1956, %v1953
        %v2053 = vpack.c.b16 %v1957, %v1954
        %v2054 = vpack.c.b16 %v1961, %v1958
        %v2055 = vpack.c.b16 %v1962, %v1959
        %v2056 = vpack.c.b16 %v1963, %v1960
        %v2057 = vpack.c.b16 %v1967, %v1964
        %v2058 = vpack.c.b16 %v1968, %v1965
        %v2059 = vpack.c.b16 %v1969, %v1966
        %v2060 = vpack.c.b16 %v1973, %v1970
        %v2061 = vpack.c.b16 %v1974, %v1971
        %v2062 = vpack.c.b16 %v1975, %v1972
        %v2063 = vpack.c.b16 %v1979, %v1976
        %v2064 = vpack.c.b16 %v1980, %v1977
        %v2065 = vpack.c.b16 %v1981, %v1978
        %v2066 = vpack.c.b16 %v1985, %v1982
        %v2067 = vpack.c.b16 %v1986, %v1983
        %v2068 = vpack.c.b16 %v1987, %v1984
        %v2069 = vpack.c.b16 %v1991, %v1988
        %v2070 = vpack.c.b16 %v1992, %v1989
        %v2071 = vpack.c.b16 %v1993, %v1990
        %v2072 = vpack.c.b16 %v1997, %v1994
        %v2073 = vpack.c.b16 %v1998, %v1995
        %v2074 = vpack.c.b16 %v1999, %v1996
        %v2075 = vpack.c.b16 %v2003, %v2000
        %v2076 = vpack.c.b16 %v2004, %v2001
        %v2077 = vpack.c.b16 %v2005, %v2002
        %2150 = vmatprep.subr.bf16.mxu0 %v2028
        %2151 = vmatpush1.bf16.msra.mxu0 %v2027
        %2152 = vmatprep.subr.bf16.mxu0 %v2025
        %2153 = vmatpush1.bf16.msra.mxu0 %v2024
        %2154 = vmatprep.subr.bf16.mxu0 %v2022
        %2155 = vmatpush1.bf16.msra.mxu0 %v2021
        %2156 = vmatprep.subr.bf16.mxu0 %v2019
        %2157 = vmatpush1.bf16.msra.mxu0 %v2018
        %2158 = vmatprep.subr.bf16.mxu0 %v2016
        %2159 = vmatpush1.bf16.msra.mxu0 %v2015
        %2160 = vmatprep.subr.bf16.mxu0 %v2013
        %2161 = vmatpush1.bf16.msra.mxu0 %v2012
        %2162 = vmatprep.subr.bf16.mxu0 %v2010
        %2163 = vmatpush1.bf16.msra.mxu0 %v2009
        %2164 = vmatprep.subr.bf16.mxu0 %v2007
        %2165 = vmatpush1.bf16.msra.mxu0 %v2006
        %2166 = vmatprep.subr.bf16.mxu0 %v2052
        %2167 = vmatpush2.bf16.msra.mxu0 %v2051
        %2168 = vmatprep.subr.bf16.mxu0 %v2049
        %2169 = vmatpush2.bf16.msra.mxu0 %v2048
        %2170 = vmatprep.subr.bf16.mxu0 %v2046
        %2171 = vmatpush2.bf16.msra.mxu0 %v2045
        %2172 = vmatprep.subr.bf16.mxu0 %v2043
        %2173 = vmatpush2.bf16.msra.mxu0 %v2042
        %2174 = vmatprep.subr.bf16.mxu0 %v2040
        %2175 = vmatpush2.bf16.msra.mxu0 %v2039
        %2176 = vmatprep.subr.bf16.mxu0 %v2037
        %2177 = vmatpush2.bf16.msra.mxu0 %v2036
        %2178 = vmatprep.subr.bf16.mxu0 %v2034
        %2179 = vmatpush2.bf16.msra.mxu0 %v2033
        %2180 = vmatprep.subr.bf16.mxu0 %v2031
        %2181 = vmatpush2.bf16.msra.mxu0 %v2030
        %2182 = vmatprep.mubr.bf16.mxu0 %v366
        %2183 = vmatmul.mubr.bf16.gmra.mxu0 %v365
        %v2184 = vpop.f32.mrf.mxu0
        %v2185 = vadd.f32 0.0, %v2184
        %v2186 = vpop.f32.mrf.mxu0
        %v2187 = vadd.f32 0.0, %v2186
        %v2188 = vpop.f32.mrf.mxu0
        %v2189 = vadd.f32 0.0, %v2188
        %v2190 = vpop.f32.mrf.mxu0
        %v2191 = vadd.f32 0.0, %v2190
        %2192 = vdwg.mxu0
        %2193 = vmatprep.subr.bf16.mxu0 %v2076
        %2194 = vmatpush1.bf16.msra.mxu0 %v2075
        %2195 = vmatprep.subr.bf16.mxu0 %v2073
        %2196 = vmatpush1.bf16.msra.mxu0 %v2072
        %2197 = vmatprep.subr.bf16.mxu0 %v2070
        %2198 = vmatpush1.bf16.msra.mxu0 %v2069
        %2199 = vmatprep.subr.bf16.mxu0 %v2067
        %2200 = vmatpush1.bf16.msra.mxu0 %v2066
        %2201 = vmatprep.subr.bf16.mxu0 %v2064
        %2202 = vmatpush1.bf16.msra.mxu0 %v2063
        %2203 = vmatprep.subr.bf16.mxu0 %v2061
        %2204 = vmatpush1.bf16.msra.mxu0 %v2060
        %2205 = vmatprep.subr.bf16.mxu0 %v2058
        %2206 = vmatpush1.bf16.msra.mxu0 %v2057
        %2207 = vmatprep.subr.bf16.mxu0 %v2055
        %2208 = vmatpush1.bf16.msra.mxu0 %v2054
        %2209 = vmatprep.subr.bf16.mxu0 0
        %2210 = vmatpush2.bf16.msra.mxu0 0
        %2211 = vmatprep.subr.bf16.mxu0 0
        %2212 = vmatpush2.bf16.msra.mxu0 0
        %2213 = vmatprep.subr.bf16.mxu0 0
        %2214 = vmatpush2.bf16.msra.mxu0 0
        %2215 = vmatprep.subr.bf16.mxu0 0
        %2216 = vmatpush2.bf16.msra.mxu0 0
        %2217 = vmatprep.subr.bf16.mxu0 0
        %2218 = vmatpush2.bf16.msra.mxu0 0
        %2219 = vmatprep.subr.bf16.mxu0 0
        %2220 = vmatpush2.bf16.msra.mxu0 0
        %2221 = vmatprep.subr.bf16.mxu0 0
        %2222 = vmatpush2.bf16.msra.mxu0 0
        %2223 = vmatprep.subr.bf16.mxu0 0
        %2224 = vmatpush2.bf16.msra.mxu0 0
        %2225 = vmatprep.mubr.bf16.mxu0 0
        %2226 = vmatmul.mubr.bf16.gmra.mxu0 %v367
        %v2227 = vpop.f32.mrf.mxu0
        %v2228 = vadd.f32 %v2185, %v2227
        %v2229 = vpop.f32.mrf.mxu0
        %v2230 = vadd.f32 %v2187, %v2229
        %v2231 = vpop.f32.mrf.mxu0
        %v2232 = vadd.f32 %v2189, %v2231
        %v2233 = vpop.f32.mrf.mxu0
        %v2234 = vadd.f32 %v2191, %v2233
        %2235 = vdwg.mxu0
        %2236 = vmatprep.subr.bf16.mxu0 0
        %2237 = vmatpush1.bf16.msra.mxu0 %v2029
        %2238 = vmatprep.subr.bf16.mxu0 0
        %2239 = vmatpush1.bf16.msra.mxu0 %v2026
        %2240 = vmatprep.subr.bf16.mxu0 0
        %2241 = vmatpush1.bf16.msra.mxu0 %v2023
        %2242 = vmatprep.subr.bf16.mxu0 0
        %2243 = vmatpush1.bf16.msra.mxu0 %v2020
        %2244 = vmatprep.subr.bf16.mxu0 0
        %2245 = vmatpush1.bf16.msra.mxu0 %v2017
        %2246 = vmatprep.subr.bf16.mxu0 0
        %2247 = vmatpush1.bf16.msra.mxu0 %v2014
        %2248 = vmatprep.subr.bf16.mxu0 0
        %2249 = vmatpush1.bf16.msra.mxu0 %v2011
        %2250 = vmatprep.subr.bf16.mxu0 0
        %2251 = vmatpush1.bf16.msra.mxu0 %v2008
        %2252 = vmatprep.subr.bf16.mxu0 0
        %2253 = vmatpush2.bf16.msra.mxu0 %v2053
        %2254 = vmatprep.subr.bf16.mxu0 0
        %2255 = vmatpush2.bf16.msra.mxu0 %v2050
        %2256 = vmatprep.subr.bf16.mxu0 0
        %2257 = vmatpush2.bf16.msra.mxu0 %v2047
        %2258 = vmatprep.subr.bf16.mxu0 0
        %2259 = vmatpush2.bf16.msra.mxu0 %v2044
        %2260 = vmatprep.subr.bf16.mxu0 0
        %2261 = vmatpush2.bf16.msra.mxu0 %v2041
        %2262 = vmatprep.subr.bf16.mxu0 0
        %2263 = vmatpush2.bf16.msra.mxu0 %v2038
        %2264 = vmatprep.subr.bf16.mxu0 0
        %2265 = vmatpush2.bf16.msra.mxu0 %v2035
        %2266 = vmatprep.subr.bf16.mxu0 0
        %2267 = vmatpush2.bf16.msra.mxu0 %v2032
        %2268 = vmatprep.mubr.bf16.mxu0 %v366
        %2269 = vmatmul.mubr.bf16.gmra.mxu0 %v365
        %v2270 = vpop.f32.mrf.mxu0
        %v2271 = vadd.f32 0.0, %v2270
        %v2272 = vpop.f32.mrf.mxu0
        %v2273 = vpop.f32.mrf.mxu0
        %v2274 = vadd.f32 0.0, %v2273
        %v2275 = vpop.f32.mrf.mxu0
        %2276 = vdwg.mxu0
        %2277 = vmatprep.subr.bf16.mxu0 0
        %2278 = vmatpush1.bf16.msra.mxu0 %v2077
        %2279 = vmatprep.subr.bf16.mxu0 0
        %2280 = vmatpush1.bf16.msra.mxu0 %v2074
        %2281 = vmatprep.subr.bf16.mxu0 0
        %2282 = vmatpush1.bf16.msra.mxu0 %v2071
        %2283 = vmatprep.subr.bf16.mxu0 0
        %2284 = vmatpush1.bf16.msra.mxu0 %v2068
        %2285 = vmatprep.subr.bf16.mxu0 0
        %2286 = vmatpush1.bf16.msra.mxu0 %v2065
        %2287 = vmatprep.subr.bf16.mxu0 0
        %2288 = vmatpush1.bf16.msra.mxu0 %v2062
        %2289 = vmatprep.subr.bf16.mxu0 0
        %2290 = vmatpush1.bf16.msra.mxu0 %v2059
        %2291 = vmatprep.subr.bf16.mxu0 0
        %2292 = vmatpush1.bf16.msra.mxu0 %v2056
        %2293 = vmatprep.subr.bf16.mxu0 0
        %2294 = vmatpush2.bf16.msra.mxu0 0
        %2295 = vmatprep.subr.bf16.mxu0 0
        %2296 = vmatpush2.bf16.msra.mxu0 0
        %2297 = vmatprep.subr.bf16.mxu0 0
        %2298 = vmatpush2.bf16.msra.mxu0 0
        %2299 = vmatprep.subr.bf16.mxu0 0
        %2300 = vmatpush2.bf16.msra.mxu0 0
        %2301 = vmatprep.subr.bf16.mxu0 0
        %2302 = vmatpush2.bf16.msra.mxu0 0
        %2303 = vmatprep.subr.bf16.mxu0 0
        %2304 = vmatpush2.bf16.msra.mxu0 0
        %2305 = vmatprep.subr.bf16.mxu0 0
        %2306 = vmatpush2.bf16.msra.mxu0 0
        %2307 = vmatprep.subr.bf16.mxu0 0
        %2308 = vmatpush2.bf16.msra.mxu0 0
        %2309 = vmatprep.mubr.bf16.mxu0 0
        %2310 = vmatmul.mubr.bf16.gmra.mxu0 %v367
        %v2311 = vpop.f32.mrf.mxu0
        %v2312 = vadd.f32 %v2271, %v2311
        %v2313 = vpop.f32.mrf.mxu0
        %v2314 = vpop.f32.mrf.mxu0
        %v2315 = vadd.f32 %v2274, %v2314
        %v2316 = vpop.f32.mrf.mxu0
        %2317 = vdwg.mxu0
        %v2318 = vpack.c.bf16 %v2232, %v2228
        %v2319 = vpack.c.bf16 %v2234, %v2230
        %v2320 = vpack.c.bf16 %v2315, %v2312
        %v2321 = vlaneseq
        %v2322 = vshrl.u32 %v2321, 7
        %v2323 = vadd.s32 %v2322, 8
        %v2324 = vstv %s344
        %v2325 = vadd.s32 %v2322, %v2324
        %v2326 = vadd.s32 %v2323, %v2324
        %v2327 = vlaneseq
        %v2328 = vand.u32 %v2327, 127
        %vm2329 = vcmp.le.s32.totalorder %v2328, %v2325
        %vm2330 = vcmp.le.s32.totalorder %v2328, %v2326
        %vm2331 = vcmask 523264
        %v2333 = vsel %vm2331, %v2318, 0
        %v2336 = vsel %vm2331, %v1016, 0
        %2338 = vmatprep.subr.bf16.mxu0 0
        %2339 = vmatpush1.bf16.xpose.msra.mxu0 0
        %2340 = vmatprep.subr.bf16.mxu0 0
        %2341 = vmatpush1.bf16.xpose.msra.mxu0 0
        %2342 = vmatprep.subr.bf16.mxu0 0
        %2343 = vmatpush1.bf16.xpose.msra.mxu0 0
        %2344 = vmatprep.subr.bf16.mxu0 0
        %2345 = vmatpush1.bf16.xpose.msra.mxu0 0
        %2346 = vmatprep.subr.bf16.mxu0 0
        %2347 = vmatpush1.bf16.xpose.msra.mxu0 0
        %2348 = vmatprep.subr.bf16.mxu0 0
        %2349 = vmatpush1.bf16.xpose.msra.mxu0 0
        %2350 = vmatprep.subr.bf16.mxu0 0
        %2351 = vmatpush1.bf16.xpose.msra.mxu0 0
        %2352 = vmatprep.subr.bf16.mxu0 0
        %2353 = vmatpush1.bf16.xpose.msra.mxu0 %v2336
        %2354 = vmatprep.subr.bf16.mxu0 0
        %2355 = vmatpush2.bf16.xpose.msra.mxu0 0
        %2356 = vmatprep.subr.bf16.mxu0 0
        %2357 = vmatpush2.bf16.xpose.msra.mxu0 0
        %2358 = vmatprep.subr.bf16.mxu0 0
        %2359 = vmatpush2.bf16.xpose.msra.mxu0 0
        %2360 = vmatprep.subr.bf16.mxu0 0
        %2361 = vmatpush2.bf16.xpose.msra.mxu0 0
        %2362 = vmatprep.subr.bf16.mxu0 0
        %2363 = vmatpush2.bf16.xpose.msra.mxu0 0
        %2364 = vmatprep.subr.bf16.mxu0 0
        %2365 = vmatpush2.bf16.xpose.msra.mxu0 0
        %2366 = vmatprep.subr.bf16.mxu0 0
        %2367 = vmatpush2.bf16.xpose.msra.mxu0 0
        %2368 = vmatprep.subr.bf16.mxu0 0
        %2369 = vmatpush2.bf16.xpose.msra.mxu0 0
        %2370 = vmatprep.mubr.bf16.mxu0 0
        %2371 = vmatmul.mubr.bf16.gmra.mxu0 %v2333
        %v2372 = vpop.f32.mrf.mxu0
        %v2373 = vadd.f32 0.0, %v2372
        %v2374 = vpop.f32.mrf.mxu0
        %v2375 = vpop.f32.mrf.mxu0
        %v2376 = vadd.f32 0.0, %v2375
        %v2377 = vpop.f32.mrf.mxu0
        %2378 = vdwg.mxu0
        %v2379 = vsel %vm2329, %v2373, -1e+30
        %v2380 = vsel %vm2330, %v2376, -1e+30
        %vm2381 = vcmask 130048
        %v2382 = vsel %vm2381, %v2379, -inf
        %2383 = vmax.xlane.f32.xlu0 %v2382
        %v2384 = vpop.xlane.xlu0 %2383
        %v2385 = vsel %vm2381, %v2380, -inf
        %2386 = vmax.xlane.f32.xlu0 %v2385
        %v2387 = vpop.xlane.xlu0 %2386
        %v2388 = vsub.f32 %v2379, %v2384
        %v2389 = vsub.f32 %v2380, %v2387
        %v2390 = vmul.f32 %v2388, 1.442695
        %v2391 = vpow.pop %v2390
        %v2392 = vmul.f32 %v2389, 1.442695
        %v2393 = vpow.pop %v2392
        %v2394 = vsel %vm2381, %v2391, 0.0
        %2395 = vadd.xlane.f32.xlu0 %v2394
        %v2396 = vpop.xlane.xlu0 %2395
        %v2397 = vsel %vm2381, %v2393, 0.0
        %2398 = vadd.xlane.f32.xlu0 %v2397
        %v2399 = vpop.xlane.xlu0 %2398
        %v2400 = vrcp.pop %v2396
        %v2401 = vrcp.pop %v2399
        %v2402 = vmul.f32 %v2391, %v2400
        %v2403 = vmul.f32 %v2393, %v2401
        %v2404 = vpack.c.bf16 %v2403, %v2402
        %v2406 = vsel %vm2381, %v2404, 0
        %2408 = vmatprep.subr.bf16.mxu0 0
        %2409 = vmatpush1.bf16.msra.mxu0 0
        %2410 = vmatprep.subr.bf16.mxu0 0
        %2411 = vmatpush1.bf16.msra.mxu0 0
        %2412 = vmatprep.subr.bf16.mxu0 0
        %2413 = vmatpush1.bf16.msra.mxu0 0
        %2414 = vmatprep.subr.bf16.mxu0 0
        %2415 = vmatpush1.bf16.msra.mxu0 0
        %2416 = vmatprep.subr.bf16.mxu0 0
        %2417 = vmatpush1.bf16.msra.mxu0 0
        %2418 = vmatprep.subr.bf16.mxu0 0
        %2419 = vmatpush1.bf16.msra.mxu0 0
        %2420 = vmatprep.subr.bf16.mxu0 0
        %2421 = vmatpush1.bf16.msra.mxu0 0
        %2422 = vmatprep.subr.bf16.mxu0 0
        %2423 = vmatpush1.bf16.msra.mxu0 %v1667
        %2424 = vmatprep.subr.bf16.mxu0 0
        %2425 = vmatpush2.bf16.msra.mxu0 0
        %2426 = vmatprep.subr.bf16.mxu0 0
        %2427 = vmatpush2.bf16.msra.mxu0 0
        %2428 = vmatprep.subr.bf16.mxu0 0
        %2429 = vmatpush2.bf16.msra.mxu0 0
        %2430 = vmatprep.subr.bf16.mxu0 0
        %2431 = vmatpush2.bf16.msra.mxu0 0
        %2432 = vmatprep.subr.bf16.mxu0 0
        %2433 = vmatpush2.bf16.msra.mxu0 0
        %2434 = vmatprep.subr.bf16.mxu0 0
        %2435 = vmatpush2.bf16.msra.mxu0 0
        %2436 = vmatprep.subr.bf16.mxu0 0
        %2437 = vmatpush2.bf16.msra.mxu0 0
        %2438 = vmatprep.subr.bf16.mxu0 0
        %2439 = vmatpush2.bf16.msra.mxu0 0
        %2440 = vmatprep.mubr.bf16.mxu0 0
        %2441 = vmatmul.mubr.bf16.gmra.mxu0 %v2406
        %v2442 = vpop.f32.mrf.mxu0
        %v2443 = vadd.f32 0.0, %v2442
        %v2444 = vpop.f32.mrf.mxu0
        %v2445 = vpop.f32.mrf.mxu0
        %v2446 = vadd.f32 0.0, %v2445
        %v2447 = vpop.f32.mrf.mxu0
        %2448 = vdwg.mxu0
        %v2449 = vpack.c.bf16 %v2446, %v2443
        %v2450 = vld [vmem:[#allocation10] sm:$0xff]
        %v2451 = vld [vmem:[#allocation10 + $0x8] sm:$0xf]
        %v2452 = vld [vmem:[#allocation10 + $0xc] sm:$0xff]
        %v2453 = vld [vmem:[#allocation10 + $0x14] sm:$0xf]
        %v2454 = vld [vmem:[#allocation10 + $0x18] sm:$0xff]
        %v2455 = vld [vmem:[#allocation10 + $0x20] sm:$0xf]
        %v2456 = vld [vmem:[#allocation10 + $0x24] sm:$0xff]
        %v2457 = vld [vmem:[#allocation10 + $0x2c] sm:$0xf]
        %v2458 = vld [vmem:[#allocation10 + $0x30] sm:$0xff]
        %v2459 = vld [vmem:[#allocation10 + $0x38] sm:$0xf]
        %v2460 = vld [vmem:[#allocation10 + $0x3c] sm:$0xff]
        %v2461 = vld [vmem:[#allocation10 + $0x44] sm:$0xf]
        %v2462 = vld [vmem:[#allocation10 + $0x48] sm:$0xff]
        %v2463 = vld [vmem:[#allocation10 + $0x50] sm:$0xf]
        %v2464 = vld [vmem:[#allocation10 + $0x54] sm:$0xff]
        %v2465 = vld [vmem:[#allocation10 + $0x5c] sm:$0xf]
        %2467 = vrot.lane.b32.xlu0 %v2318, 64
        %v2468 = vpop.permute.xlu0 %2467
        %2470 = vrot.lane.b32.xlu0 %v1016, 64
        %v2471 = vpop.permute.xlu0 %2470
        %v2473 = vsel %vm2331, %v2468, 0
        %v2476 = vsel %vm2331, %v2471, 0
        %2478 = vmatprep.subr.bf16.mxu0 0
        %2479 = vmatpush1.bf16.xpose.msra.mxu0 0
        %2480 = vmatprep.subr.bf16.mxu0 0
        %2481 = vmatpush1.bf16.xpose.msra.mxu0 0
        %2482 = vmatprep.subr.bf16.mxu0 0
        %2483 = vmatpush1.bf16.xpose.msra.mxu0 0
        %2484 = vmatprep.subr.bf16.mxu0 0
        %2485 = vmatpush1.bf16.xpose.msra.mxu0 0
        %2486 = vmatprep.subr.bf16.mxu0 0
        %2487 = vmatpush1.bf16.xpose.msra.mxu0 0
        %2488 = vmatprep.subr.bf16.mxu0 0
        %2489 = vmatpush1.bf16.xpose.msra.mxu0 0
        %2490 = vmatprep.subr.bf16.mxu0 0
        %2491 = vmatpush1.bf16.xpose.msra.mxu0 0
        %2492 = vmatprep.subr.bf16.mxu0 0
        %2493 = vmatpush1.bf16.xpose.msra.mxu0 %v2476
        %2494 = vmatprep.subr.bf16.mxu0 0
        %2495 = vmatpush2.bf16.xpose.msra.mxu0 0
        %2496 = vmatprep.subr.bf16.mxu0 0
        %2497 = vmatpush2.bf16.xpose.msra.mxu0 0
        %2498 = vmatprep.subr.bf16.mxu0 0
        %2499 = vmatpush2.bf16.xpose.msra.mxu0 0
        %2500 = vmatprep.subr.bf16.mxu0 0
        %2501 = vmatpush2.bf16.xpose.msra.mxu0 0
        %2502 = vmatprep.subr.bf16.mxu0 0
        %2503 = vmatpush2.bf16.xpose.msra.mxu0 0
        %2504 = vmatprep.subr.bf16.mxu0 0
        %2505 = vmatpush2.bf16.xpose.msra.mxu0 0
        %2506 = vmatprep.subr.bf16.mxu0 0
        %2507 = vmatpush2.bf16.xpose.msra.mxu0 0
        %2508 = vmatprep.subr.bf16.mxu0 0
        %2509 = vmatpush2.bf16.xpose.msra.mxu0 0
        %2510 = vmatprep.mubr.bf16.mxu0 0
        %2511 = vmatmul.mubr.bf16.gmra.mxu0 %v2473
        %v2512 = vpop.f32.mrf.mxu0
        %v2513 = vadd.f32 0.0, %v2512
        %v2514 = vpop.f32.mrf.mxu0
        %v2515 = vpop.f32.mrf.mxu0
        %v2516 = vadd.f32 0.0, %v2515
        %v2517 = vpop.f32.mrf.mxu0
        %2518 = vdwg.mxu0
        %v2519 = vsel %vm2329, %v2513, -1e+30
        %v2520 = vsel %vm2330, %v2516, -1e+30
        %v2521 = vsel %vm2381, %v2519, -inf
        %2522 = vmax.xlane.f32.xlu0 %v2521
        %v2523 = vpop.xlane.xlu0 %2522
        %v2524 = vsel %vm2381, %v2520, -inf
        %2525 = vmax.xlane.f32.xlu0 %v2524
        %v2526 = vpop.xlane.xlu0 %2525
        %v2527 = vsub.f32 %v2519, %v2523
        %v2528 = vsub.f32 %v2520, %v2526
        %v2529 = vmul.f32 %v2527, 1.442695
        %v2530 = vpow.pop %v2529
        %v2531 = vmul.f32 %v2528, 1.442695
        %v2532 = vpow.pop %v2531
        %v2533 = vsel %vm2381, %v2530, 0.0
        %2534 = vadd.xlane.f32.xlu0 %v2533
        %v2535 = vpop.xlane.xlu0 %2534
        %v2536 = vsel %vm2381, %v2532, 0.0
        %2537 = vadd.xlane.f32.xlu0 %v2536
        %v2538 = vpop.xlane.xlu0 %2537
        %v2539 = vrcp.pop %v2535
        %v2540 = vrcp.pop %v2538
        %v2541 = vmul.f32 %v2530, %v2539
        %v2542 = vmul.f32 %v2532, %v2540
        %v2543 = vpack.c.bf16 %v2542, %v2541
        %2545 = vrot.lane.b32.xlu0 %v1667, 64
        %v2546 = vpop.permute.xlu0 %2545
        %v2549 = vsel %vm2381, %v2543, 0
        %2551 = vmatprep.subr.bf16.mxu0 0
        %2552 = vmatpush1.bf16.msra.mxu0 0
        %2553 = vmatprep.subr.bf16.mxu0 0
        %2554 = vmatpush1.bf16.msra.mxu0 0
        %2555 = vmatprep.subr.bf16.mxu0 0
        %2556 = vmatpush1.bf16.msra.mxu0 0
        %2557 = vmatprep.subr.bf16.mxu0 0
        %2558 = vmatpush1.bf16.msra.mxu0 0
        %2559 = vmatprep.subr.bf16.mxu0 0
        %2560 = vmatpush1.bf16.msra.mxu0 0
        %2561 = vmatprep.subr.bf16.mxu0 0
        %2562 = vmatpush1.bf16.msra.mxu0 0
        %2563 = vmatprep.subr.bf16.mxu0 0
        %2564 = vmatpush1.bf16.msra.mxu0 0
        %2565 = vmatprep.subr.bf16.mxu0 0
        %2566 = vmatpush1.bf16.msra.mxu0 %v2546
        %2567 = vmatprep.subr.bf16.mxu0 0
        %2568 = vmatpush2.bf16.msra.mxu0 0
        %2569 = vmatprep.subr.bf16.mxu0 0
        %2570 = vmatpush2.bf16.msra.mxu0 0
        %2571 = vmatprep.subr.bf16.mxu0 0
        %2572 = vmatpush2.bf16.msra.mxu0 0
        %2573 = vmatprep.subr.bf16.mxu0 0
        %2574 = vmatpush2.bf16.msra.mxu0 0
        %2575 = vmatprep.subr.bf16.mxu0 0
        %2576 = vmatpush2.bf16.msra.mxu0 0
        %2577 = vmatprep.subr.bf16.mxu0 0
        %2578 = vmatpush2.bf16.msra.mxu0 0
        %2579 = vmatprep.subr.bf16.mxu0 0
        %2580 = vmatpush2.bf16.msra.mxu0 0
        %2581 = vmatprep.subr.bf16.mxu0 0
        %2582 = vmatpush2.bf16.msra.mxu0 0
        %2583 = vmatprep.mubr.bf16.mxu0 0
        %2584 = vmatmul.mubr.bf16.gmra.mxu0 %v2549
        %v2585 = vpop.f32.mrf.mxu0
        %v2586 = vadd.f32 0.0, %v2585
        %v2587 = vpop.f32.mrf.mxu0
        %v2588 = vpop.f32.mrf.mxu0
        %v2589 = vadd.f32 0.0, %v2588
        %v2590 = vpop.f32.mrf.mxu0
        %2591 = vdwg.mxu0
        %v2592 = vpack.c.bf16 %v2589, %v2586
        %v2593 = vld [vmem:[#allocation10 + $0x60] sm:$0xff]
        %v2594 = vld [vmem:[#allocation10 + $0x68] sm:$0xf]
        %v2595 = vld [vmem:[#allocation10 + $0x6c] sm:$0xff]
        %v2596 = vld [vmem:[#allocation10 + $0x74] sm:$0xf]
        %v2597 = vld [vmem:[#allocation10 + $0x78] sm:$0xff]
        %v2598 = vld [vmem:[#allocation10 + $0x80] sm:$0xf]
        %v2599 = vld [vmem:[#allocation10 + $0x84] sm:$0xff]
        %v2600 = vld [vmem:[#allocation10 + $0x8c] sm:$0xf]
        %v2601 = vld [vmem:[#allocation10 + $0x90] sm:$0xff]
        %v2602 = vld [vmem:[#allocation10 + $0x98] sm:$0xf]
        %v2603 = vld [vmem:[#allocation10 + $0x9c] sm:$0xff]
        %v2604 = vld [vmem:[#allocation10 + $0xa4] sm:$0xf]
        %v2605 = vld [vmem:[#allocation10 + $0xa8] sm:$0xff]
        %v2606 = vld [vmem:[#allocation10 + $0xb0] sm:$0xf]
        %v2607 = vld [vmem:[#allocation10 + $0xb4] sm:$0xff]
        %v2608 = vld [vmem:[#allocation10 + $0xbc] sm:$0xf]
        %v2625 = vunpack.c.l.b16 %v2593
        %v2626 = vunpack.c.h.b16 %v2593
        %v2627 = vunpack.c.l.b16 %v2594
        %v2628 = vunpack.c.l.b16 %v2595
        %v2629 = vunpack.c.h.b16 %v2595
        %v2630 = vunpack.c.l.b16 %v2596
        %v2631 = vunpack.c.l.b16 %v2597
        %v2632 = vunpack.c.h.b16 %v2597
        %v2633 = vunpack.c.l.b16 %v2598
        %v2634 = vunpack.c.l.b16 %v2599
        %v2635 = vunpack.c.h.b16 %v2599
        %v2636 = vunpack.c.l.b16 %v2600
        %v2637 = vunpack.c.l.b16 %v2601
        %v2638 = vunpack.c.h.b16 %v2601
        %v2639 = vunpack.c.l.b16 %v2602
        %v2640 = vunpack.c.l.b16 %v2603
        %v2641 = vunpack.c.h.b16 %v2603
        %v2642 = vunpack.c.l.b16 %v2604
        %v2643 = vunpack.c.l.b16 %v2605
        %v2644 = vunpack.c.h.b16 %v2605
        %v2645 = vunpack.c.l.b16 %v2606
        %v2646 = vunpack.c.l.b16 %v2607
        %v2647 = vunpack.c.h.b16 %v2607
        %v2648 = vunpack.c.l.b16 %v2608
        %v2649 = vpack.c.b16 %v2628, %v2625
        %v2650 = vpack.c.b16 %v2629, %v2626
        %v2651 = vpack.c.b16 %v2630, %v2627
        %v2652 = vpack.c.b16 %v2634, %v2631
        %v2653 = vpack.c.b16 %v2635, %v2632
        %v2654 = vpack.c.b16 %v2636, %v2633
        %v2655 = vpack.c.b16 %v2640, %v2637
        %v2656 = vpack.c.b16 %v2641, %v2638
        %v2657 = vpack.c.b16 %v2642, %v2639
        %v2658 = vpack.c.b16 %v2646, %v2643
        %v2659 = vpack.c.b16 %v2647, %v2644
        %v2660 = vpack.c.b16 %v2648, %v2645
        %v2674 = vsel %vm2331, %v2592, 0
        %2676 = vmatprep.subr.bf16.mxu0 0
        %2677 = vmatpush1.bf16.msra.mxu0 0
        %2678 = vmatprep.subr.bf16.mxu0 0
        %2679 = vmatpush1.bf16.msra.mxu0 0
        %2680 = vmatprep.subr.bf16.mxu0 0
        %2681 = vmatpush1.bf16.msra.mxu0 0
        %2682 = vmatprep.subr.bf16.mxu0 0
        %2683 = vmatpush1.bf16.msra.mxu0 0
        %2684 = vmatprep.subr.bf16.mxu0 %v2659
        %2685 = vmatpush1.bf16.msra.mxu0 %v2658
        %2686 = vmatprep.subr.bf16.mxu0 %v2656
        %2687 = vmatpush1.bf16.msra.mxu0 %v2655
        %2688 = vmatprep.subr.bf16.mxu0 %v2653
        %2689 = vmatpush1.bf16.msra.mxu0 %v2652
        %2690 = vmatprep.subr.bf16.mxu0 %v2650
        %2691 = vmatpush1.bf16.msra.mxu0 %v2649
        %2692 = vmatprep.subr.bf16.mxu0 0
        %2693 = vmatpush2.bf16.msra.mxu0 0
        %2694 = vmatprep.subr.bf16.mxu0 0
        %2695 = vmatpush2.bf16.msra.mxu0 0
        %2696 = vmatprep.subr.bf16.mxu0 0
        %2697 = vmatpush2.bf16.msra.mxu0 0
        %2698 = vmatprep.subr.bf16.mxu0 0
        %2699 = vmatpush2.bf16.msra.mxu0 0
        %2700 = vmatprep.subr.bf16.mxu0 0
        %2701 = vmatpush2.bf16.msra.mxu0 0
        %2702 = vmatprep.subr.bf16.mxu0 0
        %2703 = vmatpush2.bf16.msra.mxu0 0
        %2704 = vmatprep.subr.bf16.mxu0 0
        %2705 = vmatpush2.bf16.msra.mxu0 0
        %2706 = vmatprep.subr.bf16.mxu0 0
        %2707 = vmatpush2.bf16.msra.mxu0 0
        %2708 = vmatprep.mubr.bf16.mxu0 0
        %2709 = vmatmul.mubr.bf16.gmra.mxu0 %v2674
        %v2710 = vpop.f32.mrf.mxu0
        %v2711 = vadd.f32 0.0, %v2710
        %v2712 = vpop.f32.mrf.mxu0
        %v2713 = vadd.f32 0.0, %v2712
        %v2714 = vpop.f32.mrf.mxu0
        %v2715 = vadd.f32 0.0, %v2714
        %v2716 = vpop.f32.mrf.mxu0
        %v2717 = vadd.f32 0.0, %v2716
        %2718 = vdwg.mxu0
        %2719 = vmatprep.subr.bf16.mxu0 0
        %2720 = vmatpush1.bf16.msra.mxu0 0
        %2721 = vmatprep.subr.bf16.mxu0 0
        %2722 = vmatpush1.bf16.msra.mxu0 0
        %2723 = vmatprep.subr.bf16.mxu0 0
        %2724 = vmatpush1.bf16.msra.mxu0 0
        %2725 = vmatprep.subr.bf16.mxu0 0
        %2726 = vmatpush1.bf16.msra.mxu0 0
        %2727 = vmatprep.subr.bf16.mxu0 0
        %2728 = vmatpush1.bf16.msra.mxu0 %v2660
        %2729 = vmatprep.subr.bf16.mxu0 0
        %2730 = vmatpush1.bf16.msra.mxu0 %v2657
        %2731 = vmatprep.subr.bf16.mxu0 0
        %2732 = vmatpush1.bf16.msra.mxu0 %v2654
        %2733 = vmatprep.subr.bf16.mxu0 0
        %2734 = vmatpush1.bf16.msra.mxu0 %v2651
        %2735 = vmatprep.subr.bf16.mxu0 0
        %2736 = vmatpush2.bf16.msra.mxu0 0
        %2737 = vmatprep.subr.bf16.mxu0 0
        %2738 = vmatpush2.bf16.msra.mxu0 0
        %2739 = vmatprep.subr.bf16.mxu0 0
        %2740 = vmatpush2.bf16.msra.mxu0 0
        %2741 = vmatprep.subr.bf16.mxu0 0
        %2742 = vmatpush2.bf16.msra.mxu0 0
        %2743 = vmatprep.subr.bf16.mxu0 0
        %2744 = vmatpush2.bf16.msra.mxu0 0
        %2745 = vmatprep.subr.bf16.mxu0 0
        %2746 = vmatpush2.bf16.msra.mxu0 0
        %2747 = vmatprep.subr.bf16.mxu0 0
        %2748 = vmatpush2.bf16.msra.mxu0 0
        %2749 = vmatprep.subr.bf16.mxu0 0
        %2750 = vmatpush2.bf16.msra.mxu0 0
        %2751 = vmatprep.mubr.bf16.mxu0 0
        %2752 = vmatmul.mubr.bf16.gmra.mxu0 %v2674
        %v2753 = vpop.f32.mrf.mxu0
        %v2754 = vadd.f32 0.0, %v2753
        %v2755 = vpop.f32.mrf.mxu0
        %v2756 = vpop.f32.mrf.mxu0
        %v2757 = vadd.f32 0.0, %v2756
        %v2758 = vpop.f32.mrf.mxu0
        %2759 = vdwg.mxu0
        %v2776 = vunpack.c.l.b16 %v2450
        %v2777 = vunpack.c.h.b16 %v2450
        %v2778 = vunpack.c.l.b16 %v2451
        %v2779 = vunpack.c.l.b16 %v2452
        %v2780 = vunpack.c.h.b16 %v2452
        %v2781 = vunpack.c.l.b16 %v2453
        %v2782 = vunpack.c.l.b16 %v2454
        %v2783 = vunpack.c.h.b16 %v2454
        %v2784 = vunpack.c.l.b16 %v2455
        %v2785 = vunpack.c.l.b16 %v2456
        %v2786 = vunpack.c.h.b16 %v2456
        %v2787 = vunpack.c.l.b16 %v2457
        %v2788 = vunpack.c.l.b16 %v2458
        %v2789 = vunpack.c.h.b16 %v2458
        %v2790 = vunpack.c.l.b16 %v2459
        %v2791 = vunpack.c.l.b16 %v2460
        %v2792 = vunpack.c.h.b16 %v2460
        %v2793 = vunpack.c.l.b16 %v2461
        %v2794 = vunpack.c.l.b16 %v2462
        %v2795 = vunpack.c.h.b16 %v2462
        %v2796 = vunpack.c.l.b16 %v2463
        %v2797 = vunpack.c.l.b16 %v2464
        %v2798 = vunpack.c.h.b16 %v2464
        %v2799 = vunpack.c.l.b16 %v2465
        %v2800 = vpack.c.b16 %v2779, %v2776
        %v2801 = vpack.c.b16 %v2780, %v2777
        %v2802 = vpack.c.b16 %v2781, %v2778
        %v2803 = vpack.c.b16 %v2785, %v2782
        %v2804 = vpack.c.b16 %v2786, %v2783
        %v2805 = vpack.c.b16 %v2787, %v2784
        %v2806 = vpack.c.b16 %v2791, %v2788
        %v2807 = vpack.c.b16 %v2792, %v2789
        %v2808 = vpack.c.b16 %v2793, %v2790
        %v2809 = vpack.c.b16 %v2797, %v2794
        %v2810 = vpack.c.b16 %v2798, %v2795
        %v2811 = vpack.c.b16 %v2799, %v2796
        %v2825 = vsel %vm2331, %v2449, 0
        %2827 = vmatprep.subr.bf16.mxu0 0
        %2828 = vmatpush1.bf16.msra.mxu0 0
        %2829 = vmatprep.subr.bf16.mxu0 0
        %2830 = vmatpush1.bf16.msra.mxu0 0
        %2831 = vmatprep.subr.bf16.mxu0 0
        %2832 = vmatpush1.bf16.msra.mxu0 0
        %2833 = vmatprep.subr.bf16.mxu0 0
        %2834 = vmatpush1.bf16.msra.mxu0 0
        %2835 = vmatprep.subr.bf16.mxu0 %v2810
        %2836 = vmatpush1.bf16.msra.mxu0 %v2809
        %2837 = vmatprep.subr.bf16.mxu0 %v2807
        %2838 = vmatpush1.bf16.msra.mxu0 %v2806
        %2839 = vmatprep.subr.bf16.mxu0 %v2804
        %2840 = vmatpush1.bf16.msra.mxu0 %v2803
        %2841 = vmatprep.subr.bf16.mxu0 %v2801
        %2842 = vmatpush1.bf16.msra.mxu0 %v2800
        %2843 = vmatprep.subr.bf16.mxu0 0
        %2844 = vmatpush2.bf16.msra.mxu0 0
        %2845 = vmatprep.subr.bf16.mxu0 0
        %2846 = vmatpush2.bf16.msra.mxu0 0
        %2847 = vmatprep.subr.bf16.mxu0 0
        %2848 = vmatpush2.bf16.msra.mxu0 0
        %2849 = vmatprep.subr.bf16.mxu0 0
        %2850 = vmatpush2.bf16.msra.mxu0 0
        %2851 = vmatprep.subr.bf16.mxu0 0
        %2852 = vmatpush2.bf16.msra.mxu0 0
        %2853 = vmatprep.subr.bf16.mxu0 0
        %2854 = vmatpush2.bf16.msra.mxu0 0
        %2855 = vmatprep.subr.bf16.mxu0 0
        %2856 = vmatpush2.bf16.msra.mxu0 0
        %2857 = vmatprep.subr.bf16.mxu0 0
        %2858 = vmatpush2.bf16.msra.mxu0 0
        %2859 = vmatprep.mubr.bf16.mxu0 0
        %2860 = vmatmul.mubr.bf16.gmra.mxu0 %v2825
        %v2861 = vpop.f32.mrf.mxu0
        %v2862 = vadd.f32 %v2711, %v2861
        %v2863 = vpop.f32.mrf.mxu0
        %v2864 = vadd.f32 %v2713, %v2863
        %v2865 = vpop.f32.mrf.mxu0
        %v2866 = vadd.f32 %v2715, %v2865
        %v2867 = vpop.f32.mrf.mxu0
        %v2868 = vadd.f32 %v2717, %v2867
        %2869 = vdwg.mxu0
        %2870 = vmatprep.subr.bf16.mxu0 0
        %2871 = vmatpush1.bf16.msra.mxu0 0
        %2872 = vmatprep.subr.bf16.mxu0 0
        %2873 = vmatpush1.bf16.msra.mxu0 0
        %2874 = vmatprep.subr.bf16.mxu0 0
        %2875 = vmatpush1.bf16.msra.mxu0 0
        %2876 = vmatprep.subr.bf16.mxu0 0
        %2877 = vmatpush1.bf16.msra.mxu0 0
        %2878 = vmatprep.subr.bf16.mxu0 0
        %2879 = vmatpush1.bf16.msra.mxu0 %v2811
        %2880 = vmatprep.subr.bf16.mxu0 0
        %2881 = vmatpush1.bf16.msra.mxu0 %v2808
        %2882 = vmatprep.subr.bf16.mxu0 0
        %2883 = vmatpush1.bf16.msra.mxu0 %v2805
        %2884 = vmatprep.subr.bf16.mxu0 0
        %2885 = vmatpush1.bf16.msra.mxu0 %v2802
        %2886 = vmatprep.subr.bf16.mxu0 0
        %2887 = vmatpush2.bf16.msra.mxu0 0
        %2888 = vmatprep.subr.bf16.mxu0 0
        %2889 = vmatpush2.bf16.msra.mxu0 0
        %2890 = vmatprep.subr.bf16.mxu0 0
        %2891 = vmatpush2.bf16.msra.mxu0 0
        %2892 = vmatprep.subr.bf16.mxu0 0
        %2893 = vmatpush2.bf16.msra.mxu0 0
        %2894 = vmatprep.subr.bf16.mxu0 0
        %2895 = vmatpush2.bf16.msra.mxu0 0
        %2896 = vmatprep.subr.bf16.mxu0 0
        %2897 = vmatpush2.bf16.msra.mxu0 0
        %2898 = vmatprep.subr.bf16.mxu0 0
        %2899 = vmatpush2.bf16.msra.mxu0 0
        %2900 = vmatprep.subr.bf16.mxu0 0
        %2901 = vmatpush2.bf16.msra.mxu0 0
        %2902 = vmatprep.mubr.bf16.mxu0 0
        %2903 = vmatmul.mubr.bf16.gmra.mxu0 %v2825
        %v2904 = vpop.f32.mrf.mxu0
        %v2905 = vadd.f32 %v2754, %v2904
        %v2906 = vpop.f32.mrf.mxu0
        %v2907 = vpop.f32.mrf.mxu0
        %v2908 = vadd.f32 %v2757, %v2907
        %v2909 = vpop.f32.mrf.mxu0
        %2910 = vdwg.mxu0
        %v2912 = vsel %vm2331, %v2319, 0
        %v2915 = vsel %vm2331, %v1017, 0
        %2917 = vmatprep.subr.bf16.mxu0 0
        %2918 = vmatpush1.bf16.xpose.msra.mxu0 0
        %2919 = vmatprep.subr.bf16.mxu0 0
        %2920 = vmatpush1.bf16.xpose.msra.mxu0 0
        %2921 = vmatprep.subr.bf16.mxu0 0
        %2922 = vmatpush1.bf16.xpose.msra.mxu0 0
        %2923 = vmatprep.subr.bf16.mxu0 0
        %2924 = vmatpush1.bf16.xpose.msra.mxu0 0
        %2925 = vmatprep.subr.bf16.mxu0 0
        %2926 = vmatpush1.bf16.xpose.msra.mxu0 0
        %2927 = vmatprep.subr.bf16.mxu0 0
        %2928 = vmatpush1.bf16.xpose.msra.mxu0 0
        %2929 = vmatprep.subr.bf16.mxu0 0
        %2930 = vmatpush1.bf16.xpose.msra.mxu0 0
        %2931 = vmatprep.subr.bf16.mxu0 0
        %2932 = vmatpush1.bf16.xpose.msra.mxu0 %v2915
        %2933 = vmatprep.subr.bf16.mxu0 0
        %2934 = vmatpush2.bf16.xpose.msra.mxu0 0
        %2935 = vmatprep.subr.bf16.mxu0 0
        %2936 = vmatpush2.bf16.xpose.msra.mxu0 0
        %2937 = vmatprep.subr.bf16.mxu0 0
        %2938 = vmatpush2.bf16.xpose.msra.mxu0 0
        %2939 = vmatprep.subr.bf16.mxu0 0
        %2940 = vmatpush2.bf16.xpose.msra.mxu0 0
        %2941 = vmatprep.subr.bf16.mxu0 0
        %2942 = vmatpush2.bf16.xpose.msra.mxu0 0
        %2943 = vmatprep.subr.bf16.mxu0 0
        %2944 = vmatpush2.bf16.xpose.msra.mxu0 0
        %2945 = vmatprep.subr.bf16.mxu0 0
        %2946 = vmatpush2.bf16.xpose.msra.mxu0 0
        %2947 = vmatprep.subr.bf16.mxu0 0
        %2948 = vmatpush2.bf16.xpose.msra.mxu0 0
        %2949 = vmatprep.mubr.bf16.mxu0 0
        %2950 = vmatmul.mubr.bf16.gmra.mxu0 %v2912
        %v2951 = vpop.f32.mrf.mxu0
        %v2952 = vadd.f32 0.0, %v2951
        %v2953 = vpop.f32.mrf.mxu0
        %v2954 = vpop.f32.mrf.mxu0
        %v2955 = vadd.f32 0.0, %v2954
        %v2956 = vpop.f32.mrf.mxu0
        %2957 = vdwg.mxu0
        %v2958 = vsel %vm2329, %v2952, -1e+30
        %v2959 = vsel %vm2330, %v2955, -1e+30
        %v2960 = vsel %vm2381, %v2958, -inf
        %2961 = vmax.xlane.f32.xlu0 %v2960
        %v2962 = vpop.xlane.xlu0 %2961
        %v2963 = vsel %vm2381, %v2959, -inf
        %2964 = vmax.xlane.f32.xlu0 %v2963
        %v2965 = vpop.xlane.xlu0 %2964
        %v2966 = vsub.f32 %v2958, %v2962
        %v2967 = vsub.f32 %v2959, %v2965
        %v2968 = vmul.f32 %v2966, 1.442695
        %v2969 = vpow.pop %v2968
        %v2970 = vmul.f32 %v2967, 1.442695
        %v2971 = vpow.pop %v2970
        %v2972 = vsel %vm2381, %v2969, 0.0
        %2973 = vadd.xlane.f32.xlu0 %v2972
        %v2974 = vpop.xlane.xlu0 %2973
        %v2975 = vsel %vm2381, %v2971, 0.0
        %2976 = vadd.xlane.f32.xlu0 %v2975
        %v2977 = vpop.xlane.xlu0 %2976
        %v2978 = vrcp.pop %v2974
        %v2979 = vrcp.pop %v2977
        %v2980 = vmul.f32 %v2969, %v2978
        %v2981 = vmul.f32 %v2971, %v2979
        %v2982 = vpack.c.bf16 %v2981, %v2980
        %v2984 = vsel %vm2381, %v2982, 0
        %2986 = vmatprep.subr.bf16.mxu0 0
        %2987 = vmatpush1.bf16.msra.mxu0 0
        %2988 = vmatprep.subr.bf16.mxu0 0
        %2989 = vmatpush1.bf16.msra.mxu0 0
        %2990 = vmatprep.subr.bf16.mxu0 0
        %2991 = vmatpush1.bf16.msra.mxu0 0
        %2992 = vmatprep.subr.bf16.mxu0 0
        %2993 = vmatpush1.bf16.msra.mxu0 0
        %2994 = vmatprep.subr.bf16.mxu0 0
        %2995 = vmatpush1.bf16.msra.mxu0 0
        %2996 = vmatprep.subr.bf16.mxu0 0
        %2997 = vmatpush1.bf16.msra.mxu0 0
        %2998 = vmatprep.subr.bf16.mxu0 0
        %2999 = vmatpush1.bf16.msra.mxu0 0
        %3000 = vmatprep.subr.bf16.mxu0 0
        %3001 = vmatpush1.bf16.msra.mxu0 %v1668
        %3002 = vmatprep.subr.bf16.mxu0 0
        %3003 = vmatpush2.bf16.msra.mxu0 0
        %3004 = vmatprep.subr.bf16.mxu0 0
        %3005 = vmatpush2.bf16.msra.mxu0 0
        %3006 = vmatprep.subr.bf16.mxu0 0
        %3007 = vmatpush2.bf16.msra.mxu0 0
        %3008 = vmatprep.subr.bf16.mxu0 0
        %3009 = vmatpush2.bf16.msra.mxu0 0
        %3010 = vmatprep.subr.bf16.mxu0 0
        %3011 = vmatpush2.bf16.msra.mxu0 0
        %3012 = vmatprep.subr.bf16.mxu0 0
        %3013 = vmatpush2.bf16.msra.mxu0 0
        %3014 = vmatprep.subr.bf16.mxu0 0
        %3015 = vmatpush2.bf16.msra.mxu0 0
        %3016 = vmatprep.subr.bf16.mxu0 0
        %3017 = vmatpush2.bf16.msra.mxu0 0
        %3018 = vmatprep.mubr.bf16.mxu0 0
        %3019 = vmatmul.mubr.bf16.gmra.mxu0 %v2984
        %v3020 = vpop.f32.mrf.mxu0
        %v3021 = vadd.f32 0.0, %v3020
        %v3022 = vpop.f32.mrf.mxu0
        %v3023 = vpop.f32.mrf.mxu0
        %v3024 = vadd.f32 0.0, %v3023
        %v3025 = vpop.f32.mrf.mxu0
        %3026 = vdwg.mxu0
        %v3027 = vpack.c.bf16 %v3024, %v3021
        %v3028 = vld [vmem:[#allocation10 + $0xc0] sm:$0xff]
        %v3029 = vld [vmem:[#allocation10 + $0xc8] sm:$0xf]
        %v3030 = vld [vmem:[#allocation10 + $0xcc] sm:$0xff]
        %v3031 = vld [vmem:[#allocation10 + $0xd4] sm:$0xf]
        %v3032 = vld [vmem:[#allocation10 + $0xd8] sm:$0xff]
        %v3033 = vld [vmem:[#allocation10 + $0xe0] sm:$0xf]
        %v3034 = vld [vmem:[#allocation10 + $0xe4] sm:$0xff]
        %v3035 = vld [vmem:[#allocation10 + $0xec] sm:$0xf]
        %v3036 = vld [vmem:[#allocation10 + $0xf0] sm:$0xff]
        %v3037 = vld [vmem:[#allocation10 + $0xf8] sm:$0xf]
        %v3038 = vld [vmem:[#allocation10 + $0xfc] sm:$0xff]
        %v3039 = vld [vmem:[#allocation10 + $0x104] sm:$0xf]
        %v3040 = vld [vmem:[#allocation10 + $0x108] sm:$0xff]
        %v3041 = vld [vmem:[#allocation10 + $0x110] sm:$0xf]
        %v3042 = vld [vmem:[#allocation10 + $0x114] sm:$0xff]
        %v3043 = vld [vmem:[#allocation10 + $0x11c] sm:$0xf]
        %v3060 = vunpack.c.l.b16 %v3028
        %v3061 = vunpack.c.h.b16 %v3028
        %v3062 = vunpack.c.l.b16 %v3029
        %v3063 = vunpack.c.l.b16 %v3030
        %v3064 = vunpack.c.h.b16 %v3030
        %v3065 = vunpack.c.l.b16 %v3031
        %v3066 = vunpack.c.l.b16 %v3032
        %v3067 = vunpack.c.h.b16 %v3032
        %v3068 = vunpack.c.l.b16 %v3033
        %v3069 = vunpack.c.l.b16 %v3034
        %v3070 = vunpack.c.h.b16 %v3034
        %v3071 = vunpack.c.l.b16 %v3035
        %v3072 = vunpack.c.l.b16 %v3036
        %v3073 = vunpack.c.h.b16 %v3036
        %v3074 = vunpack.c.l.b16 %v3037
        %v3075 = vunpack.c.l.b16 %v3038
        %v3076 = vunpack.c.h.b16 %v3038
        %v3077 = vunpack.c.l.b16 %v3039
        %v3078 = vunpack.c.l.b16 %v3040
        %v3079 = vunpack.c.h.b16 %v3040
        %v3080 = vunpack.c.l.b16 %v3041
        %v3081 = vunpack.c.l.b16 %v3042
        %v3082 = vunpack.c.h.b16 %v3042
        %v3083 = vunpack.c.l.b16 %v3043
        %v3084 = vpack.c.b16 %v3063, %v3060
        %v3085 = vpack.c.b16 %v3064, %v3061
        %v3086 = vpack.c.b16 %v3065, %v3062
        %v3087 = vpack.c.b16 %v3069, %v3066
        %v3088 = vpack.c.b16 %v3070, %v3067
        %v3089 = vpack.c.b16 %v3071, %v3068
        %v3090 = vpack.c.b16 %v3075, %v3072
        %v3091 = vpack.c.b16 %v3076, %v3073
        %v3092 = vpack.c.b16 %v3077, %v3074
        %v3093 = vpack.c.b16 %v3081, %v3078
        %v3094 = vpack.c.b16 %v3082, %v3079
        %v3095 = vpack.c.b16 %v3083, %v3080
        %v3109 = vsel %vm2331, %v3027, 0
        %3111 = vmatprep.subr.bf16.mxu0 0
        %3112 = vmatpush1.bf16.msra.mxu0 0
        %3113 = vmatprep.subr.bf16.mxu0 0
        %3114 = vmatpush1.bf16.msra.mxu0 0
        %3115 = vmatprep.subr.bf16.mxu0 0
        %3116 = vmatpush1.bf16.msra.mxu0 0
        %3117 = vmatprep.subr.bf16.mxu0 0
        %3118 = vmatpush1.bf16.msra.mxu0 0
        %3119 = vmatprep.subr.bf16.mxu0 %v3094
        %3120 = vmatpush1.bf16.msra.mxu0 %v3093
        %3121 = vmatprep.subr.bf16.mxu0 %v3091
        %3122 = vmatpush1.bf16.msra.mxu0 %v3090
        %3123 = vmatprep.subr.bf16.mxu0 %v3088
        %3124 = vmatpush1.bf16.msra.mxu0 %v3087
        %3125 = vmatprep.subr.bf16.mxu0 %v3085
        %3126 = vmatpush1.bf16.msra.mxu0 %v3084
        %3127 = vmatprep.subr.bf16.mxu0 0
        %3128 = vmatpush2.bf16.msra.mxu0 0
        %3129 = vmatprep.subr.bf16.mxu0 0
        %3130 = vmatpush2.bf16.msra.mxu0 0
        %3131 = vmatprep.subr.bf16.mxu0 0
        %3132 = vmatpush2.bf16.msra.mxu0 0
        %3133 = vmatprep.subr.bf16.mxu0 0
        %3134 = vmatpush2.bf16.msra.mxu0 0
        %3135 = vmatprep.subr.bf16.mxu0 0
        %3136 = vmatpush2.bf16.msra.mxu0 0
        %3137 = vmatprep.subr.bf16.mxu0 0
        %3138 = vmatpush2.bf16.msra.mxu0 0
        %3139 = vmatprep.subr.bf16.mxu0 0
        %3140 = vmatpush2.bf16.msra.mxu0 0
        %3141 = vmatprep.subr.bf16.mxu0 0
        %3142 = vmatpush2.bf16.msra.mxu0 0
        %3143 = vmatprep.mubr.bf16.mxu0 0
        %3144 = vmatmul.mubr.bf16.gmra.mxu0 %v3109
        %v3145 = vpop.f32.mrf.mxu0
        %v3146 = vadd.f32 0.0, %v3145
        %v3147 = vpop.f32.mrf.mxu0
        %v3148 = vadd.f32 0.0, %v3147
        %v3149 = vpop.f32.mrf.mxu0
        %v3150 = vadd.f32 0.0, %v3149
        %v3151 = vpop.f32.mrf.mxu0
        %v3152 = vadd.f32 0.0, %v3151
        %3153 = vdwg.mxu0
        %3154 = vmatprep.subr.bf16.mxu0 0
        %3155 = vmatpush1.bf16.msra.mxu0 0
        %3156 = vmatprep.subr.bf16.mxu0 0
        %3157 = vmatpush1.bf16.msra.mxu0 0
        %3158 = vmatprep.subr.bf16.mxu0 0
        %3159 = vmatpush1.bf16.msra.mxu0 0
        %3160 = vmatprep.subr.bf16.mxu0 0
        %3161 = vmatpush1.bf16.msra.mxu0 0
        %3162 = vmatprep.subr.bf16.mxu0 0
        %3163 = vmatpush1.bf16.msra.mxu0 %v3095
        %3164 = vmatprep.subr.bf16.mxu0 0
        %3165 = vmatpush1.bf16.msra.mxu0 %v3092
        %3166 = vmatprep.subr.bf16.mxu0 0
        %3167 = vmatpush1.bf16.msra.mxu0 %v3089
        %3168 = vmatprep.subr.bf16.mxu0 0
        %3169 = vmatpush1.bf16.msra.mxu0 %v3086
        %3170 = vmatprep.subr.bf16.mxu0 0
        %3171 = vmatpush2.bf16.msra.mxu0 0
        %3172 = vmatprep.subr.bf16.mxu0 0
        %3173 = vmatpush2.bf16.msra.mxu0 0
        %3174 = vmatprep.subr.bf16.mxu0 0
        %3175 = vmatpush2.bf16.msra.mxu0 0
        %3176 = vmatprep.subr.bf16.mxu0 0
        %3177 = vmatpush2.bf16.msra.mxu0 0
        %3178 = vmatprep.subr.bf16.mxu0 0
        %3179 = vmatpush2.bf16.msra.mxu0 0
        %3180 = vmatprep.subr.bf16.mxu0 0
        %3181 = vmatpush2.bf16.msra.mxu0 0
        %3182 = vmatprep.subr.bf16.mxu0 0
        %3183 = vmatpush2.bf16.msra.mxu0 0
        %3184 = vmatprep.subr.bf16.mxu0 0
        %3185 = vmatpush2.bf16.msra.mxu0 0
        %3186 = vmatprep.mubr.bf16.mxu0 0
        %3187 = vmatmul.mubr.bf16.gmra.mxu0 %v3109
        %v3188 = vpop.f32.mrf.mxu0
        %v3189 = vadd.f32 0.0, %v3188
        %v3190 = vpop.f32.mrf.mxu0
        %v3191 = vpop.f32.mrf.mxu0
        %v3192 = vadd.f32 0.0, %v3191
        %v3193 = vpop.f32.mrf.mxu0
        %3194 = vdwg.mxu0
        %v3195 = vadd.f32 %v2862, %v3146
        %v3196 = vadd.f32 %v2864, %v3148
        %v3197 = vadd.f32 %v2905, %v3189
        %v3198 = vadd.f32 %v2866, %v3150
        %v3199 = vadd.f32 %v2868, %v3152
        %v3200 = vadd.f32 %v2908, %v3192
        %3202 = vrot.lane.b32.xlu0 %v2319, 64
        %v3203 = vpop.permute.xlu0 %3202
        %3205 = vrot.lane.b32.xlu0 %v1017, 64
        %v3206 = vpop.permute.xlu0 %3205
        %v3208 = vsel %vm2331, %v3203, 0
        %v3211 = vsel %vm2331, %v3206, 0
        %3213 = vmatprep.subr.bf16.mxu0 0
        %3214 = vmatpush1.bf16.xpose.msra.mxu0 0
        %3215 = vmatprep.subr.bf16.mxu0 0
        %3216 = vmatpush1.bf16.xpose.msra.mxu0 0
        %3217 = vmatprep.subr.bf16.mxu0 0
        %3218 = vmatpush1.bf16.xpose.msra.mxu0 0
        %3219 = vmatprep.subr.bf16.mxu0 0
        %3220 = vmatpush1.bf16.xpose.msra.mxu0 0
        %3221 = vmatprep.subr.bf16.mxu0 0
        %3222 = vmatpush1.bf16.xpose.msra.mxu0 0
        %3223 = vmatprep.subr.bf16.mxu0 0
        %3224 = vmatpush1.bf16.xpose.msra.mxu0 0
        %3225 = vmatprep.subr.bf16.mxu0 0
        %3226 = vmatpush1.bf16.xpose.msra.mxu0 0
        %3227 = vmatprep.subr.bf16.mxu0 0
        %3228 = vmatpush1.bf16.xpose.msra.mxu0 %v3211
        %3229 = vmatprep.subr.bf16.mxu0 0
        %3230 = vmatpush2.bf16.xpose.msra.mxu0 0
        %3231 = vmatprep.subr.bf16.mxu0 0
        %3232 = vmatpush2.bf16.xpose.msra.mxu0 0
        %3233 = vmatprep.subr.bf16.mxu0 0
        %3234 = vmatpush2.bf16.xpose.msra.mxu0 0
        %3235 = vmatprep.subr.bf16.mxu0 0
        %3236 = vmatpush2.bf16.xpose.msra.mxu0 0
        %3237 = vmatprep.subr.bf16.mxu0 0
        %3238 = vmatpush2.bf16.xpose.msra.mxu0 0
        %3239 = vmatprep.subr.bf16.mxu0 0
        %3240 = vmatpush2.bf16.xpose.msra.mxu0 0
        %3241 = vmatprep.subr.bf16.mxu0 0
        %3242 = vmatpush2.bf16.xpose.msra.mxu0 0
        %3243 = vmatprep.subr.bf16.mxu0 0
        %3244 = vmatpush2.bf16.xpose.msra.mxu0 0
        %3245 = vmatprep.mubr.bf16.mxu0 0
        %3246 = vmatmul.mubr.bf16.gmra.mxu0 %v3208
        %v3247 = vpop.f32.mrf.mxu0
        %v3248 = vadd.f32 0.0, %v3247
        %v3249 = vpop.f32.mrf.mxu0
        %v3250 = vpop.f32.mrf.mxu0
        %v3251 = vadd.f32 0.0, %v3250
        %v3252 = vpop.f32.mrf.mxu0
        %3253 = vdwg.mxu0
        %v3254 = vsel %vm2329, %v3248, -1e+30
        %v3255 = vsel %vm2330, %v3251, -1e+30
        %v3256 = vsel %vm2381, %v3254, -inf
        %3257 = vmax.xlane.f32.xlu0 %v3256
        %v3258 = vpop.xlane.xlu0 %3257
        %v3259 = vsel %vm2381, %v3255, -inf
        %3260 = vmax.xlane.f32.xlu0 %v3259
        %v3261 = vpop.xlane.xlu0 %3260
        %v3262 = vsub.f32 %v3254, %v3258
        %v3263 = vsub.f32 %v3255, %v3261
        %v3264 = vmul.f32 %v3262, 1.442695
        %v3265 = vpow.pop %v3264
        %v3266 = vmul.f32 %v3263, 1.442695
        %v3267 = vpow.pop %v3266
        %v3268 = vsel %vm2381, %v3265, 0.0
        %3269 = vadd.xlane.f32.xlu0 %v3268
        %v3270 = vpop.xlane.xlu0 %3269
        %v3271 = vsel %vm2381, %v3267, 0.0
        %3272 = vadd.xlane.f32.xlu0 %v3271
        %v3273 = vpop.xlane.xlu0 %3272
        %v3274 = vrcp.pop %v3270
        %v3275 = vrcp.pop %v3273
        %v3276 = vmul.f32 %v3265, %v3274
        %v3277 = vmul.f32 %v3267, %v3275
        %v3278 = vpack.c.bf16 %v3277, %v3276
        %3280 = vrot.lane.b32.xlu0 %v1668, 64
        %v3281 = vpop.permute.xlu0 %3280
        %v3284 = vsel %vm2381, %v3278, 0
        %3286 = vmatprep.subr.bf16.mxu0 0
        %3287 = vmatpush1.bf16.msra.mxu0 0
        %3288 = vmatprep.subr.bf16.mxu0 0
        %3289 = vmatpush1.bf16.msra.mxu0 0
        %3290 = vmatprep.subr.bf16.mxu0 0
        %3291 = vmatpush1.bf16.msra.mxu0 0
        %3292 = vmatprep.subr.bf16.mxu0 0
        %3293 = vmatpush1.bf16.msra.mxu0 0
        %3294 = vmatprep.subr.bf16.mxu0 0
        %3295 = vmatpush1.bf16.msra.mxu0 0
        %3296 = vmatprep.subr.bf16.mxu0 0
        %3297 = vmatpush1.bf16.msra.mxu0 0
        %3298 = vmatprep.subr.bf16.mxu0 0
        %3299 = vmatpush1.bf16.msra.mxu0 0
        %3300 = vmatprep.subr.bf16.mxu0 0
        %3301 = vmatpush1.bf16.msra.mxu0 %v3281
        %3302 = vmatprep.subr.bf16.mxu0 0
        %3303 = vmatpush2.bf16.msra.mxu0 0
        %3304 = vmatprep.subr.bf16.mxu0 0
        %3305 = vmatpush2.bf16.msra.mxu0 0
        %3306 = vmatprep.subr.bf16.mxu0 0
        %3307 = vmatpush2.bf16.msra.mxu0 0
        %3308 = vmatprep.subr.bf16.mxu0 0
        %3309 = vmatpush2.bf16.msra.mxu0 0
        %3310 = vmatprep.subr.bf16.mxu0 0
        %3311 = vmatpush2.bf16.msra.mxu0 0
        %3312 = vmatprep.subr.bf16.mxu0 0
        %3313 = vmatpush2.bf16.msra.mxu0 0
        %3314 = vmatprep.subr.bf16.mxu0 0
        %3315 = vmatpush2.bf16.msra.mxu0 0
        %3316 = vmatprep.subr.bf16.mxu0 0
        %3317 = vmatpush2.bf16.msra.mxu0 0
        %3318 = vmatprep.mubr.bf16.mxu0 0
        %3319 = vmatmul.mubr.bf16.gmra.mxu0 %v3284
        %v3320 = vpop.f32.mrf.mxu0
        %v3321 = vadd.f32 0.0, %v3320
        %v3322 = vpop.f32.mrf.mxu0
        %v3323 = vpop.f32.mrf.mxu0
        %v3324 = vadd.f32 0.0, %v3323
        %v3325 = vpop.f32.mrf.mxu0
        %3326 = vdwg.mxu0
        %v3327 = vpack.c.bf16 %v3324, %v3321
        %v3328 = vld [vmem:[#allocation10 + $0x120] sm:$0xff]
        %v3329 = vld [vmem:[#allocation10 + $0x128] sm:$0xf]
        %v3330 = vld [vmem:[#allocation10 + $0x12c] sm:$0xff]
        %v3331 = vld [vmem:[#allocation10 + $0x134] sm:$0xf]
        %v3332 = vld [vmem:[#allocation10 + $0x138] sm:$0xff]
        %v3333 = vld [vmem:[#allocation10 + $0x140] sm:$0xf]
        %v3334 = vld [vmem:[#allocation10 + $0x144] sm:$0xff]
        %v3335 = vld [vmem:[#allocation10 + $0x14c] sm:$0xf]
        %v3336 = vld [vmem:[#allocation10 + $0x150] sm:$0xff]
        %v3337 = vld [vmem:[#allocation10 + $0x158] sm:$0xf]
        %v3338 = vld [vmem:[#allocation10 + $0x15c] sm:$0xff]
        %v3339 = vld [vmem:[#allocation10 + $0x164] sm:$0xf]
        %v3340 = vld [vmem:[#allocation10 + $0x168] sm:$0xff]
        %v3341 = vld [vmem:[#allocation10 + $0x170] sm:$0xf]
        %v3342 = vld [vmem:[#allocation10 + $0x174] sm:$0xff]
        %v3343 = vld [vmem:[#allocation10 + $0x17c] sm:$0xf]
        %v3360 = vunpack.c.l.b16 %v3328
        %v3361 = vunpack.c.h.b16 %v3328
        %v3362 = vunpack.c.l.b16 %v3329
        %v3363 = vunpack.c.l.b16 %v3330
        %v3364 = vunpack.c.h.b16 %v3330
        %v3365 = vunpack.c.l.b16 %v3331
        %v3366 = vunpack.c.l.b16 %v3332
        %v3367 = vunpack.c.h.b16 %v3332
        %v3368 = vunpack.c.l.b16 %v3333
        %v3369 = vunpack.c.l.b16 %v3334
        %v3370 = vunpack.c.h.b16 %v3334
        %v3371 = vunpack.c.l.b16 %v3335
        %v3372 = vunpack.c.l.b16 %v3336
        %v3373 = vunpack.c.h.b16 %v3336
        %v3374 = vunpack.c.l.b16 %v3337
        %v3375 = vunpack.c.l.b16 %v3338
        %v3376 = vunpack.c.h.b16 %v3338
        %v3377 = vunpack.c.l.b16 %v3339
        %v3378 = vunpack.c.l.b16 %v3340
        %v3379 = vunpack.c.h.b16 %v3340
        %v3380 = vunpack.c.l.b16 %v3341
        %v3381 = vunpack.c.l.b16 %v3342
        %v3382 = vunpack.c.h.b16 %v3342
        %v3383 = vunpack.c.l.b16 %v3343
        %v3384 = vpack.c.b16 %v3363, %v3360
        %v3385 = vpack.c.b16 %v3364, %v3361
        %v3386 = vpack.c.b16 %v3365, %v3362
        %v3387 = vpack.c.b16 %v3369, %v3366
        %v3388 = vpack.c.b16 %v3370, %v3367
        %v3389 = vpack.c.b16 %v3371, %v3368
        %v3390 = vpack.c.b16 %v3375, %v3372
        %v3391 = vpack.c.b16 %v3376, %v3373
        %v3392 = vpack.c.b16 %v3377, %v3374
        %v3393 = vpack.c.b16 %v3381, %v3378
        %v3394 = vpack.c.b16 %v3382, %v3379
        %v3395 = vpack.c.b16 %v3383, %v3380
        %v3409 = vsel %vm2331, %v3327, 0
        %3411 = vmatprep.subr.bf16.mxu0 0
        %3412 = vmatpush1.bf16.msra.mxu0 0
        %3413 = vmatprep.subr.bf16.mxu0 0
        %3414 = vmatpush1.bf16.msra.mxu0 0
        %3415 = vmatprep.subr.bf16.mxu0 0
        %3416 = vmatpush1.bf16.msra.mxu0 0
        %3417 = vmatprep.subr.bf16.mxu0 0
        %3418 = vmatpush1.bf16.msra.mxu0 0
        %3419 = vmatprep.subr.bf16.mxu0 %v3394
        %3420 = vmatpush1.bf16.msra.mxu0 %v3393
        %3421 = vmatprep.subr.bf16.mxu0 %v3391
        %3422 = vmatpush1.bf16.msra.mxu0 %v3390
        %3423 = vmatprep.subr.bf16.mxu0 %v3388
        %3424 = vmatpush1.bf16.msra.mxu0 %v3387
        %3425 = vmatprep.subr.bf16.mxu0 %v3385
        %3426 = vmatpush1.bf16.msra.mxu0 %v3384
        %3427 = vmatprep.subr.bf16.mxu0 0
        %3428 = vmatpush2.bf16.msra.mxu0 0
        %3429 = vmatprep.subr.bf16.mxu0 0
        %3430 = vmatpush2.bf16.msra.mxu0 0
        %3431 = vmatprep.subr.bf16.mxu0 0
        %3432 = vmatpush2.bf16.msra.mxu0 0
        %3433 = vmatprep.subr.bf16.mxu0 0
        %3434 = vmatpush2.bf16.msra.mxu0 0
        %3435 = vmatprep.subr.bf16.mxu0 0
        %3436 = vmatpush2.bf16.msra.mxu0 0
        %3437 = vmatprep.subr.bf16.mxu0 0
        %3438 = vmatpush2.bf16.msra.mxu0 0
        %3439 = vmatprep.subr.bf16.mxu0 0
        %3440 = vmatpush2.bf16.msra.mxu0 0
        %3441 = vmatprep.subr.bf16.mxu0 0
        %3442 = vmatpush2.bf16.msra.mxu0 0
        %3443 = vmatprep.mubr.bf16.mxu0 0
        %3444 = vmatmul.mubr.bf16.gmra.mxu0 %v3409
        %v3445 = vpop.f32.mrf.mxu0
        %v3446 = vadd.f32 0.0, %v3445
        %v3447 = vpop.f32.mrf.mxu0
        %v3448 = vadd.f32 0.0, %v3447
        %v3449 = vpop.f32.mrf.mxu0
        %v3450 = vadd.f32 0.0, %v3449
        %v3451 = vpop.f32.mrf.mxu0
        %v3452 = vadd.f32 0.0, %v3451
        %3453 = vdwg.mxu0
        %3454 = vmatprep.subr.bf16.mxu0 0
        %3455 = vmatpush1.bf16.msra.mxu0 0
        %3456 = vmatprep.subr.bf16.mxu0 0
        %3457 = vmatpush1.bf16.msra.mxu0 0
        %3458 = vmatprep.subr.bf16.mxu0 0
        %3459 = vmatpush1.bf16.msra.mxu0 0
        %3460 = vmatprep.subr.bf16.mxu0 0
        %3461 = vmatpush1.bf16.msra.mxu0 0
        %3462 = vmatprep.subr.bf16.mxu0 0
        %3463 = vmatpush1.bf16.msra.mxu0 %v3395
        %3464 = vmatprep.subr.bf16.mxu0 0
        %3465 = vmatpush1.bf16.msra.mxu0 %v3392
        %3466 = vmatprep.subr.bf16.mxu0 0
        %3467 = vmatpush1.bf16.msra.mxu0 %v3389
        %3468 = vmatprep.subr.bf16.mxu0 0
        %3469 = vmatpush1.bf16.msra.mxu0 %v3386
        %3470 = vmatprep.subr.bf16.mxu0 0
        %3471 = vmatpush2.bf16.msra.mxu0 0
        %3472 = vmatprep.subr.bf16.mxu0 0
        %3473 = vmatpush2.bf16.msra.mxu0 0
        %3474 = vmatprep.subr.bf16.mxu0 0
        %3475 = vmatpush2.bf16.msra.mxu0 0
        %3476 = vmatprep.subr.bf16.mxu0 0
        %3477 = vmatpush2.bf16.msra.mxu0 0
        %3478 = vmatprep.subr.bf16.mxu0 0
        %3479 = vmatpush2.bf16.msra.mxu0 0
        %3480 = vmatprep.subr.bf16.mxu0 0
        %3481 = vmatpush2.bf16.msra.mxu0 0
        %3482 = vmatprep.subr.bf16.mxu0 0
        %3483 = vmatpush2.bf16.msra.mxu0 0
        %3484 = vmatprep.subr.bf16.mxu0 0
        %3485 = vmatpush2.bf16.msra.mxu0 0
        %3486 = vmatprep.mubr.bf16.mxu0 0
        %3487 = vmatmul.mubr.bf16.gmra.mxu0 %v3409
        %v3488 = vpop.f32.mrf.mxu0
        %v3489 = vadd.f32 0.0, %v3488
        %v3490 = vpop.f32.mrf.mxu0
        %v3491 = vpop.f32.mrf.mxu0
        %v3492 = vadd.f32 0.0, %v3491
        %v3493 = vpop.f32.mrf.mxu0
        %3494 = vdwg.mxu0
        %v3495 = vadd.f32 %v3195, %v3446
        %v3496 = vadd.f32 %v3196, %v3448
        %v3497 = vadd.f32 %v3197, %v3489
        %v3498 = vadd.f32 %v3198, %v3450
        %v3499 = vadd.f32 %v3199, %v3452
        %v3500 = vadd.f32 %v3200, %v3492
        %v3502 = vsel %vm2331, %v2320, 0
        %v3505 = vsel %vm2331, %v1018, 0
        %3507 = vmatprep.subr.bf16.mxu0 0
        %3508 = vmatpush1.bf16.xpose.msra.mxu0 0
        %3509 = vmatprep.subr.bf16.mxu0 0
        %3510 = vmatpush1.bf16.xpose.msra.mxu0 0
        %3511 = vmatprep.subr.bf16.mxu0 0
        %3512 = vmatpush1.bf16.xpose.msra.mxu0 0
        %3513 = vmatprep.subr.bf16.mxu0 0
        %3514 = vmatpush1.bf16.xpose.msra.mxu0 0
        %3515 = vmatprep.subr.bf16.mxu0 0
        %3516 = vmatpush1.bf16.xpose.msra.mxu0 0
        %3517 = vmatprep.subr.bf16.mxu0 0
        %3518 = vmatpush1.bf16.xpose.msra.mxu0 0
        %3519 = vmatprep.subr.bf16.mxu0 0
        %3520 = vmatpush1.bf16.xpose.msra.mxu0 0
        %3521 = vmatprep.subr.bf16.mxu0 0
        %3522 = vmatpush1.bf16.xpose.msra.mxu0 %v3505
        %3523 = vmatprep.subr.bf16.mxu0 0
        %3524 = vmatpush2.bf16.xpose.msra.mxu0 0
        %3525 = vmatprep.subr.bf16.mxu0 0
        %3526 = vmatpush2.bf16.xpose.msra.mxu0 0
        %3527 = vmatprep.subr.bf16.mxu0 0
        %3528 = vmatpush2.bf16.xpose.msra.mxu0 0
        %3529 = vmatprep.subr.bf16.mxu0 0
        %3530 = vmatpush2.bf16.xpose.msra.mxu0 0
        %3531 = vmatprep.subr.bf16.mxu0 0
        %3532 = vmatpush2.bf16.xpose.msra.mxu0 0
        %3533 = vmatprep.subr.bf16.mxu0 0
        %3534 = vmatpush2.bf16.xpose.msra.mxu0 0
        %3535 = vmatprep.subr.bf16.mxu0 0
        %3536 = vmatpush2.bf16.xpose.msra.mxu0 0
        %3537 = vmatprep.subr.bf16.mxu0 0
        %3538 = vmatpush2.bf16.xpose.msra.mxu0 0
        %3539 = vmatprep.mubr.bf16.mxu0 0
        %3540 = vmatmul.mubr.bf16.gmra.mxu0 %v3502
        %v3541 = vpop.f32.mrf.mxu0
        %v3542 = vadd.f32 0.0, %v3541
        %v3543 = vpop.f32.mrf.mxu0
        %v3544 = vpop.f32.mrf.mxu0
        %v3545 = vadd.f32 0.0, %v3544
        %v3546 = vpop.f32.mrf.mxu0
        %3547 = vdwg.mxu0
        %v3548 = vsel %vm2329, %v3542, -1e+30
        %v3549 = vsel %vm2330, %v3545, -1e+30
        %v3550 = vsel %vm2381, %v3548, -inf
        %3551 = vmax.xlane.f32.xlu0 %v3550
        %v3552 = vpop.xlane.xlu0 %3551
        %v3553 = vsel %vm2381, %v3549, -inf
        %3554 = vmax.xlane.f32.xlu0 %v3553
        %v3555 = vpop.xlane.xlu0 %3554
        %v3556 = vsub.f32 %v3548, %v3552
        %v3557 = vsub.f32 %v3549, %v3555
        %v3558 = vmul.f32 %v3556, 1.442695
        %v3559 = vpow.pop %v3558
        %v3560 = vmul.f32 %v3557, 1.442695
        %v3561 = vpow.pop %v3560
        %v3562 = vsel %vm2381, %v3559, 0.0
        %3563 = vadd.xlane.f32.xlu0 %v3562
        %v3564 = vpop.xlane.xlu0 %3563
        %v3565 = vsel %vm2381, %v3561, 0.0
        %3566 = vadd.xlane.f32.xlu0 %v3565
        %v3567 = vpop.xlane.xlu0 %3566
        %v3568 = vrcp.pop %v3564
        %v3569 = vrcp.pop %v3567
        %v3570 = vmul.f32 %v3559, %v3568
        %v3571 = vmul.f32 %v3561, %v3569
        %v3572 = vpack.c.bf16 %v3571, %v3570
        %v3574 = vsel %vm2381, %v3572, 0
        %3576 = vmatprep.subr.bf16.mxu0 0
        %3577 = vmatpush1.bf16.msra.mxu0 0
        %3578 = vmatprep.subr.bf16.mxu0 0
        %3579 = vmatpush1.bf16.msra.mxu0 0
        %3580 = vmatprep.subr.bf16.mxu0 0
        %3581 = vmatpush1.bf16.msra.mxu0 0
        %3582 = vmatprep.subr.bf16.mxu0 0
        %3583 = vmatpush1.bf16.msra.mxu0 0
        %3584 = vmatprep.subr.bf16.mxu0 0
        %3585 = vmatpush1.bf16.msra.mxu0 0
        %3586 = vmatprep.subr.bf16.mxu0 0
        %3587 = vmatpush1.bf16.msra.mxu0 0
        %3588 = vmatprep.subr.bf16.mxu0 0
        %3589 = vmatpush1.bf16.msra.mxu0 0
        %3590 = vmatprep.subr.bf16.mxu0 0
        %3591 = vmatpush1.bf16.msra.mxu0 %v1669
        %3592 = vmatprep.subr.bf16.mxu0 0
        %3593 = vmatpush2.bf16.msra.mxu0 0
        %3594 = vmatprep.subr.bf16.mxu0 0
        %3595 = vmatpush2.bf16.msra.mxu0 0
        %3596 = vmatprep.subr.bf16.mxu0 0
        %3597 = vmatpush2.bf16.msra.mxu0 0
        %3598 = vmatprep.subr.bf16.mxu0 0
        %3599 = vmatpush2.bf16.msra.mxu0 0
        %3600 = vmatprep.subr.bf16.mxu0 0
        %3601 = vmatpush2.bf16.msra.mxu0 0
        %3602 = vmatprep.subr.bf16.mxu0 0
        %3603 = vmatpush2.bf16.msra.mxu0 0
        %3604 = vmatprep.subr.bf16.mxu0 0
        %3605 = vmatpush2.bf16.msra.mxu0 0
        %3606 = vmatprep.subr.bf16.mxu0 0
        %3607 = vmatpush2.bf16.msra.mxu0 0
        %3608 = vmatprep.mubr.bf16.mxu0 0
        %3609 = vmatmul.mubr.bf16.gmra.mxu0 %v3574
        %v3610 = vpop.f32.mrf.mxu0
        %v3611 = vadd.f32 0.0, %v3610
        %v3612 = vpop.f32.mrf.mxu0
        %v3613 = vpop.f32.mrf.mxu0
        %v3614 = vadd.f32 0.0, %v3613
        %v3615 = vpop.f32.mrf.mxu0
        %3616 = vdwg.mxu0
        %v3617 = vpack.c.bf16 %v3614, %v3611
        %v3618 = vld [vmem:[#allocation10 + $0x180] sm:$0xff]
        %v3619 = vld [vmem:[#allocation10 + $0x188] sm:$0xf]
        %v3620 = vld [vmem:[#allocation10 + $0x18c] sm:$0xff]
        %v3621 = vld [vmem:[#allocation10 + $0x194] sm:$0xf]
        %v3622 = vld [vmem:[#allocation10 + $0x198] sm:$0xff]
        %v3623 = vld [vmem:[#allocation10 + $0x1a0] sm:$0xf]
        %v3624 = vld [vmem:[#allocation10 + $0x1a4] sm:$0xff]
        %v3625 = vld [vmem:[#allocation10 + $0x1ac] sm:$0xf]
        %v3626 = vld [vmem:[#allocation10 + $0x1b0] sm:$0xff]
        %v3627 = vld [vmem:[#allocation10 + $0x1b8] sm:$0xf]
        %v3628 = vld [vmem:[#allocation10 + $0x1bc] sm:$0xff]
        %v3629 = vld [vmem:[#allocation10 + $0x1c4] sm:$0xf]
        %v3630 = vld [vmem:[#allocation10 + $0x1c8] sm:$0xff]
        %v3631 = vld [vmem:[#allocation10 + $0x1d0] sm:$0xf]
        %v3632 = vld [vmem:[#allocation10 + $0x1d4] sm:$0xff]
        %v3633 = vld [vmem:[#allocation10 + $0x1dc] sm:$0xf]
        %v3650 = vunpack.c.l.b16 %v3618
        %v3651 = vunpack.c.h.b16 %v3618
        %v3652 = vunpack.c.l.b16 %v3619
        %v3653 = vunpack.c.l.b16 %v3620
        %v3654 = vunpack.c.h.b16 %v3620
        %v3655 = vunpack.c.l.b16 %v3621
        %v3656 = vunpack.c.l.b16 %v3622
        %v3657 = vunpack.c.h.b16 %v3622
        %v3658 = vunpack.c.l.b16 %v3623
        %v3659 = vunpack.c.l.b16 %v3624
        %v3660 = vunpack.c.h.b16 %v3624
        %v3661 = vunpack.c.l.b16 %v3625
        %v3662 = vunpack.c.l.b16 %v3626
        %v3663 = vunpack.c.h.b16 %v3626
        %v3664 = vunpack.c.l.b16 %v3627
        %v3665 = vunpack.c.l.b16 %v3628
        %v3666 = vunpack.c.h.b16 %v3628
        %v3667 = vunpack.c.l.b16 %v3629
        %v3668 = vunpack.c.l.b16 %v3630
        %v3669 = vunpack.c.h.b16 %v3630
        %v3670 = vunpack.c.l.b16 %v3631
        %v3671 = vunpack.c.l.b16 %v3632
        %v3672 = vunpack.c.h.b16 %v3632
        %v3673 = vunpack.c.l.b16 %v3633
        %v3674 = vpack.c.b16 %v3653, %v3650
        %v3675 = vpack.c.b16 %v3654, %v3651
        %v3676 = vpack.c.b16 %v3655, %v3652
        %v3677 = vpack.c.b16 %v3659, %v3656
        %v3678 = vpack.c.b16 %v3660, %v3657
        %v3679 = vpack.c.b16 %v3661, %v3658
        %v3680 = vpack.c.b16 %v3665, %v3662
        %v3681 = vpack.c.b16 %v3666, %v3663
        %v3682 = vpack.c.b16 %v3667, %v3664
        %v3683 = vpack.c.b16 %v3671, %v3668
        %v3684 = vpack.c.b16 %v3672, %v3669
        %v3685 = vpack.c.b16 %v3673, %v3670
        %v3699 = vsel %vm2331, %v3617, 0
        %3701 = vmatprep.subr.bf16.mxu0 0
        %3702 = vmatpush1.bf16.msra.mxu0 0
        %3703 = vmatprep.subr.bf16.mxu0 0
        %3704 = vmatpush1.bf16.msra.mxu0 0
        %3705 = vmatprep.subr.bf16.mxu0 0
        %3706 = vmatpush1.bf16.msra.mxu0 0
        %3707 = vmatprep.subr.bf16.mxu0 0
        %3708 = vmatpush1.bf16.msra.mxu0 0
        %3709 = vmatprep.subr.bf16.mxu0 %v3684
        %3710 = vmatpush1.bf16.msra.mxu0 %v3683
        %3711 = vmatprep.subr.bf16.mxu0 %v3681
        %3712 = vmatpush1.bf16.msra.mxu0 %v3680
        %3713 = vmatprep.subr.bf16.mxu0 %v3678
        %3714 = vmatpush1.bf16.msra.mxu0 %v3677
        %3715 = vmatprep.subr.bf16.mxu0 %v3675
        %3716 = vmatpush1.bf16.msra.mxu0 %v3674
        %3717 = vmatprep.subr.bf16.mxu0 0
        %3718 = vmatpush2.bf16.msra.mxu0 0
        %3719 = vmatprep.subr.bf16.mxu0 0
        %3720 = vmatpush2.bf16.msra.mxu0 0
        %3721 = vmatprep.subr.bf16.mxu0 0
        %3722 = vmatpush2.bf16.msra.mxu0 0
        %3723 = vmatprep.subr.bf16.mxu0 0
        %3724 = vmatpush2.bf16.msra.mxu0 0
        %3725 = vmatprep.subr.bf16.mxu0 0
        %3726 = vmatpush2.bf16.msra.mxu0 0
        %3727 = vmatprep.subr.bf16.mxu0 0
        %3728 = vmatpush2.bf16.msra.mxu0 0
        %3729 = vmatprep.subr.bf16.mxu0 0
        %3730 = vmatpush2.bf16.msra.mxu0 0
        %3731 = vmatprep.subr.bf16.mxu0 0
        %3732 = vmatpush2.bf16.msra.mxu0 0
        %3733 = vmatprep.mubr.bf16.mxu0 0
        %3734 = vmatmul.mubr.bf16.gmra.mxu0 %v3699
        %v3735 = vpop.f32.mrf.mxu0
        %v3736 = vadd.f32 0.0, %v3735
        %v3737 = vpop.f32.mrf.mxu0
        %v3738 = vadd.f32 0.0, %v3737
        %v3739 = vpop.f32.mrf.mxu0
        %v3740 = vadd.f32 0.0, %v3739
        %v3741 = vpop.f32.mrf.mxu0
        %v3742 = vadd.f32 0.0, %v3741
        %3743 = vdwg.mxu0
        %3744 = vmatprep.subr.bf16.mxu0 0
        %3745 = vmatpush1.bf16.msra.mxu0 0
        %3746 = vmatprep.subr.bf16.mxu0 0
        %3747 = vmatpush1.bf16.msra.mxu0 0
        %3748 = vmatprep.subr.bf16.mxu0 0
        %3749 = vmatpush1.bf16.msra.mxu0 0
        %3750 = vmatprep.subr.bf16.mxu0 0
        %3751 = vmatpush1.bf16.msra.mxu0 0
        %3752 = vmatprep.subr.bf16.mxu0 0
        %3753 = vmatpush1.bf16.msra.mxu0 %v3685
        %3754 = vmatprep.subr.bf16.mxu0 0
        %3755 = vmatpush1.bf16.msra.mxu0 %v3682
        %3756 = vmatprep.subr.bf16.mxu0 0
        %3757 = vmatpush1.bf16.msra.mxu0 %v3679
        %3758 = vmatprep.subr.bf16.mxu0 0
        %3759 = vmatpush1.bf16.msra.mxu0 %v3676
        %3760 = vmatprep.subr.bf16.mxu0 0
        %3761 = vmatpush2.bf16.msra.mxu0 0
        %3762 = vmatprep.subr.bf16.mxu0 0
        %3763 = vmatpush2.bf16.msra.mxu0 0
        %3764 = vmatprep.subr.bf16.mxu0 0
        %3765 = vmatpush2.bf16.msra.mxu0 0
        %3766 = vmatprep.subr.bf16.mxu0 0
        %3767 = vmatpush2.bf16.msra.mxu0 0
        %3768 = vmatprep.subr.bf16.mxu0 0
        %3769 = vmatpush2.bf16.msra.mxu0 0
        %3770 = vmatprep.subr.bf16.mxu0 0
        %3771 = vmatpush2.bf16.msra.mxu0 0
        %3772 = vmatprep.subr.bf16.mxu0 0
        %3773 = vmatpush2.bf16.msra.mxu0 0
        %3774 = vmatprep.subr.bf16.mxu0 0
        %3775 = vmatpush2.bf16.msra.mxu0 0
        %3776 = vmatprep.mubr.bf16.mxu0 0
        %3777 = vmatmul.mubr.bf16.gmra.mxu0 %v3699
        %v3778 = vpop.f32.mrf.mxu0
        %v3779 = vadd.f32 0.0, %v3778
        %v3780 = vpop.f32.mrf.mxu0
        %v3781 = vpop.f32.mrf.mxu0
        %v3782 = vadd.f32 0.0, %v3781
        %v3783 = vpop.f32.mrf.mxu0
        %3784 = vdwg.mxu0
        %v3785 = vadd.f32 %v3495, %v3736
        %v3786 = vadd.f32 %v3496, %v3738
        %v3787 = vadd.f32 %v3497, %v3779
        %v3788 = vadd.f32 %v3498, %v3740
        %v3789 = vadd.f32 %v3499, %v3742
        %v3790 = vadd.f32 %v3500, %v3782
        %3792 = vrot.lane.b32.xlu0 %v2320, 64
        %v3793 = vpop.permute.xlu0 %3792
        %3795 = vrot.lane.b32.xlu0 %v1018, 64
        %v3796 = vpop.permute.xlu0 %3795
        %v3798 = vsel %vm2331, %v3793, 0
        %v3801 = vsel %vm2331, %v3796, 0
        %3803 = vmatprep.subr.bf16.mxu0 0
        %3804 = vmatpush1.bf16.xpose.msra.mxu0 0
        %3805 = vmatprep.subr.bf16.mxu0 0
        %3806 = vmatpush1.bf16.xpose.msra.mxu0 0
        %3807 = vmatprep.subr.bf16.mxu0 0
        %3808 = vmatpush1.bf16.xpose.msra.mxu0 0
        %3809 = vmatprep.subr.bf16.mxu0 0
        %3810 = vmatpush1.bf16.xpose.msra.mxu0 0
        %3811 = vmatprep.subr.bf16.mxu0 0
        %3812 = vmatpush1.bf16.xpose.msra.mxu0 0
        %3813 = vmatprep.subr.bf16.mxu0 0
        %3814 = vmatpush1.bf16.xpose.msra.mxu0 0
        %3815 = vmatprep.subr.bf16.mxu0 0
        %3816 = vmatpush1.bf16.xpose.msra.mxu0 0
        %3817 = vmatprep.subr.bf16.mxu0 0
        %3818 = vmatpush1.bf16.xpose.msra.mxu0 %v3801
        %3819 = vmatprep.subr.bf16.mxu0 0
        %3820 = vmatpush2.bf16.xpose.msra.mxu0 0
        %3821 = vmatprep.subr.bf16.mxu0 0
        %3822 = vmatpush2.bf16.xpose.msra.mxu0 0
        %3823 = vmatprep.subr.bf16.mxu0 0
        %3824 = vmatpush2.bf16.xpose.msra.mxu0 0
        %3825 = vmatprep.subr.bf16.mxu0 0
        %3826 = vmatpush2.bf16.xpose.msra.mxu0 0
        %3827 = vmatprep.subr.bf16.mxu0 0
        %3828 = vmatpush2.bf16.xpose.msra.mxu0 0
        %3829 = vmatprep.subr.bf16.mxu0 0
        %3830 = vmatpush2.bf16.xpose.msra.mxu0 0
        %3831 = vmatprep.subr.bf16.mxu0 0
        %3832 = vmatpush2.bf16.xpose.msra.mxu0 0
        %3833 = vmatprep.subr.bf16.mxu0 0
        %3834 = vmatpush2.bf16.xpose.msra.mxu0 0
        %3835 = vmatprep.mubr.bf16.mxu0 0
        %3836 = vmatmul.mubr.bf16.gmra.mxu0 %v3798
        %v3837 = vpop.f32.mrf.mxu0
        %v3838 = vadd.f32 0.0, %v3837
        %v3839 = vpop.f32.mrf.mxu0
        %v3840 = vpop.f32.mrf.mxu0
        %v3841 = vadd.f32 0.0, %v3840
        %v3842 = vpop.f32.mrf.mxu0
        %3843 = vdwg.mxu0
        %v3844 = vsel %vm2329, %v3838, -1e+30
        %v3845 = vsel %vm2330, %v3841, -1e+30
        %v3846 = vsel %vm2381, %v3844, -inf
        %3847 = vmax.xlane.f32.xlu0 %v3846
        %v3848 = vpop.xlane.xlu0 %3847
        %v3849 = vsel %vm2381, %v3845, -inf
        %3850 = vmax.xlane.f32.xlu0 %v3849
        %v3851 = vpop.xlane.xlu0 %3850
        %v3852 = vsub.f32 %v3844, %v3848
        %v3853 = vsub.f32 %v3845, %v3851
        %v3854 = vmul.f32 %v3852, 1.442695
        %v3855 = vpow.pop %v3854
        %v3856 = vmul.f32 %v3853, 1.442695
        %v3857 = vpow.pop %v3856
        %v3858 = vsel %vm2381, %v3855, 0.0
        %3859 = vadd.xlane.f32.xlu0 %v3858
        %v3860 = vpop.xlane.xlu0 %3859
        %v3861 = vsel %vm2381, %v3857, 0.0
        %3862 = vadd.xlane.f32.xlu0 %v3861
        %v3863 = vpop.xlane.xlu0 %3862
        %v3864 = vrcp.pop %v3860
        %v3865 = vrcp.pop %v3863
        %v3866 = vmul.f32 %v3855, %v3864
        %v3867 = vmul.f32 %v3857, %v3865
        %v3868 = vpack.c.bf16 %v3867, %v3866
        %3870 = vrot.lane.b32.xlu0 %v1669, 64
        %v3871 = vpop.permute.xlu0 %3870
        %v3874 = vsel %vm2381, %v3868, 0
        %3876 = vmatprep.subr.bf16.mxu0 0
        %3877 = vmatpush1.bf16.msra.mxu0 0
        %3878 = vmatprep.subr.bf16.mxu0 0
        %3879 = vmatpush1.bf16.msra.mxu0 0
        %3880 = vmatprep.subr.bf16.mxu0 0
        %3881 = vmatpush1.bf16.msra.mxu0 0
        %3882 = vmatprep.subr.bf16.mxu0 0
        %3883 = vmatpush1.bf16.msra.mxu0 0
        %3884 = vmatprep.subr.bf16.mxu0 0
        %3885 = vmatpush1.bf16.msra.mxu0 0
        %3886 = vmatprep.subr.bf16.mxu0 0
        %3887 = vmatpush1.bf16.msra.mxu0 0
        %3888 = vmatprep.subr.bf16.mxu0 0
        %3889 = vmatpush1.bf16.msra.mxu0 0
        %3890 = vmatprep.subr.bf16.mxu0 0
        %3891 = vmatpush1.bf16.msra.mxu0 %v3871
        %3892 = vmatprep.subr.bf16.mxu0 0
        %3893 = vmatpush2.bf16.msra.mxu0 0
        %3894 = vmatprep.subr.bf16.mxu0 0
        %3895 = vmatpush2.bf16.msra.mxu0 0
        %3896 = vmatprep.subr.bf16.mxu0 0
        %3897 = vmatpush2.bf16.msra.mxu0 0
        %3898 = vmatprep.subr.bf16.mxu0 0
        %3899 = vmatpush2.bf16.msra.mxu0 0
        %3900 = vmatprep.subr.bf16.mxu0 0
        %3901 = vmatpush2.bf16.msra.mxu0 0
        %3902 = vmatprep.subr.bf16.mxu0 0
        %3903 = vmatpush2.bf16.msra.mxu0 0
        %3904 = vmatprep.subr.bf16.mxu0 0
        %3905 = vmatpush2.bf16.msra.mxu0 0
        %3906 = vmatprep.subr.bf16.mxu0 0
        %3907 = vmatpush2.bf16.msra.mxu0 0
        %3908 = vmatprep.mubr.bf16.mxu0 0
        %3909 = vmatmul.mubr.bf16.gmra.mxu0 %v3874
        %v3910 = vpop.f32.mrf.mxu0
        %v3911 = vadd.f32 0.0, %v3910
        %v3912 = vpop.f32.mrf.mxu0
        %v3913 = vpop.f32.mrf.mxu0
        %v3914 = vadd.f32 0.0, %v3913
        %v3915 = vpop.f32.mrf.mxu0
        %3916 = vdwg.mxu0
        %v3917 = vpack.c.bf16 %v3914, %v3911
        %v3918 = vld [vmem:[#allocation10 + $0x1e0] sm:$0xff]
        %v3919 = vld [vmem:[#allocation10 + $0x1e8] sm:$0xf]
        %v3920 = vld [vmem:[#allocation10 + $0x1ec] sm:$0xff]
        %v3921 = vld [vmem:[#allocation10 + $0x1f4] sm:$0xf]
        %v3922 = vld [vmem:[#allocation10 + $0x1f8] sm:$0xff]
        %v3923 = vld [vmem:[#allocation10 + $0x200] sm:$0xf]
        %v3924 = vld [vmem:[#allocation10 + $0x204] sm:$0xff]
        %v3925 = vld [vmem:[#allocation10 + $0x20c] sm:$0xf]
        %v3926 = vld [vmem:[#allocation10 + $0x210] sm:$0xff]
        %v3927 = vld [vmem:[#allocation10 + $0x218] sm:$0xf]
        %v3928 = vld [vmem:[#allocation10 + $0x21c] sm:$0xff]
        %v3929 = vld [vmem:[#allocation10 + $0x224] sm:$0xf]
        %v3930 = vld [vmem:[#allocation10 + $0x228] sm:$0xff]
        %v3931 = vld [vmem:[#allocation10 + $0x230] sm:$0xf]
        %v3932 = vld [vmem:[#allocation10 + $0x234] sm:$0xff]
        %v3933 = vld [vmem:[#allocation10 + $0x23c] sm:$0xf]
        %v3950 = vunpack.c.l.b16 %v3918
        %v3951 = vunpack.c.h.b16 %v3918
        %v3952 = vunpack.c.l.b16 %v3919
        %v3953 = vunpack.c.l.b16 %v3920
        %v3954 = vunpack.c.h.b16 %v3920
        %v3955 = vunpack.c.l.b16 %v3921
        %v3956 = vunpack.c.l.b16 %v3922
        %v3957 = vunpack.c.h.b16 %v3922
        %v3958 = vunpack.c.l.b16 %v3923
        %v3959 = vunpack.c.l.b16 %v3924
        %v3960 = vunpack.c.h.b16 %v3924
        %v3961 = vunpack.c.l.b16 %v3925
        %v3962 = vunpack.c.l.b16 %v3926
        %v3963 = vunpack.c.h.b16 %v3926
        %v3964 = vunpack.c.l.b16 %v3927
        %v3965 = vunpack.c.l.b16 %v3928
        %v3966 = vunpack.c.h.b16 %v3928
        %v3967 = vunpack.c.l.b16 %v3929
        %v3968 = vunpack.c.l.b16 %v3930
        %v3969 = vunpack.c.h.b16 %v3930
        %v3970 = vunpack.c.l.b16 %v3931
        %v3971 = vunpack.c.l.b16 %v3932
        %v3972 = vunpack.c.h.b16 %v3932
        %v3973 = vunpack.c.l.b16 %v3933
        %v3974 = vpack.c.b16 %v3953, %v3950
        %v3975 = vpack.c.b16 %v3954, %v3951
        %v3976 = vpack.c.b16 %v3955, %v3952
        %v3977 = vpack.c.b16 %v3959, %v3956
        %v3978 = vpack.c.b16 %v3960, %v3957
        %v3979 = vpack.c.b16 %v3961, %v3958
        %v3980 = vpack.c.b16 %v3965, %v3962
        %v3981 = vpack.c.b16 %v3966, %v3963
        %v3982 = vpack.c.b16 %v3967, %v3964
        %v3983 = vpack.c.b16 %v3971, %v3968
        %v3984 = vpack.c.b16 %v3972, %v3969
        %v3985 = vpack.c.b16 %v3973, %v3970
        %v3999 = vsel %vm2331, %v3917, 0
        %4001 = vmatprep.subr.bf16.mxu0 0
        %4002 = vmatpush1.bf16.msra.mxu0 0
        %4003 = vmatprep.subr.bf16.mxu0 0
        %4004 = vmatpush1.bf16.msra.mxu0 0
        %4005 = vmatprep.subr.bf16.mxu0 0
        %4006 = vmatpush1.bf16.msra.mxu0 0
        %4007 = vmatprep.subr.bf16.mxu0 0
        %4008 = vmatpush1.bf16.msra.mxu0 0
        %4009 = vmatprep.subr.bf16.mxu0 %v3984
        %4010 = vmatpush1.bf16.msra.mxu0 %v3983
        %4011 = vmatprep.subr.bf16.mxu0 %v3981
        %4012 = vmatpush1.bf16.msra.mxu0 %v3980
        %4013 = vmatprep.subr.bf16.mxu0 %v3978
        %4014 = vmatpush1.bf16.msra.mxu0 %v3977
        %4015 = vmatprep.subr.bf16.mxu0 %v3975
        %4016 = vmatpush1.bf16.msra.mxu0 %v3974
        %4017 = vmatprep.subr.bf16.mxu0 0
        %4018 = vmatpush2.bf16.msra.mxu0 0
        %4019 = vmatprep.subr.bf16.mxu0 0
        %4020 = vmatpush2.bf16.msra.mxu0 0
        %4021 = vmatprep.subr.bf16.mxu0 0
        %4022 = vmatpush2.bf16.msra.mxu0 0
        %4023 = vmatprep.subr.bf16.mxu0 0
        %4024 = vmatpush2.bf16.msra.mxu0 0
        %4025 = vmatprep.subr.bf16.mxu0 0
        %4026 = vmatpush2.bf16.msra.mxu0 0
        %4027 = vmatprep.subr.bf16.mxu0 0
        %4028 = vmatpush2.bf16.msra.mxu0 0
        %4029 = vmatprep.subr.bf16.mxu0 0
        %4030 = vmatpush2.bf16.msra.mxu0 0
        %4031 = vmatprep.subr.bf16.mxu0 0
        %4032 = vmatpush2.bf16.msra.mxu0 0
        %4033 = vmatprep.mubr.bf16.mxu0 0
        %4034 = vmatmul.mubr.bf16.gmra.mxu0 %v3999
        %v4035 = vpop.f32.mrf.mxu0
        %v4036 = vadd.f32 0.0, %v4035
        %v4037 = vpop.f32.mrf.mxu0
        %v4038 = vadd.f32 0.0, %v4037
        %v4039 = vpop.f32.mrf.mxu0
        %v4040 = vadd.f32 0.0, %v4039
        %v4041 = vpop.f32.mrf.mxu0
        %v4042 = vadd.f32 0.0, %v4041
        %4043 = vdwg.mxu0
        %4044 = vmatprep.subr.bf16.mxu0 0
        %4045 = vmatpush1.bf16.msra.mxu0 0
        %4046 = vmatprep.subr.bf16.mxu0 0
        %4047 = vmatpush1.bf16.msra.mxu0 0
        %4048 = vmatprep.subr.bf16.mxu0 0
        %4049 = vmatpush1.bf16.msra.mxu0 0
        %4050 = vmatprep.subr.bf16.mxu0 0
        %4051 = vmatpush1.bf16.msra.mxu0 0
        %4052 = vmatprep.subr.bf16.mxu0 0
        %4053 = vmatpush1.bf16.msra.mxu0 %v3985
        %4054 = vmatprep.subr.bf16.mxu0 0
        %4055 = vmatpush1.bf16.msra.mxu0 %v3982
        %4056 = vmatprep.subr.bf16.mxu0 0
        %4057 = vmatpush1.bf16.msra.mxu0 %v3979
        %4058 = vmatprep.subr.bf16.mxu0 0
        %4059 = vmatpush1.bf16.msra.mxu0 %v3976
        %4060 = vmatprep.subr.bf16.mxu0 0
        %4061 = vmatpush2.bf16.msra.mxu0 0
        %4062 = vmatprep.subr.bf16.mxu0 0
        %4063 = vmatpush2.bf16.msra.mxu0 0
        %4064 = vmatprep.subr.bf16.mxu0 0
        %4065 = vmatpush2.bf16.msra.mxu0 0
        %4066 = vmatprep.subr.bf16.mxu0 0
        %4067 = vmatpush2.bf16.msra.mxu0 0
        %4068 = vmatprep.subr.bf16.mxu0 0
        %4069 = vmatpush2.bf16.msra.mxu0 0
        %4070 = vmatprep.subr.bf16.mxu0 0
        %4071 = vmatpush2.bf16.msra.mxu0 0
        %4072 = vmatprep.subr.bf16.mxu0 0
        %4073 = vmatpush2.bf16.msra.mxu0 0
        %4074 = vmatprep.subr.bf16.mxu0 0
        %4075 = vmatpush2.bf16.msra.mxu0 0
        %4076 = vmatprep.mubr.bf16.mxu0 0
        %4077 = vmatmul.mubr.bf16.gmra.mxu0 %v3999
        %v4078 = vpop.f32.mrf.mxu0
        %v4079 = vadd.f32 0.0, %v4078
        %v4080 = vpop.f32.mrf.mxu0
        %v4081 = vpop.f32.mrf.mxu0
        %v4082 = vadd.f32 0.0, %v4081
        %v4083 = vpop.f32.mrf.mxu0
        %4084 = vdwg.mxu0
        %v4085 = vadd.f32 %v3785, %v4036
        %v4086 = vadd.f32 %v3786, %v4038
        %v4087 = vadd.f32 %v3787, %v4079
        %v4088 = vadd.f32 %v3788, %v4040
        %v4089 = vadd.f32 %v3789, %v4042
        %v4090 = vadd.f32 %v3790, %v4082
        %v4091 = vld [vmem:[%s5] sm:$0x7]
        %v4093 = vlaneseq
        %v4094 = vshrl.u32 %v4093, 7
        %v4095 = vsub.s32 0, %v4094
        %v4096 = vrot.slane %v4091, %v4095
        %v4097 = vlaneseq
        %v4098 = vshrl.u32 %v4097, 7
        %v4099 = vsub.s32 1, %v4098
        %v4100 = vrot.slane %v4091, %v4099
        %v4101 = vlaneseq
        %v4102 = vshrl.u32 %v4101, 7
        %v4103 = vsub.s32 2, %v4102
        %v4104 = vrot.slane %v4091, %v4103
        %v4108 = vadd.f32 %v4085, %v4096
        %v4109 = vadd.f32 %v4086, %v4100
        %v4110 = vadd.f32 %v4087, %v4104
        %v4111 = vadd.f32 %v4088, %v4096
        %v4112 = vadd.f32 %v4089, %v4100
        %v4113 = vadd.f32 %v4090, %v4104
        %4114 = vst [vmem:[%s341] sm:$0xff] %v4108
        %4115 = vst [vmem:[%s341 + $0x8] sm:$0xff] %v4109
        %4116 = vst [vmem:[%s341 + $0x10] sm:$0xff] %v4110
        %4117 = vst [vmem:[%s341 + $0x18] sm:$0xff] %v4111
        %4118 = vst [vmem:[%s341 + $0x20] sm:$0xff] %v4112
        %4119 = vst [vmem:[%s341 + $0x28] sm:$0xff] %v4113
        %s4120 = sand.u32 %s178, 1
        %s4121 = scalar_lea.sflag [#allocation4], %s4120
        %s4122 = sand.u32 %s178, 1
        %s4123 = smul.addr %s4122, 48
        %s4124 = scalar_lea.vmem [#allocation11], %s4123
        // Predicated region
        $region65: #{tpu_custom_call.1} parent=43 // pred_check
          %p4125 = pneg %p188
        $region66: #{tpu_custom_call.1} parent=43 // pred_check_branch
          %4127 = sbr.rel (%p4125) target = $region68
        $region67: #{tpu_custom_call.1} parent=43 // pred_region
          %s4128 = smul.u32 2, %s30
          %s4130 = ssub.s32 768, 768
          %4131 = vsyncadd %s4121, %s4130
          %s4132 = smul.addr %s4128, 3
          %s4133 = smul.addr %s29, 6
          %s4134 = sadd.s32 %s4132, %s4133
          %s4135 = smul.addr %s4134, 128
          %s4136 = scalar_lea.hbm %s6, %s4135
          %s4137 = sshll.u32 %s4124, 4
          %s4138 = int_to_ptr.vmem [resolvable:$true] %s4137
          %4143 = dma.vmem_to_hbm [thread:$0]  %s4138, 768, %s4136, %s4121, 384, 384, 24
        $region68: #{tpu_custom_call.1} parent=43 // pred_fallthru
          _
      $region44: #{tpu_custom_call.1} parent=5 // pred_fallthru
        _
      %p4144 = scmp.le.s32.totalorder 2, %s20
      // Predicated region
      $region69: #{tpu_custom_call.1} parent=5 // pred_check
        %p4145 = pneg %p4144
      $region70: #{tpu_custom_call.1} parent=5 // pred_check_branch
        %4147 = sbr.rel (%p4145) target = $region72
      $region71: #{tpu_custom_call.1} parent=5 // pred_region
        %s4148 = ssub.s32 %s20, 2
        // Predicated region
        $region73: #{tpu_custom_call.1} parent=71 // pred_check
          %p4149 = pneg %p194
        $region74: #{tpu_custom_call.1} parent=71 // pred_check_branch
          %4151 = sbr.rel (%p4149) target = $region76
        $region75: #{tpu_custom_call.1} parent=71 // pred_region
          %s4152 = sand.u32 %s179, 1
          %s4153 = scalar_lea.sflag [#allocation4], %s4152
          %s4154 = sand.u32 %s179, 1
          %s4155 = smul.addr %s4154, 48
          %s4156 = scalar_lea.vmem [#allocation11], %s4155
          %4157 = dma.done %s4153, 768
        $region76: #{tpu_custom_call.1} parent=71 // pred_fallthru
          _
      $region72: #{tpu_custom_call.1} parent=5 // pred_fallthru
        _
    $region6: #{tpu_custom_call.1} parent=1 // loop_footer
      %s24 = sadd.s32 1, %s20
    $region7: #{tpu_custom_call.1} parent=1 // loop_footer_branch
      %19 = sbr.rel target = $region3
    $region8: #{tpu_custom_call.1} parent=1 // loop_exit
      _
    %4158 = vsyncpa [#allocation3], 1
    %s4159 = scalar_lea.sflag [#allocation3], 1
    %4160 = vsyncpa %s4159, 1
    %4161 = vsyncpa [#allocation6], 1
    %4162 = vsyncpa [#allocation9], 1
    %4163 = vsyncpa [#allocation4], 1
    %s4164 = scalar_lea.sflag [#allocation4], 1
    %4165 = vsyncpa %s4164, 1

</llo_original>
